<compile_context>
chip_gen: v6e
topology: v6e:2x2x1
jax: 0.10.0
libtpu: 0.0.40
codegen_flags: <defaults>
</compile_context>

<pallas_src>
import jax
import jax.numpy as jnp
from jax.experimental import pallas as pl
from jax.experimental.pallas import tpu as pltpu

EPS = 1e-5  # PyTorch nn.LayerNorm default


def _pick_row_tile(n, d):
    """Largest row tile s.t. ~4 live (TN, D*D) f32 slabs stay under ~8 MiB (and TN <= 512)."""
    cap = max(8, (8 * 1024 * 1024) // (16 * d * d))
    cap = min(cap, 512)
    if n <= cap:
        return n
    t = (cap // 8) * 8
    while t >= 8 and n % t != 0:
        t -= 8
    return t if t >= 8 else n


def attention_p_kernel(
    q_ref, kv_ref,
    gq_ref, bqn_ref, gk_ref, bkn_ref, gv_ref, bvn_ref,
    wq_ref, bq_ref, wk_ref, bk_ref, wv_ref, bv_ref,
    wp_ref, bp_ref,
    rep_ref, rep_t_ref, tile_ref,
    out_ref,
):
    q = q_ref[...]          # (TN, D) f32   -- one row tile of one batch
    kv = kv_ref[...]        # (1, D)  f32

    # ---- LayerNorm(q) + q projection: the whole row tile in one MXU matmul ----
    mu = jnp.mean(q, axis=-1, keepdims=True)
    qc = q - mu
    var = jnp.mean(qc * qc, axis=-1, keepdims=True)
    qn = qc * jax.lax.rsqrt(var + EPS) * gq_ref[...] + bqn_ref[...]
    qp = jnp.dot(qn, wq_ref[...], preferred_element_type=jnp.float32) + bq_ref[...]    # (TN, D)

    # ---- kv LayerNorm statistics computed once, shared by the k and v branches ----
    # (recomputed per row tile of the same batch; it is a single (1, D) row -> negligible)
    mu_kv = jnp.mean(kv, axis=-1, keepdims=True)
    kc = kv - mu_kv
    var_kv = jnp.mean(kc * kc, axis=-1, keepdims=True)
    xhat = kc * jax.lax.rsqrt(var_kv + EPS)
    kn = xhat * gk_ref[...] + bkn_ref[...]
    vn = xhat * gv_ref[...] + bvn_ref[...]
    kp = jnp.dot(kn, wk_ref[...], preferred_element_type=jnp.float32) + bk_ref[...]    # (1, D)
    vp = jnp.dot(vn, wv_ref[...], preferred_element_type=jnp.float32) + bv_ref[...]    # (1, D)

    # ---- lane-dense rank-1 softmax over v ----
    # Flatten the (j, v) pair onto the lane axis with constant 0/1 matrices (MXU, exact selection
    # up to ~1e-6 rel) instead of in-kernel reshapes:
    #   qp_rep[i, j*D+v]  = qp[i, j]      kp_tile[0, j*D+v] = kp[v]      vp_tile likewise.
    qp_rep = jnp.dot(qp, rep_ref[...], preferred_element_type=jnp.float32)    # (TN, D*D)
    kp_tile = jnp.dot(kp, tile_ref[...], preferred_element_type=jnp.float32)  # (1,  D*D)
    vp_tile = jnp.dot(vp, tile_ref[...], preferred_element_type=jnp.float32)  # (1,  D*D)

    # Analytic row max of s[i,j,:] = qp[i,j]*kp[:]  is  qp*kmax (qp>=0) else qp*kmin, so
    # s - m = qp_rep * (kp_tile - shift)  with  shift = kmax or kmin  -> exponent <= 0, exp <= 1.
    kmax = jnp.max(kp, axis=-1, keepdims=True)    # (1, 1)
    kmin = jnp.min(kp, axis=-1, keepdims=True)    # (1, 1)
    shift = jnp.where(qp_rep >= 0.0, kmax, kmin)                     # (TN, D*D)
    p = jnp.exp(qp_rep * (kp_tile - shift))                          # (TN, D*D)  lane-dense EUP slab

    # Both softmax reductions on the (otherwise idle) MXU: REP^T sums each length-D v-group.
    den = jnp.dot(p, rep_t_ref[...], preferred_element_type=jnp.float32)            # (TN, D), >= 1
    num = jnp.dot(p * vp_tile, rep_t_ref[...], preferred_element_type=jnp.float32)  # (TN, D)

    # EUP approximate reciprocal + one Newton refinement (den >= 1 -> well within 1e-4).
    r0 = pl.reciprocal(den, approx=True)
    r = r0 * (2.0 - den * r0)
    attn_out = num * r                                               # (TN, D)

    # ---- final projection, per tile (overlaps next tile's exps via the pipeline) ----
    out = jnp.dot(attn_out, wp_ref[...], preferred_element_type=jnp.float32) + bp_ref[...]
    out_ref[...] = out.astype(out_ref.dtype)


def attention_p_pallas(q, kv, params):
    """q: (B, N, D) f32, kv: (B, 1, D) f32. Returns (B, N, D) f32."""
    B, N, D = q.shape
    assert kv.shape == (B, 1, D)

    TN = _pick_row_tile(N, D)
    NT = N // TN
    D2 = D * D

    # Constant flatten helpers (built once in the wrapper, VMEM-resident in the kernel):
    #   REP [j, j*D+v]  = 1   (repeat each qp element D times along lanes)
    #   TILE[v, j*D+v]  = 1   (tile kp / vp D times along lanes)
    eye = jnp.eye(D, dtype=jnp.float32)
    mask_rep = jnp.repeat(eye, D, axis=1)     # (D, D*D)
    mask_tile = jnp.tile(eye, (1, D))         # (D, D*D)
    mask_rep_t = mask_rep.T                   # (D*D, D)

    row_spec = pl.BlockSpec((None, TN, D), lambda b, i: (b, i, 0))   # q / out row tiles
    kv_spec = pl.BlockSpec((None, 1, D), lambda b, i: (b, 0, 0))     # per-batch kv row
    vec_spec = pl.BlockSpec((1, D), lambda b, i: (0, 0))             # resident LN / bias vectors
    mat_spec = pl.BlockSpec((D, D), lambda b, i: (0, 0))             # resident (D, D) weights
    rep_spec = pl.BlockSpec((D, D2), lambda b, i: (0, 0))
    rep_t_spec = pl.BlockSpec((D2, D), lambda b, i: (0, 0))
    tile_spec = pl.BlockSpec((D, D2), lambda b, i: (0, 0))

    out = pl.pallas_call(
        attention_p_kernel,
        out_shape=jax.ShapeDtypeStruct((B, N, D), jnp.float32),
        grid=(B, NT),
        in_specs=[
            row_spec, kv_spec,
            vec_spec, vec_spec, vec_spec, vec_spec, vec_spec, vec_spec,
            mat_spec, vec_spec, mat_spec, vec_spec, mat_spec, vec_spec, mat_spec, vec_spec,
            rep_spec, rep_t_spec, tile_spec,
        ],
        out_specs=row_spec,
        compiler_params=pltpu.CompilerParams(
            dimension_semantics=("parallel", "parallel"),   # both axes independent -> v7x megacore
            vmem_limit_bytes=32 * 1024 * 1024,
        ),
    )(
        q, kv,
        params["g_q"], params["b_q_ln"],
        params["g_k"], params["b_k_ln"],
        params["g_v"], params["b_v_ln"],
        params["WqT"], params["bq"],
        params["WkT"], params["bk"],
        params["WvT"], params["bv"],
        params["WpT"], params["bp"],
        mask_rep, mask_rep_t, mask_tile,
    )
    return out


def attention_p_reference(q, kv, params):
    """Pure-JAX mirror of the PyTorch forward, for verification."""
    def ln(x, g, b):
        mu = jnp.mean(x, axis=-1, keepdims=True)
        var = jnp.mean((x - mu) ** 2, axis=-1, keepdims=True)
        return (x - mu) / jnp.sqrt(var + EPS) * g + b

    qn = ln(q, params["g_q"], params["b_q_ln"])
    kn = ln(kv, params["g_k"], params["b_k_ln"])
    vn = ln(kv, params["g_v"], params["b_v_ln"])
    qp = qn @ params["WqT"] + params["bq"]          # (B, N, D)
    kp = kn @ params["WkT"] + params["bk"]          # (B, 1, D)
    vp = vn @ params["WvT"] + params["bv"]          # (B, 1, D)

    q4 = qp[..., None]                              # (B, N, D, 1)
    attn = jnp.einsum("bijk,bkv->bijv", q4, kp)     # (B, N, D, D)
    attn = jax.nn.softmax(attn, axis=-1)
    out = jnp.einsum("bijk,bmk->bijm", attn, vp)[..., 0]   # (B, N, D)
    return out @ params["WpT"] + params["bp"]


def init_params(key, dim):
    ks = jax.random.split(key, 8)
    scale = 1.0 / jnp.sqrt(dim)
    p = {}
    # LayerNorm params (perturbed from identity so the test is nontrivial)
    p["g_q"] = 1.0 + 0.05 * jax.random.normal(ks[0], (1, dim), jnp.float32)
    p["b_q_ln"] = 0.05 * jax.random.normal(ks[1], (1, dim), jnp.float32)
    p["g_k"] = 1.0 + 0.05 * jax.random.normal(ks[2], (1, dim), jnp.float32)
    p["b_k_ln"] = 0.05 * jax.random.normal(ks[3], (1, dim), jnp.float32)
    p["g_v"] = 1.0 + 0.05 * jax.random.normal(ks[4], (1, dim), jnp.float32)
    p["b_v_ln"] = 0.05 * jax.random.normal(ks[5], (1, dim), jnp.float32)
    # Linear weights stored pre-transposed: y = x @ W^T + b  ->  x @ WT + b
    wkeys = jax.random.split(ks[6], 4)
    bkeys = jax.random.split(ks[7], 4)
    for name, wk, bk in zip(["q", "k", "v", "p"], wkeys, bkeys):
        p[f"W{name}T"] = scale * jax.random.normal(wk, (dim, dim), jnp.float32)
        p[f"b{name}"] = scale * jax.random.normal(bk, (1, dim), jnp.float32)
    return p


if __name__ == "__main__":
    B, N, D = 2, 8, 32
    key = jax.random.PRNGKey(0)
    k_q, k_kv, k_param = jax.random.split(key, 3)

    q = jax.random.normal(k_q, (B, N, D), jnp.float32)
    kv = jax.random.normal(k_kv, (B, 1, D), jnp.float32)
    params = init_params(k_param, D)

    out = attention_p_pallas(q, kv, params)
    out = jax.block_until_ready(out)

    ref = attention_p_reference(q, kv, params)
    if not bool(jnp.allclose(out, ref, atol=1e-4, rtol=1e-4)):
        raise AssertionError("Pallas output does not match reference")

    print("KERNEL_OK")
</pallas_src>

<mosaic_0001>
module attributes {stable_mosaic.version = 11 : i64} {
  func.func @attention_p_kernel(%arg0: i32, %arg1: i32, %arg2: memref<1x8x32xf32, #tpu.memory_space<vmem>>, %arg3: memref<1x1x32xf32, #tpu.memory_space<vmem>>, %arg4: memref<1x32xf32, #tpu.memory_space<vmem>>, %arg5: memref<1x32xf32, #tpu.memory_space<vmem>>, %arg6: memref<1x32xf32, #tpu.memory_space<vmem>>, %arg7: memref<1x32xf32, #tpu.memory_space<vmem>>, %arg8: memref<1x32xf32, #tpu.memory_space<vmem>>, %arg9: memref<1x32xf32, #tpu.memory_space<vmem>>, %arg10: memref<32x32xf32, #tpu.memory_space<vmem>>, %arg11: memref<1x32xf32, #tpu.memory_space<vmem>>, %arg12: memref<32x32xf32, #tpu.memory_space<vmem>>, %arg13: memref<1x32xf32, #tpu.memory_space<vmem>>, %arg14: memref<32x32xf32, #tpu.memory_space<vmem>>, %arg15: memref<1x32xf32, #tpu.memory_space<vmem>>, %arg16: memref<32x32xf32, #tpu.memory_space<vmem>>, %arg17: memref<1x32xf32, #tpu.memory_space<vmem>>, %arg18: memref<32x1024xf32, #tpu.memory_space<vmem>>, %arg19: memref<1024x32xf32, #tpu.memory_space<vmem>>, %arg20: memref<32x1024xf32, #tpu.memory_space<vmem>>, %arg21: memref<1x8x32xf32, #tpu.memory_space<vmem>>) attributes {dimension_semantics = [#tpu.dimension_semantics<parallel>, #tpu.dimension_semantics<parallel>], iteration_bounds = array<i64: 2, 1>, scalar_prefetch = 0 : i64, scratch_operands = 0 : i64, tpu.core_type = #tpu.core_type<tc>, window_params = [{transform_indices = @transform_0, window_bounds = array<i64: 1, 8, 32>}, {transform_indices = @transform_1, window_bounds = array<i64: 1, 1, 32>}, {pipeline_mode = #tpu.pipeline_mode<synchronous>, transform_indices = @transform_2, window_bounds = array<i64: 1, 32>}, {pipeline_mode = #tpu.pipeline_mode<synchronous>, transform_indices = @transform_3, window_bounds = array<i64: 1, 32>}, {pipeline_mode = #tpu.pipeline_mode<synchronous>, transform_indices = @transform_4, window_bounds = array<i64: 1, 32>}, {pipeline_mode = #tpu.pipeline_mode<synchronous>, transform_indices = @transform_5, window_bounds = array<i64: 1, 32>}, {pipeline_mode = #tpu.pipeline_mode<synchronous>, transform_indices = @transform_6, window_bounds = array<i64: 1, 32>}, {pipeline_mode = #tpu.pipeline_mode<synchronous>, transform_indices = @transform_7, window_bounds = array<i64: 1, 32>}, {pipeline_mode = #tpu.pipeline_mode<synchronous>, transform_indices = @transform_8, window_bounds = array<i64: 32, 32>}, {pipeline_mode = #tpu.pipeline_mode<synchronous>, transform_indices = @transform_9, window_bounds = array<i64: 1, 32>}, {pipeline_mode = #tpu.pipeline_mode<synchronous>, transform_indices = @transform_10, window_bounds = array<i64: 32, 32>}, {pipeline_mode = #tpu.pipeline_mode<synchronous>, transform_indices = @transform_11, window_bounds = array<i64: 1, 32>}, {pipeline_mode = #tpu.pipeline_mode<synchronous>, transform_indices = @transform_12, window_bounds = array<i64: 32, 32>}, {pipeline_mode = #tpu.pipeline_mode<synchronous>, transform_indices = @transform_13, window_bounds = array<i64: 1, 32>}, {pipeline_mode = #tpu.pipeline_mode<synchronous>, transform_indices = @transform_14, window_bounds = array<i64: 32, 32>}, {pipeline_mode = #tpu.pipeline_mode<synchronous>, transform_indices = @transform_15, window_bounds = array<i64: 1, 32>}, {pipeline_mode = #tpu.pipeline_mode<synchronous>, transform_indices = @transform_16, window_bounds = array<i64: 32, 1024>}, {pipeline_mode = #tpu.pipeline_mode<synchronous>, transform_indices = @transform_17, window_bounds = array<i64: 1024, 32>}, {pipeline_mode = #tpu.pipeline_mode<synchronous>, transform_indices = @transform_18, window_bounds = array<i64: 32, 1024>}, {transform_indices = @transform_19, window_bounds = array<i64: 1, 8, 32>}]} {
    %c0 = arith.constant 0 : index
    %c0_0 = arith.constant 0 : index
    %c0_1 = arith.constant 0 : index
    %0 = vector.load %arg2[%c0, %c0_0, %c0_1] : memref<1x8x32xf32, #tpu.memory_space<vmem>>, vector<1x8x32xf32>
    %1 = vector.shape_cast %0 : vector<1x8x32xf32> to vector<8x32xf32>
    %c0_2 = arith.constant 0 : index
    %c0_3 = arith.constant 0 : index
    %c0_4 = arith.constant 0 : index
    %2 = vector.load %arg3[%c0_2, %c0_3, %c0_4] : memref<1x1x32xf32, #tpu.memory_space<vmem>>, vector<1x1x32xf32>
    %3 = vector.shape_cast %2 : vector<1x1x32xf32> to vector<1x32xf32>
    %cst = arith.constant dense<0.000000e+00> : vector<8xf32>
    %4 = vector.multi_reduction <add>, %1, %cst [1] : vector<8x32xf32> to vector<8xf32>
    %5 = vector.shape_cast %4 : vector<8xf32> to vector<8x1xf32>
    %cst_5 = arith.constant 3.200000e+01 : f32
    %6 = vector.broadcast %cst_5 : f32 to vector<8x1xf32>
    %7 = arith.divf %5, %6 : vector<8x1xf32>
    %8 = vector.broadcast %7 : vector<8x1xf32> to vector<8x32xf32>
    %9 = arith.subf %1, %8 : vector<8x32xf32>
    %10 = arith.mulf %9, %9 : vector<8x32xf32>
    %cst_6 = arith.constant dense<0.000000e+00> : vector<8xf32>
    %11 = vector.multi_reduction <add>, %10, %cst_6 [1] : vector<8x32xf32> to vector<8xf32>
    %12 = vector.shape_cast %11 : vector<8xf32> to vector<8x1xf32>
    %cst_7 = arith.constant 3.200000e+01 : f32
    %13 = vector.broadcast %cst_7 : f32 to vector<8x1xf32>
    %14 = arith.divf %12, %13 : vector<8x1xf32>
    %cst_8 = arith.constant 9.99999974E-6 : f32
    %15 = vector.broadcast %cst_8 : f32 to vector<8x1xf32>
    %16 = arith.addf %14, %15 : vector<8x1xf32>
    %17 = math.rsqrt %16 : vector<8x1xf32>
    %18 = vector.broadcast %17 : vector<8x1xf32> to vector<8x32xf32>
    %19 = arith.mulf %9, %18 : vector<8x32xf32>
    %c0_9 = arith.constant 0 : index
    %c0_10 = arith.constant 0 : index
    %20 = vector.load %arg4[%c0_9, %c0_10] : memref<1x32xf32, #tpu.memory_space<vmem>>, vector<1x32xf32>
    %21 = vector.broadcast %20 : vector<1x32xf32> to vector<8x32xf32>
    %22 = arith.mulf %19, %21 : vector<8x32xf32>
    %c0_11 = arith.constant 0 : index
    %c0_12 = arith.constant 0 : index
    %23 = vector.load %arg5[%c0_11, %c0_12] : memref<1x32xf32, #tpu.memory_space<vmem>>, vector<1x32xf32>
    %24 = vector.broadcast %23 : vector<1x32xf32> to vector<8x32xf32>
    %25 = arith.addf %22, %24 : vector<8x32xf32>
    %c0_13 = arith.constant 0 : index
    %c0_14 = arith.constant 0 : index
    %26 = vector.load %arg10[%c0_13, %c0_14] : memref<32x32xf32, #tpu.memory_space<vmem>>, vector<32x32xf32>
    %cst_15 = arith.constant dense<0.000000e+00> : vector<8x32xf32>
    %27 = tpu.matmul %25, %26, %cst_15 {dimension_numbers = #tpu.dot_dimension_numbers<[1], [0], [0], [1], [0, 0, 1, 1], [], []>} : vector<8x32xf32>, vector<32x32xf32>, vector<8x32xf32> -> vector<8x32xf32>
    %c0_16 = arith.constant 0 : index
    %c0_17 = arith.constant 0 : index
    %28 = vector.load %arg11[%c0_16, %c0_17] : memref<1x32xf32, #tpu.memory_space<vmem>>, vector<1x32xf32>
    %29 = vector.broadcast %28 : vector<1x32xf32> to vector<8x32xf32>
    %30 = arith.addf %27, %29 : vector<8x32xf32>
    %cst_18 = arith.constant dense<0.000000e+00> : vector<1xf32>
    %31 = vector.multi_reduction <add>, %3, %cst_18 [1] : vector<1x32xf32> to vector<1xf32>
    %32 = vector.shape_cast %31 : vector<1xf32> to vector<1x1xf32>
    %cst_19 = arith.constant 3.200000e+01 : f32
    %33 = vector.broadcast %cst_19 : f32 to vector<1x1xf32>
    %34 = arith.divf %32, %33 : vector<1x1xf32>
    %35 = vector.broadcast %34 : vector<1x1xf32> to vector<1x32xf32>
    %36 = arith.subf %3, %35 : vector<1x32xf32>
    %37 = arith.mulf %36, %36 : vector<1x32xf32>
    %cst_20 = arith.constant dense<0.000000e+00> : vector<1xf32>
    %38 = vector.multi_reduction <add>, %37, %cst_20 [1] : vector<1x32xf32> to vector<1xf32>
    %39 = vector.shape_cast %38 : vector<1xf32> to vector<1x1xf32>
    %cst_21 = arith.constant 3.200000e+01 : f32
    %40 = vector.broadcast %cst_21 : f32 to vector<1x1xf32>
    %41 = arith.divf %39, %40 : vector<1x1xf32>
    %cst_22 = arith.constant 9.99999974E-6 : f32
    %42 = vector.broadcast %cst_22 : f32 to vector<1x1xf32>
    %43 = arith.addf %41, %42 : vector<1x1xf32>
    %44 = math.rsqrt %43 : vector<1x1xf32>
    %45 = vector.broadcast %44 : vector<1x1xf32> to vector<1x32xf32>
    %46 = arith.mulf %36, %45 : vector<1x32xf32>
    %c0_23 = arith.constant 0 : index
    %c0_24 = arith.constant 0 : index
    %47 = vector.load %arg6[%c0_23, %c0_24] : memref<1x32xf32, #tpu.memory_space<vmem>>, vector<1x32xf32>
    %48 = arith.mulf %46, %47 : vector<1x32xf32>
    %c0_25 = arith.constant 0 : index
    %c0_26 = arith.constant 0 : index
    %49 = vector.load %arg7[%c0_25, %c0_26] : memref<1x32xf32, #tpu.memory_space<vmem>>, vector<1x32xf32>
    %50 = arith.addf %48, %49 : vector<1x32xf32>
    %c0_27 = arith.constant 0 : index
    %c0_28 = arith.constant 0 : index
    %51 = vector.load %arg8[%c0_27, %c0_28] : memref<1x32xf32, #tpu.memory_space<vmem>>, vector<1x32xf32>
    %52 = arith.mulf %46, %51 : vector<1x32xf32>
    %c0_29 = arith.constant 0 : index
    %c0_30 = arith.constant 0 : index
    %53 = vector.load %arg9[%c0_29, %c0_30] : memref<1x32xf32, #tpu.memory_space<vmem>>, vector<1x32xf32>
    %54 = arith.addf %52, %53 : vector<1x32xf32>
    %c0_31 = arith.constant 0 : index
    %c0_32 = arith.constant 0 : index
    %55 = vector.load %arg12[%c0_31, %c0_32] : memref<32x32xf32, #tpu.memory_space<vmem>>, vector<32x32xf32>
    %cst_33 = arith.constant dense<0.000000e+00> : vector<1x32xf32>
    %56 = tpu.matmul %50, %55, %cst_33 {dimension_numbers = #tpu.dot_dimension_numbers<[1], [0], [0], [1], [0, 0, 1, 1], [], []>} : vector<1x32xf32>, vector<32x32xf32>, vector<1x32xf32> -> vector<1x32xf32>
    %c0_34 = arith.constant 0 : index
    %c0_35 = arith.constant 0 : index
    %57 = vector.load %arg13[%c0_34, %c0_35] : memref<1x32xf32, #tpu.memory_space<vmem>>, vector<1x32xf32>
    %58 = arith.addf %56, %57 : vector<1x32xf32>
    %c0_36 = arith.constant 0 : index
    %c0_37 = arith.constant 0 : index
    %59 = vector.load %arg14[%c0_36, %c0_37] : memref<32x32xf32, #tpu.memory_space<vmem>>, vector<32x32xf32>
    %cst_38 = arith.constant dense<0.000000e+00> : vector<1x32xf32>
    %60 = tpu.matmul %54, %59, %cst_38 {dimension_numbers = #tpu.dot_dimension_numbers<[1], [0], [0], [1], [0, 0, 1, 1], [], []>} : vector<1x32xf32>, vector<32x32xf32>, vector<1x32xf32> -> vector<1x32xf32>
    %c0_39 = arith.constant 0 : index
    %c0_40 = arith.constant 0 : index
    %61 = vector.load %arg15[%c0_39, %c0_40] : memref<1x32xf32, #tpu.memory_space<vmem>>, vector<1x32xf32>
    %62 = arith.addf %60, %61 : vector<1x32xf32>
    %c0_41 = arith.constant 0 : index
    %c0_42 = arith.constant 0 : index
    %63 = vector.load %arg18[%c0_41, %c0_42] : memref<32x1024xf32, #tpu.memory_space<vmem>>, vector<32x1024xf32>
    %cst_43 = arith.constant dense<0.000000e+00> : vector<8x1024xf32>
    %64 = tpu.matmul %30, %63, %cst_43 {dimension_numbers = #tpu.dot_dimension_numbers<[1], [0], [0], [1], [0, 0, 1, 1], [], []>} : vector<8x32xf32>, vector<32x1024xf32>, vector<8x1024xf32> -> vector<8x1024xf32>
    %c0_44 = arith.constant 0 : index
    %c0_45 = arith.constant 0 : index
    %65 = vector.load %arg20[%c0_44, %c0_45] : memref<32x1024xf32, #tpu.memory_space<vmem>>, vector<32x1024xf32>
    %cst_46 = arith.constant dense<0.000000e+00> : vector<1x1024xf32>
    %66 = tpu.matmul %58, %65, %cst_46 {dimension_numbers = #tpu.dot_dimension_numbers<[1], [0], [0], [1], [0, 0, 1, 1], [], []>} : vector<1x32xf32>, vector<32x1024xf32>, vector<1x1024xf32> -> vector<1x1024xf32>
    %c0_47 = arith.constant 0 : index
    %c0_48 = arith.constant 0 : index
    %67 = vector.load %arg20[%c0_47, %c0_48] : memref<32x1024xf32, #tpu.memory_space<vmem>>, vector<32x1024xf32>
    %cst_49 = arith.constant dense<0.000000e+00> : vector<1x1024xf32>
    %68 = tpu.matmul %62, %67, %cst_49 {dimension_numbers = #tpu.dot_dimension_numbers<[1], [0], [0], [1], [0, 0, 1, 1], [], []>} : vector<1x32xf32>, vector<32x1024xf32>, vector<1x1024xf32> -> vector<1x1024xf32>
    %cst_50 = arith.constant dense<0xFF800000> : vector<1xf32>
    %69 = vector.multi_reduction <maximumf>, %58, %cst_50 [1] : vector<1x32xf32> to vector<1xf32>
    %70 = vector.shape_cast %69 : vector<1xf32> to vector<1x1xf32>
    %cst_51 = arith.constant dense<0x7F800000> : vector<1xf32>
    %71 = vector.multi_reduction <minimumf>, %58, %cst_51 [1] : vector<1x32xf32> to vector<1xf32>
    %72 = vector.shape_cast %71 : vector<1xf32> to vector<1x1xf32>
    %cst_52 = arith.constant 0.000000e+00 : f32
    %73 = vector.broadcast %cst_52 : f32 to vector<8x1024xf32>
    %74 = arith.cmpf oge, %64, %73 : vector<8x1024xf32>
    %75 = vector.shape_cast %70 : vector<1x1xf32> to vector<1x1xf32>
    %76 = vector.broadcast %75 : vector<1x1xf32> to vector<8x1024xf32>
    %77 = vector.shape_cast %72 : vector<1x1xf32> to vector<1x1xf32>
    %78 = vector.broadcast %77 : vector<1x1xf32> to vector<8x1024xf32>
    %79 = arith.select %74, %76, %78 : vector<8x1024xi1>, vector<8x1024xf32>
    %80 = vector.broadcast %66 : vector<1x1024xf32> to vector<8x1024xf32>
    %81 = arith.subf %80, %79 : vector<8x1024xf32>
    %82 = arith.mulf %64, %81 : vector<8x1024xf32>
    %83 = math.exp %82 : vector<8x1024xf32>
    %c0_53 = arith.constant 0 : index
    %c0_54 = arith.constant 0 : index
    %84 = vector.load %arg19[%c0_53, %c0_54] : memref<1024x32xf32, #tpu.memory_space<vmem>>, vector<1024x32xf32>
    %cst_55 = arith.constant dense<0.000000e+00> : vector<8x32xf32>
    %85 = tpu.matmul %83, %84, %cst_55 {dimension_numbers = #tpu.dot_dimension_numbers<[1], [0], [0], [1], [0, 0, 1, 1], [], []>} : vector<8x1024xf32>, vector<1024x32xf32>, vector<8x32xf32> -> vector<8x32xf32>
    %86 = vector.broadcast %68 : vector<1x1024xf32> to vector<8x1024xf32>
    %87 = arith.mulf %83, %86 : vector<8x1024xf32>
    %c0_56 = arith.constant 0 : index
    %c0_57 = arith.constant 0 : index
    %88 = vector.load %arg19[%c0_56, %c0_57] : memref<1024x32xf32, #tpu.memory_space<vmem>>, vector<1024x32xf32>
    %cst_58 = arith.constant dense<0.000000e+00> : vector<8x32xf32>
    %89 = tpu.matmul %87, %88, %cst_58 {dimension_numbers = #tpu.dot_dimension_numbers<[1], [0], [0], [1], [0, 0, 1, 1], [], []>} : vector<8x1024xf32>, vector<1024x32xf32>, vector<8x32xf32> -> vector<8x32xf32>
    %90 = tpu.reciprocal %85 {approx = true} : vector<8x32xf32> -> vector<8x32xf32>
    %91 = arith.mulf %85, %90 : vector<8x32xf32>
    %cst_59 = arith.constant 2.000000e+00 : f32
    %92 = vector.broadcast %cst_59 : f32 to vector<8x32xf32>
    %93 = arith.subf %92, %91 : vector<8x32xf32>
    %94 = arith.mulf %90, %93 : vector<8x32xf32>
    %95 = arith.mulf %89, %94 : vector<8x32xf32>
    %c0_60 = arith.constant 0 : index
    %c0_61 = arith.constant 0 : index
    %96 = vector.load %arg16[%c0_60, %c0_61] : memref<32x32xf32, #tpu.memory_space<vmem>>, vector<32x32xf32>
    %cst_62 = arith.constant dense<0.000000e+00> : vector<8x32xf32>
    %97 = tpu.matmul %95, %96, %cst_62 {dimension_numbers = #tpu.dot_dimension_numbers<[1], [0], [0], [1], [0, 0, 1, 1], [], []>} : vector<8x32xf32>, vector<32x32xf32>, vector<8x32xf32> -> vector<8x32xf32>
    %c0_63 = arith.constant 0 : index
    %c0_64 = arith.constant 0 : index
    %98 = vector.load %arg17[%c0_63, %c0_64] : memref<1x32xf32, #tpu.memory_space<vmem>>, vector<1x32xf32>
    %99 = vector.broadcast %98 : vector<1x32xf32> to vector<8x32xf32>
    %100 = arith.addf %97, %99 : vector<8x32xf32>
    %c0_65 = arith.constant 0 : index
    %c0_66 = arith.constant 0 : index
    %c0_67 = arith.constant 0 : index
    %101 = vector.load %arg21[%c0_65, %c0_66, %c0_67] : memref<1x8x32xf32, #tpu.memory_space<vmem>>, vector<1x8x32xf32>
    %102 = vector.shape_cast %101 : vector<1x8x32xf32> to vector<8x32xf32>
    %103 = vector.shape_cast %100 : vector<8x32xf32> to vector<1x8x32xf32>
    tpu.vector_store %arg21[%c0_65, %c0_66, %c0_67], %103 {strides = array<i32>} : memref<1x8x32xf32, #tpu.memory_space<vmem>>, vector<1x8x32xf32>,
    return
  }
  func.func @transform_0(%arg0: i32, %arg1: i32) -> (i32, i32, i32) {
    %c0_i32 = arith.constant 0 : i32
    %c0_i32_0 = arith.constant 0 : i32
    return %arg0, %arg1, %c0_i32 : i32, i32, i32
  }
  func.func @transform_1(%arg0: i32, %arg1: i32) -> (i32, i32, i32) {
    %c0_i32 = arith.constant 0 : i32
    %c0_i32_0 = arith.constant 0 : i32
    %c0_i32_1 = arith.constant 0 : i32
    return %arg0, %c0_i32, %c0_i32_0 : i32, i32, i32
  }
  func.func @transform_2(%arg0: i32, %arg1: i32) -> (i32, i32) {
    %c0_i32 = arith.constant 0 : i32
    %c0_i32_0 = arith.constant 0 : i32
    %c0_i32_1 = arith.constant 0 : i32
    return %c0_i32, %c0_i32_0 : i32, i32
  }
  func.func @transform_3(%arg0: i32, %arg1: i32) -> (i32, i32) {
    %c0_i32 = arith.constant 0 : i32
    %c0_i32_0 = arith.constant 0 : i32
    %c0_i32_1 = arith.constant 0 : i32
    return %c0_i32, %c0_i32_0 : i32, i32
  }
  func.func @transform_4(%arg0: i32, %arg1: i32) -> (i32, i32) {
    %c0_i32 = arith.constant 0 : i32
    %c0_i32_0 = arith.constant 0 : i32
    %c0_i32_1 = arith.constant 0 : i32
    return %c0_i32, %c0_i32_0 : i32, i32
  }
  func.func @transform_5(%arg0: i32, %arg1: i32) -> (i32, i32) {
    %c0_i32 = arith.constant 0 : i32
    %c0_i32_0 = arith.constant 0 : i32
    %c0_i32_1 = arith.constant 0 : i32
    return %c0_i32, %c0_i32_0 : i32, i32
  }
  func.func @transform_6(%arg0: i32, %arg1: i32) -> (i32, i32) {
    %c0_i32 = arith.constant 0 : i32
    %c0_i32_0 = arith.constant 0 : i32
    %c0_i32_1 = arith.constant 0 : i32
    return %c0_i32, %c0_i32_0 : i32, i32
  }
  func.func @transform_7(%arg0: i32, %arg1: i32) -> (i32, i32) {
    %c0_i32 = arith.constant 0 : i32
    %c0_i32_0 = arith.constant 0 : i32
    %c0_i32_1 = arith.constant 0 : i32
    return %c0_i32, %c0_i32_0 : i32, i32
  }
  func.func @transform_8(%arg0: i32, %arg1: i32) -> (i32, i32) {
    %c0_i32 = arith.constant 0 : i32
    %c0_i32_0 = arith.constant 0 : i32
    %c0_i32_1 = arith.constant 0 : i32
    return %c0_i32, %c0_i32_0 : i32, i32
  }
  func.func @transform_9(%arg0: i32, %arg1: i32) -> (i32, i32) {
    %c0_i32 = arith.constant 0 : i32
    %c0_i32_0 = arith.constant 0 : i32
    %c0_i32_1 = arith.constant 0 : i32
    return %c0_i32, %c0_i32_0 : i32, i32
  }
  func.func @transform_10(%arg0: i32, %arg1: i32) -> (i32, i32) {
    %c0_i32 = arith.constant 0 : i32
    %c0_i32_0 = arith.constant 0 : i32
    %c0_i32_1 = arith.constant 0 : i32
    return %c0_i32, %c0_i32_0 : i32, i32
  }
  func.func @transform_11(%arg0: i32, %arg1: i32) -> (i32, i32) {
    %c0_i32 = arith.constant 0 : i32
    %c0_i32_0 = arith.constant 0 : i32
    %c0_i32_1 = arith.constant 0 : i32
    return %c0_i32, %c0_i32_0 : i32, i32
  }
  func.func @transform_12(%arg0: i32, %arg1: i32) -> (i32, i32) {
    %c0_i32 = arith.constant 0 : i32
    %c0_i32_0 = arith.constant 0 : i32
    %c0_i32_1 = arith.constant 0 : i32
    return %c0_i32, %c0_i32_0 : i32, i32
  }
  func.func @transform_13(%arg0: i32, %arg1: i32) -> (i32, i32) {
    %c0_i32 = arith.constant 0 : i32
    %c0_i32_0 = arith.constant 0 : i32
    %c0_i32_1 = arith.constant 0 : i32
    return %c0_i32, %c0_i32_0 : i32, i32
  }
  func.func @transform_14(%arg0: i32, %arg1: i32) -> (i32, i32) {
    %c0_i32 = arith.constant 0 : i32
    %c0_i32_0 = arith.constant 0 : i32
    %c0_i32_1 = arith.constant 0 : i32
    return %c0_i32, %c0_i32_0 : i32, i32
  }
  func.func @transform_15(%arg0: i32, %arg1: i32) -> (i32, i32) {
    %c0_i32 = arith.constant 0 : i32
    %c0_i32_0 = arith.constant 0 : i32
    %c0_i32_1 = arith.constant 0 : i32
    return %c0_i32, %c0_i32_0 : i32, i32
  }
  func.func @transform_16(%arg0: i32, %arg1: i32) -> (i32, i32) {
    %c0_i32 = arith.constant 0 : i32
    %c0_i32_0 = arith.constant 0 : i32
    %c0_i32_1 = arith.constant 0 : i32
    return %c0_i32, %c0_i32_0 : i32, i32
  }
  func.func @transform_17(%arg0: i32, %arg1: i32) -> (i32, i32) {
    %c0_i32 = arith.constant 0 : i32
    %c0_i32_0 = arith.constant 0 : i32
    %c0_i32_1 = arith.constant 0 : i32
    return %c0_i32, %c0_i32_0 : i32, i32
  }
  func.func @transform_18(%arg0: i32, %arg1: i32) -> (i32, i32) {
    %c0_i32 = arith.constant 0 : i32
    %c0_i32_0 = arith.constant 0 : i32
    %c0_i32_1 = arith.constant 0 : i32
    return %c0_i32, %c0_i32_0 : i32, i32
  }
  func.func @transform_19(%arg0: i32, %arg1: i32) -> (i32, i32, i32) {
    %c0_i32 = arith.constant 0 : i32
    %c0_i32_0 = arith.constant 0 : i32
    return %arg0, %arg1, %c0_i32 : i32, i32, i32
  }
}

</mosaic_0001>

<llo_original>
// kernel: tpu_custom_call.1
$region0: #{tpu_custom_call.1}
  #allocation0 [shape = 'u32[]', space=smem, size = 0x4, offset = 0x4, fixed_abs, tag = 'smem constant byte address 0x4 - core index']
  #allocation1 [shape = 'u32[144,128]{1,0:T(1,128)}', space=vmem, size = 0x12000, scoped, tag = 'internal scratch']
  %s0 = inlined_call_operand.vmem [shape: f32[2,8,32], index: 0, kind: input, shape index: {}]
  %s1 = inlined_call_operand.vmem [shape: f32[2,1,32], index: 1, kind: input, shape index: {}]
  %s2 = inlined_call_operand.vmem [shape: f32[1,32], index: 2, kind: input, shape index: {}]
  %s3 = inlined_call_operand.vmem [shape: f32[1,32], index: 3, kind: input, shape index: {}]
  %s4 = inlined_call_operand.vmem [shape: f32[1,32], index: 4, kind: input, shape index: {}]
  %s5 = inlined_call_operand.vmem [shape: f32[1,32], index: 5, kind: input, shape index: {}]
  %s6 = inlined_call_operand.vmem [shape: f32[1,32], index: 6, kind: input, shape index: {}]
  %s7 = inlined_call_operand.vmem [shape: f32[1,32], index: 7, kind: input, shape index: {}]
  %s8 = inlined_call_operand.vmem [shape: f32[32,32], index: 8, kind: input, shape index: {}]
  %s9 = inlined_call_operand.vmem [shape: f32[1,32], index: 9, kind: input, shape index: {}]
  %s10 = inlined_call_operand.vmem [shape: f32[32,32], index: 10, kind: input, shape index: {}]
  %s11 = inlined_call_operand.vmem [shape: f32[1,32], index: 11, kind: input, shape index: {}]
  %s12 = inlined_call_operand.vmem [shape: f32[32,32], index: 12, kind: input, shape index: {}]
  %s13 = inlined_call_operand.vmem [shape: f32[1,32], index: 13, kind: input, shape index: {}]
  %s14 = inlined_call_operand.vmem [shape: f32[32,32], index: 14, kind: input, shape index: {}]
  %s15 = inlined_call_operand.vmem [shape: f32[1,32], index: 15, kind: input, shape index: {}]
  %s16 = inlined_call_operand.vmem [shape: f32[32,1024], index: 16, kind: input, shape index: {}]
  %s17 = inlined_call_operand.vmem [shape: f32[1024,32], index: 17, kind: input, shape index: {}]
  %s18 = inlined_call_operand.vmem [shape: f32[32,1024], index: 18, kind: input, shape index: {}]
  %s19 = inlined_call_operand.hbm [shape: f32[2,8,32], index: 19, kind: output, shape index: {}]
  %s20 = sld [smem:[#allocation0]]
  $region109: #{tpu_custom_call.1} parent=0
    _
  %s22 = ssub.s32 1, %s20
  %s23 = scalar_select 0, %s22, %s20
  $region1: #{tpu_custom_call.1} parent=0
    #allocation2 [shape = 'u8[8192]{0}', space=vmem, size = 0x2000, scoped, tag = 'output window, operand 0']
    #allocation3 [shape = 's32[2]{0}', space=sflag, size = 0x8, scoped, tag = 'scoped memory for tpu_custom_call.1']
    %24 = vsyncpa [#allocation3], 0
    %s25 = scalar_lea.sflag [#allocation3], 1
    %26 = vsyncpa %s25, 0
    loop: start=0, step=1, limit=4
    $region2: #{tpu_custom_call.1} parent=1 // loop_pre_header
      _
    $region3: #{tpu_custom_call.1} parent=1 // loop_header
      %s28 = sphi 0, %s32
      %p29 = scmp.ge.s32.totalorder %s28, 4
      %s35 = sphi 0, %s47
      %s36 = sphi 0, %s43
      %s37 = sphi 0, %s35
      %s38 = sphi 0, %s36
      %s39 = sphi 0, %s37
      %s40 = sphi 0, %s38
      %s52 = sphi 0, %s54
      %s55 = sphi 0, %s52
      %s56 = sphi 0, %s55
      %s72 = sphi 0, %s56
      %s78 = sphi 0, %s80
      %s81 = sphi 0, %s78
      %s82 = sphi 0, %s81
      %s98 = sphi 0, %s82
      %s102 = sphi 0, %s102
      %s104 = sphi 0, %s102
      %s105 = sphi 0, %s104
      %s119 = sphi 0, %s105
      %s123 = sphi 0, %s123
      %s125 = sphi 0, %s123
      %s126 = sphi 0, %s125
      %s140 = sphi 0, %s126
      %s144 = sphi 0, %s144
      %s146 = sphi 0, %s144
      %s147 = sphi 0, %s146
      %s161 = sphi 0, %s147
      %s165 = sphi 0, %s165
      %s167 = sphi 0, %s165
      %s168 = sphi 0, %s167
      %s182 = sphi 0, %s168
      %s186 = sphi 0, %s186
      %s188 = sphi 0, %s186
      %s189 = sphi 0, %s188
      %s203 = sphi 0, %s189
      %s207 = sphi 0, %s207
      %s209 = sphi 0, %s207
      %s210 = sphi 0, %s209
      %s224 = sphi 0, %s210
      %s228 = sphi 0, %s228
      %s230 = sphi 0, %s228
      %s231 = sphi 0, %s230
      %s245 = sphi 0, %s231
      %s249 = sphi 0, %s249
      %s251 = sphi 0, %s249
      %s252 = sphi 0, %s251
      %s266 = sphi 0, %s252
      %s270 = sphi 0, %s270
      %s272 = sphi 0, %s270
      %s273 = sphi 0, %s272
      %s287 = sphi 0, %s273
      %s291 = sphi 0, %s291
      %s293 = sphi 0, %s291
      %s294 = sphi 0, %s293
      %s308 = sphi 0, %s294
      %s312 = sphi 0, %s312
      %s314 = sphi 0, %s312
      %s315 = sphi 0, %s314
      %s329 = sphi 0, %s315
      %s333 = sphi 0, %s333
      %s335 = sphi 0, %s333
      %s336 = sphi 0, %s335
      %s350 = sphi 0, %s336
      %s354 = sphi 0, %s354
      %s356 = sphi 0, %s354
      %s357 = sphi 0, %s356
      %s371 = sphi 0, %s357
      %s375 = sphi 0, %s375
      %s377 = sphi 0, %s375
      %s378 = sphi 0, %s377
      %s392 = sphi 0, %s378
      %s396 = sphi 0, %s396
      %s398 = sphi 0, %s396
      %s399 = sphi 0, %s398
      %s413 = sphi 0, %s399
      %s417 = sphi 0, %s417
      %s419 = sphi 0, %s417
      %s420 = sphi 0, %s419
      %s434 = sphi 0, %s420
      %s438 = sphi 0, %s438
      %s440 = sphi 0, %s438
      %s441 = sphi 0, %s440
      %s455 = sphi 0, %s441
      %s463 = sphi 0, %s465
      %s466 = sphi 0, %s463
      %s467 = sphi 0, %s466
      %s483 = sphi 0, %s467
    $region4: #{tpu_custom_call.1} parent=1 // loop_header_branch
      %31 = sbr.rel (%p29) target = $region8
    $region5: #{tpu_custom_call.1} parent=1 // loop_body
      %s33 = ssub.s32 %s28, 1
      %s34 = ssub.s32 %s28, 2
      %s41 = sadd.s32 1, %s36
      %p42 = scmp.ge.s32.totalorder %s41, 1
      %s43 = scalar_select %p42, 0, %s41
      %s44 = sadd.s32 1, %s35
      %s45 = scalar_select %p42, %s44, %s35
      %p46 = scmp.ge.s32.totalorder %s45, 2
      %s47 = scalar_select %p46, 0, %s45
      %s48 = ssub.s32 %s35, %s47
      %s49 = ssub.s32 %s36, %s43
      %s50 = sor.u32 %s48, %s49
      %p51 = scmp.eq.s32.totalorder %s50, 0
      %s53 = sadd.s32 %s52, 1
      %s54 = scalar_select %p51, %s52, %s53
      %p57 = pneg %p51
      %p58 = scmp.eq.s32.totalorder %s28, 1
      %p59 = por %p57, %p58
      %p60 = scmp.ne.s32.totalorder %s52, %s55
      %p61 = scmp.eq.s32.totalorder %s28, 0
      %p62 = por %p60, %p61
      %p63 = scmp.ne.s32.totalorder %s52, %s55
      %p64 = scmp.eq.s32.totalorder %s33, 1
      %p65 = por %p63, %p64
      %p66 = scmp.ne.s32.totalorder %s55, %s56
      %p67 = scmp.eq.s32.totalorder %s33, 0
      %p68 = por %p66, %p67
      %p69 = scmp.ne.s32.totalorder %s55, %s56
      %p70 = scmp.eq.s32.totalorder %s34, 1
      %p71 = por %p69, %p70
      %p73 = scmp.ne.s32.totalorder %s56, %s72
      %p74 = scmp.eq.s32.totalorder %s34, 0
      %p75 = por %p73, %p74
      %s76 = ssub.s32 %s35, %s47
      %p77 = scmp.eq.s32.totalorder %s76, 0
      %s79 = sadd.s32 %s78, 1
      %s80 = scalar_select %p77, %s78, %s79
      %p83 = pneg %p77
      %p84 = scmp.eq.s32.totalorder %s28, 1
      %p85 = por %p83, %p84
      %p86 = scmp.ne.s32.totalorder %s78, %s81
      %p87 = scmp.eq.s32.totalorder %s28, 0
      %p88 = por %p86, %p87
      %p89 = scmp.ne.s32.totalorder %s78, %s81
      %p90 = scmp.eq.s32.totalorder %s33, 1
      %p91 = por %p89, %p90
      %p92 = scmp.ne.s32.totalorder %s81, %s82
      %p93 = scmp.eq.s32.totalorder %s33, 0
      %p94 = por %p92, %p93
      %p95 = scmp.ne.s32.totalorder %s81, %s82
      %p96 = scmp.eq.s32.totalorder %s34, 1
      %p97 = por %p95, %p96
      %p99 = scmp.ne.s32.totalorder %s82, %s98
      %p100 = scmp.eq.s32.totalorder %s34, 0
      %p101 = por %p99, %p100
      %s103 = sadd.s32 %s102, 1
      %p106 = scmp.eq.s32.totalorder %s28, 1
      %p107 = scmp.ne.s32.totalorder %s102, %s104
      %p108 = scmp.eq.s32.totalorder %s28, 0
      %p109 = por %p107, %p108
      %p110 = scmp.ne.s32.totalorder %s102, %s104
      %p111 = scmp.eq.s32.totalorder %s33, 1
      %p112 = por %p110, %p111
      %p113 = scmp.ne.s32.totalorder %s104, %s105
      %p114 = scmp.eq.s32.totalorder %s33, 0
      %p115 = por %p113, %p114
      %p116 = scmp.ne.s32.totalorder %s104, %s105
      %p117 = scmp.eq.s32.totalorder %s34, 1
      %p118 = por %p116, %p117
      %p120 = scmp.ne.s32.totalorder %s105, %s119
      %p121 = scmp.eq.s32.totalorder %s34, 0
      %p122 = por %p120, %p121
      %s124 = sadd.s32 %s123, 1
      %p127 = scmp.eq.s32.totalorder %s28, 1
      %p128 = scmp.ne.s32.totalorder %s123, %s125
      %p129 = scmp.eq.s32.totalorder %s28, 0
      %p130 = por %p128, %p129
      %p131 = scmp.ne.s32.totalorder %s123, %s125
      %p132 = scmp.eq.s32.totalorder %s33, 1
      %p133 = por %p131, %p132
      %p134 = scmp.ne.s32.totalorder %s125, %s126
      %p135 = scmp.eq.s32.totalorder %s33, 0
      %p136 = por %p134, %p135
      %p137 = scmp.ne.s32.totalorder %s125, %s126
      %p138 = scmp.eq.s32.totalorder %s34, 1
      %p139 = por %p137, %p138
      %p141 = scmp.ne.s32.totalorder %s126, %s140
      %p142 = scmp.eq.s32.totalorder %s34, 0
      %p143 = por %p141, %p142
      %s145 = sadd.s32 %s144, 1
      %p148 = scmp.eq.s32.totalorder %s28, 1
      %p149 = scmp.ne.s32.totalorder %s144, %s146
      %p150 = scmp.eq.s32.totalorder %s28, 0
      %p151 = por %p149, %p150
      %p152 = scmp.ne.s32.totalorder %s144, %s146
      %p153 = scmp.eq.s32.totalorder %s33, 1
      %p154 = por %p152, %p153
      %p155 = scmp.ne.s32.totalorder %s146, %s147
      %p156 = scmp.eq.s32.totalorder %s33, 0
      %p157 = por %p155, %p156
      %p158 = scmp.ne.s32.totalorder %s146, %s147
      %p159 = scmp.eq.s32.totalorder %s34, 1
      %p160 = por %p158, %p159
      %p162 = scmp.ne.s32.totalorder %s147, %s161
      %p163 = scmp.eq.s32.totalorder %s34, 0
      %p164 = por %p162, %p163
      %s166 = sadd.s32 %s165, 1
      %p169 = scmp.eq.s32.totalorder %s28, 1
      %p170 = scmp.ne.s32.totalorder %s165, %s167
      %p171 = scmp.eq.s32.totalorder %s28, 0
      %p172 = por %p170, %p171
      %p173 = scmp.ne.s32.totalorder %s165, %s167
      %p174 = scmp.eq.s32.totalorder %s33, 1
      %p175 = por %p173, %p174
      %p176 = scmp.ne.s32.totalorder %s167, %s168
      %p177 = scmp.eq.s32.totalorder %s33, 0
      %p178 = por %p176, %p177
      %p179 = scmp.ne.s32.totalorder %s167, %s168
      %p180 = scmp.eq.s32.totalorder %s34, 1
      %p181 = por %p179, %p180
      %p183 = scmp.ne.s32.totalorder %s168, %s182
      %p184 = scmp.eq.s32.totalorder %s34, 0
      %p185 = por %p183, %p184
      %s187 = sadd.s32 %s186, 1
      %p190 = scmp.eq.s32.totalorder %s28, 1
      %p191 = scmp.ne.s32.totalorder %s186, %s188
      %p192 = scmp.eq.s32.totalorder %s28, 0
      %p193 = por %p191, %p192
      %p194 = scmp.ne.s32.totalorder %s186, %s188
      %p195 = scmp.eq.s32.totalorder %s33, 1
      %p196 = por %p194, %p195
      %p197 = scmp.ne.s32.totalorder %s188, %s189
      %p198 = scmp.eq.s32.totalorder %s33, 0
      %p199 = por %p197, %p198
      %p200 = scmp.ne.s32.totalorder %s188, %s189
      %p201 = scmp.eq.s32.totalorder %s34, 1
      %p202 = por %p200, %p201
      %p204 = scmp.ne.s32.totalorder %s189, %s203
      %p205 = scmp.eq.s32.totalorder %s34, 0
      %p206 = por %p204, %p205
      %s208 = sadd.s32 %s207, 1
      %p211 = scmp.eq.s32.totalorder %s28, 1
      %p212 = scmp.ne.s32.totalorder %s207, %s209
      %p213 = scmp.eq.s32.totalorder %s28, 0
      %p214 = por %p212, %p213
      %p215 = scmp.ne.s32.totalorder %s207, %s209
      %p216 = scmp.eq.s32.totalorder %s33, 1
      %p217 = por %p215, %p216
      %p218 = scmp.ne.s32.totalorder %s209, %s210
      %p219 = scmp.eq.s32.totalorder %s33, 0
      %p220 = por %p218, %p219
      %p221 = scmp.ne.s32.totalorder %s209, %s210
      %p222 = scmp.eq.s32.totalorder %s34, 1
      %p223 = por %p221, %p222
      %p225 = scmp.ne.s32.totalorder %s210, %s224
      %p226 = scmp.eq.s32.totalorder %s34, 0
      %p227 = por %p225, %p226
      %s229 = sadd.s32 %s228, 1
      %p232 = scmp.eq.s32.totalorder %s28, 1
      %p233 = scmp.ne.s32.totalorder %s228, %s230
      %p234 = scmp.eq.s32.totalorder %s28, 0
      %p235 = por %p233, %p234
      %p236 = scmp.ne.s32.totalorder %s228, %s230
      %p237 = scmp.eq.s32.totalorder %s33, 1
      %p238 = por %p236, %p237
      %p239 = scmp.ne.s32.totalorder %s230, %s231
      %p240 = scmp.eq.s32.totalorder %s33, 0
      %p241 = por %p239, %p240
      %p242 = scmp.ne.s32.totalorder %s230, %s231
      %p243 = scmp.eq.s32.totalorder %s34, 1
      %p244 = por %p242, %p243
      %p246 = scmp.ne.s32.totalorder %s231, %s245
      %p247 = scmp.eq.s32.totalorder %s34, 0
      %p248 = por %p246, %p247
      %s250 = sadd.s32 %s249, 1
      %p253 = scmp.eq.s32.totalorder %s28, 1
      %p254 = scmp.ne.s32.totalorder %s249, %s251
      %p255 = scmp.eq.s32.totalorder %s28, 0
      %p256 = por %p254, %p255
      %p257 = scmp.ne.s32.totalorder %s249, %s251
      %p258 = scmp.eq.s32.totalorder %s33, 1
      %p259 = por %p257, %p258
      %p260 = scmp.ne.s32.totalorder %s251, %s252
      %p261 = scmp.eq.s32.totalorder %s33, 0
      %p262 = por %p260, %p261
      %p263 = scmp.ne.s32.totalorder %s251, %s252
      %p264 = scmp.eq.s32.totalorder %s34, 1
      %p265 = por %p263, %p264
      %p267 = scmp.ne.s32.totalorder %s252, %s266
      %p268 = scmp.eq.s32.totalorder %s34, 0
      %p269 = por %p267, %p268
      %s271 = sadd.s32 %s270, 1
      %p274 = scmp.eq.s32.totalorder %s28, 1
      %p275 = scmp.ne.s32.totalorder %s270, %s272
      %p276 = scmp.eq.s32.totalorder %s28, 0
      %p277 = por %p275, %p276
      %p278 = scmp.ne.s32.totalorder %s270, %s272
      %p279 = scmp.eq.s32.totalorder %s33, 1
      %p280 = por %p278, %p279
      %p281 = scmp.ne.s32.totalorder %s272, %s273
      %p282 = scmp.eq.s32.totalorder %s33, 0
      %p283 = por %p281, %p282
      %p284 = scmp.ne.s32.totalorder %s272, %s273
      %p285 = scmp.eq.s32.totalorder %s34, 1
      %p286 = por %p284, %p285
      %p288 = scmp.ne.s32.totalorder %s273, %s287
      %p289 = scmp.eq.s32.totalorder %s34, 0
      %p290 = por %p288, %p289
      %s292 = sadd.s32 %s291, 1
      %p295 = scmp.eq.s32.totalorder %s28, 1
      %p296 = scmp.ne.s32.totalorder %s291, %s293
      %p297 = scmp.eq.s32.totalorder %s28, 0
      %p298 = por %p296, %p297
      %p299 = scmp.ne.s32.totalorder %s291, %s293
      %p300 = scmp.eq.s32.totalorder %s33, 1
      %p301 = por %p299, %p300
      %p302 = scmp.ne.s32.totalorder %s293, %s294
      %p303 = scmp.eq.s32.totalorder %s33, 0
      %p304 = por %p302, %p303
      %p305 = scmp.ne.s32.totalorder %s293, %s294
      %p306 = scmp.eq.s32.totalorder %s34, 1
      %p307 = por %p305, %p306
      %p309 = scmp.ne.s32.totalorder %s294, %s308
      %p310 = scmp.eq.s32.totalorder %s34, 0
      %p311 = por %p309, %p310
      %s313 = sadd.s32 %s312, 1
      %p316 = scmp.eq.s32.totalorder %s28, 1
      %p317 = scmp.ne.s32.totalorder %s312, %s314
      %p318 = scmp.eq.s32.totalorder %s28, 0
      %p319 = por %p317, %p318
      %p320 = scmp.ne.s32.totalorder %s312, %s314
      %p321 = scmp.eq.s32.totalorder %s33, 1
      %p322 = por %p320, %p321
      %p323 = scmp.ne.s32.totalorder %s314, %s315
      %p324 = scmp.eq.s32.totalorder %s33, 0
      %p325 = por %p323, %p324
      %p326 = scmp.ne.s32.totalorder %s314, %s315
      %p327 = scmp.eq.s32.totalorder %s34, 1
      %p328 = por %p326, %p327
      %p330 = scmp.ne.s32.totalorder %s315, %s329
      %p331 = scmp.eq.s32.totalorder %s34, 0
      %p332 = por %p330, %p331
      %s334 = sadd.s32 %s333, 1
      %p337 = scmp.eq.s32.totalorder %s28, 1
      %p338 = scmp.ne.s32.totalorder %s333, %s335
      %p339 = scmp.eq.s32.totalorder %s28, 0
      %p340 = por %p338, %p339
      %p341 = scmp.ne.s32.totalorder %s333, %s335
      %p342 = scmp.eq.s32.totalorder %s33, 1
      %p343 = por %p341, %p342
      %p344 = scmp.ne.s32.totalorder %s335, %s336
      %p345 = scmp.eq.s32.totalorder %s33, 0
      %p346 = por %p344, %p345
      %p347 = scmp.ne.s32.totalorder %s335, %s336
      %p348 = scmp.eq.s32.totalorder %s34, 1
      %p349 = por %p347, %p348
      %p351 = scmp.ne.s32.totalorder %s336, %s350
      %p352 = scmp.eq.s32.totalorder %s34, 0
      %p353 = por %p351, %p352
      %s355 = sadd.s32 %s354, 1
      %p358 = scmp.eq.s32.totalorder %s28, 1
      %p359 = scmp.ne.s32.totalorder %s354, %s356
      %p360 = scmp.eq.s32.totalorder %s28, 0
      %p361 = por %p359, %p360
      %p362 = scmp.ne.s32.totalorder %s354, %s356
      %p363 = scmp.eq.s32.totalorder %s33, 1
      %p364 = por %p362, %p363
      %p365 = scmp.ne.s32.totalorder %s356, %s357
      %p366 = scmp.eq.s32.totalorder %s33, 0
      %p367 = por %p365, %p366
      %p368 = scmp.ne.s32.totalorder %s356, %s357
      %p369 = scmp.eq.s32.totalorder %s34, 1
      %p370 = por %p368, %p369
      %p372 = scmp.ne.s32.totalorder %s357, %s371
      %p373 = scmp.eq.s32.totalorder %s34, 0
      %p374 = por %p372, %p373
      %s376 = sadd.s32 %s375, 1
      %p379 = scmp.eq.s32.totalorder %s28, 1
      %p380 = scmp.ne.s32.totalorder %s375, %s377
      %p381 = scmp.eq.s32.totalorder %s28, 0
      %p382 = por %p380, %p381
      %p383 = scmp.ne.s32.totalorder %s375, %s377
      %p384 = scmp.eq.s32.totalorder %s33, 1
      %p385 = por %p383, %p384
      %p386 = scmp.ne.s32.totalorder %s377, %s378
      %p387 = scmp.eq.s32.totalorder %s33, 0
      %p388 = por %p386, %p387
      %p389 = scmp.ne.s32.totalorder %s377, %s378
      %p390 = scmp.eq.s32.totalorder %s34, 1
      %p391 = por %p389, %p390
      %p393 = scmp.ne.s32.totalorder %s378, %s392
      %p394 = scmp.eq.s32.totalorder %s34, 0
      %p395 = por %p393, %p394
      %s397 = sadd.s32 %s396, 1
      %p400 = scmp.eq.s32.totalorder %s28, 1
      %p401 = scmp.ne.s32.totalorder %s396, %s398
      %p402 = scmp.eq.s32.totalorder %s28, 0
      %p403 = por %p401, %p402
      %p404 = scmp.ne.s32.totalorder %s396, %s398
      %p405 = scmp.eq.s32.totalorder %s33, 1
      %p406 = por %p404, %p405
      %p407 = scmp.ne.s32.totalorder %s398, %s399
      %p408 = scmp.eq.s32.totalorder %s33, 0
      %p409 = por %p407, %p408
      %p410 = scmp.ne.s32.totalorder %s398, %s399
      %p411 = scmp.eq.s32.totalorder %s34, 1
      %p412 = por %p410, %p411
      %p414 = scmp.ne.s32.totalorder %s399, %s413
      %p415 = scmp.eq.s32.totalorder %s34, 0
      %p416 = por %p414, %p415
      %s418 = sadd.s32 %s417, 1
      %p421 = scmp.eq.s32.totalorder %s28, 1
      %p422 = scmp.ne.s32.totalorder %s417, %s419
      %p423 = scmp.eq.s32.totalorder %s28, 0
      %p424 = por %p422, %p423
      %p425 = scmp.ne.s32.totalorder %s417, %s419
      %p426 = scmp.eq.s32.totalorder %s33, 1
      %p427 = por %p425, %p426
      %p428 = scmp.ne.s32.totalorder %s419, %s420
      %p429 = scmp.eq.s32.totalorder %s33, 0
      %p430 = por %p428, %p429
      %p431 = scmp.ne.s32.totalorder %s419, %s420
      %p432 = scmp.eq.s32.totalorder %s34, 1
      %p433 = por %p431, %p432
      %p435 = scmp.ne.s32.totalorder %s420, %s434
      %p436 = scmp.eq.s32.totalorder %s34, 0
      %p437 = por %p435, %p436
      %s439 = sadd.s32 %s438, 1
      %p442 = scmp.eq.s32.totalorder %s28, 1
      %p443 = scmp.ne.s32.totalorder %s438, %s440
      %p444 = scmp.eq.s32.totalorder %s28, 0
      %p445 = por %p443, %p444
      %p446 = scmp.ne.s32.totalorder %s438, %s440
      %p447 = scmp.eq.s32.totalorder %s33, 1
      %p448 = por %p446, %p447
      %p449 = scmp.ne.s32.totalorder %s440, %s441
      %p450 = scmp.eq.s32.totalorder %s33, 0
      %p451 = por %p449, %p450
      %p452 = scmp.ne.s32.totalorder %s440, %s441
      %p453 = scmp.eq.s32.totalorder %s34, 1
      %p454 = por %p452, %p453
      %p456 = scmp.ne.s32.totalorder %s441, %s455
      %p457 = scmp.eq.s32.totalorder %s34, 0
      %p458 = por %p456, %p457
      %s459 = ssub.s32 %s35, %s47
      %s460 = ssub.s32 %s36, %s43
      %s461 = sor.u32 %s459, %s460
      %p462 = scmp.eq.s32.totalorder %s461, 0
      %s464 = sadd.s32 %s463, 1
      %s465 = scalar_select %p462, %s463, %s464
      %p468 = pneg %p462
      %p469 = scmp.eq.s32.totalorder %s28, 1
      %p470 = por %p468, %p469
      %p471 = scmp.ne.s32.totalorder %s463, %s466
      %p472 = scmp.eq.s32.totalorder %s28, 0
      %p473 = por %p471, %p472
      %p474 = scmp.ne.s32.totalorder %s463, %s466
      %p475 = scmp.eq.s32.totalorder %s33, 1
      %p476 = por %p474, %p475
      %p477 = scmp.ne.s32.totalorder %s466, %s467
      %p478 = scmp.eq.s32.totalorder %s33, 0
      %p479 = por %p477, %p478
      %p480 = scmp.ne.s32.totalorder %s466, %s467
      %p481 = scmp.eq.s32.totalorder %s34, 1
      %p482 = por %p480, %p481
      %p484 = scmp.ne.s32.totalorder %s467, %s483
      %p485 = scmp.eq.s32.totalorder %s34, 0
      %p486 = por %p484, %p485
      %p487 = scmp.le.s32.totalorder 1, %s28
      %p488 = scmp.lt.s32.totalorder %s28, 3
      %p489 = pnand %p487, %p488
      %p490 = pneg %p489
      // Predicated region
      $region9: #{tpu_custom_call.1} parent=5 // pred_check
        _
      $region10: #{tpu_custom_call.1} parent=5 // pred_check_branch
        %492 = sbr.rel (%p489) target = $region12
      $region11: #{tpu_custom_call.1} parent=5 // pred_region
        %s493 = ssub.s32 %s28, 1
        // Predicated region
        $region13: #{tpu_custom_call.1} parent=11 // pred_check
          %p494 = pneg %p115
        $region14: #{tpu_custom_call.1} parent=11 // pred_check_branch
          %496 = sbr.rel (%p494) target = $region16
        $region15: #{tpu_custom_call.1} parent=11 // pred_region
          _
        $region16: #{tpu_custom_call.1} parent=11 // pred_fallthru
          _
        // Predicated region
        $region17: #{tpu_custom_call.1} parent=11 // pred_check
          %p497 = pneg %p136
        $region18: #{tpu_custom_call.1} parent=11 // pred_check_branch
          %499 = sbr.rel (%p497) target = $region20
        $region19: #{tpu_custom_call.1} parent=11 // pred_region
          _
        $region20: #{tpu_custom_call.1} parent=11 // pred_fallthru
          _
        // Predicated region
        $region21: #{tpu_custom_call.1} parent=11 // pred_check
          %p500 = pneg %p157
        $region22: #{tpu_custom_call.1} parent=11 // pred_check_branch
          %502 = sbr.rel (%p500) target = $region24
        $region23: #{tpu_custom_call.1} parent=11 // pred_region
          _
        $region24: #{tpu_custom_call.1} parent=11 // pred_fallthru
          _
        // Predicated region
        $region25: #{tpu_custom_call.1} parent=11 // pred_check
          %p503 = pneg %p178
        $region26: #{tpu_custom_call.1} parent=11 // pred_check_branch
          %505 = sbr.rel (%p503) target = $region28
        $region27: #{tpu_custom_call.1} parent=11 // pred_region
          _
        $region28: #{tpu_custom_call.1} parent=11 // pred_fallthru
          _
        // Predicated region
        $region29: #{tpu_custom_call.1} parent=11 // pred_check
          %p506 = pneg %p199
        $region30: #{tpu_custom_call.1} parent=11 // pred_check_branch
          %508 = sbr.rel (%p506) target = $region32
        $region31: #{tpu_custom_call.1} parent=11 // pred_region
          _
        $region32: #{tpu_custom_call.1} parent=11 // pred_fallthru
          _
        // Predicated region
        $region33: #{tpu_custom_call.1} parent=11 // pred_check
          %p509 = pneg %p220
        $region34: #{tpu_custom_call.1} parent=11 // pred_check_branch
          %511 = sbr.rel (%p509) target = $region36
        $region35: #{tpu_custom_call.1} parent=11 // pred_region
          _
        $region36: #{tpu_custom_call.1} parent=11 // pred_fallthru
          _
        // Predicated region
        $region37: #{tpu_custom_call.1} parent=11 // pred_check
          %p512 = pneg %p241
        $region38: #{tpu_custom_call.1} parent=11 // pred_check_branch
          %514 = sbr.rel (%p512) target = $region40
        $region39: #{tpu_custom_call.1} parent=11 // pred_region
          _
        $region40: #{tpu_custom_call.1} parent=11 // pred_fallthru
          _
        // Predicated region
        $region41: #{tpu_custom_call.1} parent=11 // pred_check
          %p515 = pneg %p262
        $region42: #{tpu_custom_call.1} parent=11 // pred_check_branch
          %517 = sbr.rel (%p515) target = $region44
        $region43: #{tpu_custom_call.1} parent=11 // pred_region
          _
        $region44: #{tpu_custom_call.1} parent=11 // pred_fallthru
          _
        // Predicated region
        $region45: #{tpu_custom_call.1} parent=11 // pred_check
          %p518 = pneg %p283
        $region46: #{tpu_custom_call.1} parent=11 // pred_check_branch
          %520 = sbr.rel (%p518) target = $region48
        $region47: #{tpu_custom_call.1} parent=11 // pred_region
          _
        $region48: #{tpu_custom_call.1} parent=11 // pred_fallthru
          _
        // Predicated region
        $region49: #{tpu_custom_call.1} parent=11 // pred_check
          %p521 = pneg %p304
        $region50: #{tpu_custom_call.1} parent=11 // pred_check_branch
          %523 = sbr.rel (%p521) target = $region52
        $region51: #{tpu_custom_call.1} parent=11 // pred_region
          _
        $region52: #{tpu_custom_call.1} parent=11 // pred_fallthru
          _
        // Predicated region
        $region53: #{tpu_custom_call.1} parent=11 // pred_check
          %p524 = pneg %p325
        $region54: #{tpu_custom_call.1} parent=11 // pred_check_branch
          %526 = sbr.rel (%p524) target = $region56
        $region55: #{tpu_custom_call.1} parent=11 // pred_region
          _
        $region56: #{tpu_custom_call.1} parent=11 // pred_fallthru
          _
        // Predicated region
        $region57: #{tpu_custom_call.1} parent=11 // pred_check
          %p527 = pneg %p346
        $region58: #{tpu_custom_call.1} parent=11 // pred_check_branch
          %529 = sbr.rel (%p527) target = $region60
        $region59: #{tpu_custom_call.1} parent=11 // pred_region
          _
        $region60: #{tpu_custom_call.1} parent=11 // pred_fallthru
          _
        // Predicated region
        $region61: #{tpu_custom_call.1} parent=11 // pred_check
          %p530 = pneg %p367
        $region62: #{tpu_custom_call.1} parent=11 // pred_check_branch
          %532 = sbr.rel (%p530) target = $region64
        $region63: #{tpu_custom_call.1} parent=11 // pred_region
          _
        $region64: #{tpu_custom_call.1} parent=11 // pred_fallthru
          _
        // Predicated region
        $region65: #{tpu_custom_call.1} parent=11 // pred_check
          %p533 = pneg %p388
        $region66: #{tpu_custom_call.1} parent=11 // pred_check_branch
          %535 = sbr.rel (%p533) target = $region68
        $region67: #{tpu_custom_call.1} parent=11 // pred_region
          _
        $region68: #{tpu_custom_call.1} parent=11 // pred_fallthru
          _
        // Predicated region
        $region69: #{tpu_custom_call.1} parent=11 // pred_check
          %p536 = pneg %p409
        $region70: #{tpu_custom_call.1} parent=11 // pred_check_branch
          %538 = sbr.rel (%p536) target = $region72
        $region71: #{tpu_custom_call.1} parent=11 // pred_region
          _
        $region72: #{tpu_custom_call.1} parent=11 // pred_fallthru
          _
        // Predicated region
        $region73: #{tpu_custom_call.1} parent=11 // pred_check
          %p539 = pneg %p430
        $region74: #{tpu_custom_call.1} parent=11 // pred_check_branch
          %541 = sbr.rel (%p539) target = $region76
        $region75: #{tpu_custom_call.1} parent=11 // pred_region
          _
        $region76: #{tpu_custom_call.1} parent=11 // pred_fallthru
          _
        // Predicated region
        $region77: #{tpu_custom_call.1} parent=11 // pred_check
          %p542 = pneg %p451
        $region78: #{tpu_custom_call.1} parent=11 // pred_check_branch
          %544 = sbr.rel (%p542) target = $region80
        $region79: #{tpu_custom_call.1} parent=11 // pred_region
          _
        $region80: #{tpu_custom_call.1} parent=11 // pred_fallthru
          _
      $region12: #{tpu_custom_call.1} parent=5 // pred_fallthru
        _
      %p545 = scmp.lt.s32.totalorder %s28, 2
      // Predicated region
      $region81: #{tpu_custom_call.1} parent=5 // pred_check
        %p546 = pneg %p545
      $region82: #{tpu_custom_call.1} parent=5 // pred_check_branch
        %548 = sbr.rel (%p546) target = $region84
      $region83: #{tpu_custom_call.1} parent=5 // pred_region
        // Predicated region
        $region85: #{tpu_custom_call.1} parent=83 // pred_check
          %p549 = pneg %p62
        $region86: #{tpu_custom_call.1} parent=83 // pred_check_branch
          %551 = sbr.rel (%p549) target = $region88
        $region87: #{tpu_custom_call.1} parent=83 // pred_region
          %p552 = scmp.lt.s32.totalorder %s35, 1
          %s553 = scalar_select %p552, %s35, 1
          %p554 = scmp.lt.s32.totalorder %s36, 0
          %s555 = scalar_select %p554, %s36, 0
          %s556 = sadd.s32 %s555, %s553
          %s557 = smul.addr %s556, 8
          %s558 = scalar_lea.vmem %s0, %s557
        $region88: #{tpu_custom_call.1} parent=83 // pred_fallthru
          _
        // Predicated region
        $region89: #{tpu_custom_call.1} parent=83 // pred_check
          %p559 = pneg %p88
        $region90: #{tpu_custom_call.1} parent=83 // pred_check_branch
          %561 = sbr.rel (%p559) target = $region92
        $region91: #{tpu_custom_call.1} parent=83 // pred_region
          %p562 = scmp.lt.s32.totalorder %s35, 1
          %s563 = scalar_select %p562, %s35, 1
          %s564 = scalar_lea.vmem %s1, %s563
        $region92: #{tpu_custom_call.1} parent=83 // pred_fallthru
          _
      $region84: #{tpu_custom_call.1} parent=5 // pred_fallthru
        _
      %p565 = scmp.le.s32.totalorder 1, %s28
      %p566 = scmp.lt.s32.totalorder %s28, 3
      %p567 = pnand %p565, %p566
      %p568 = pneg %p567
      // Predicated region
      $region93: #{tpu_custom_call.1} parent=5 // pred_check
        _
      $region94: #{tpu_custom_call.1} parent=5 // pred_check_branch
        %570 = sbr.rel (%p567) target = $region96
      $region95: #{tpu_custom_call.1} parent=5 // pred_region
        %s571 = ssub.s32 %s28, 1
        %p572 = scmp.lt.s32.totalorder %s37, 1
        %s573 = scalar_select %p572, %s37, 1
        %p574 = scmp.lt.s32.totalorder %s38, 0
        %s575 = scalar_select %p574, %s38, 0
        %s576 = sadd.s32 %s575, %s573
        %s577 = smul.addr %s576, 8
        %s578 = scalar_lea.vmem %s0, %s577
        %p579 = pneg %p68
        %p580 = pneg %p65
        %p581 = scmp.lt.s32.totalorder %s37, 1
        %s582 = scalar_select %p581, %s37, 1
        %s583 = scalar_lea.vmem %s1, %s582
        %p584 = pneg %p94
        %p585 = pneg %p91
        %p586 = pneg %p115
        %p587 = pneg %p112
        %p588 = pneg %p136
        %p589 = pneg %p133
        %p590 = pneg %p157
        %p591 = pneg %p154
        %p592 = pneg %p178
        %p593 = pneg %p175
        %p594 = pneg %p199
        %p595 = pneg %p196
        %p596 = pneg %p220
        %p597 = pneg %p217
        %p598 = pneg %p241
        %p599 = pneg %p238
        %p600 = pneg %p262
        %p601 = pneg %p259
        %p602 = pneg %p283
        %p603 = pneg %p280
        %p604 = pneg %p304
        %p605 = pneg %p301
        %p606 = pneg %p325
        %p607 = pneg %p322
        %p608 = pneg %p346
        %p609 = pneg %p343
        %p610 = pneg %p367
        %p611 = pneg %p364
        %p612 = pneg %p388
        %p613 = pneg %p385
        %p614 = pneg %p409
        %p615 = pneg %p406
        %p616 = pneg %p430
        %p617 = pneg %p427
        %p618 = pneg %p451
        %p619 = pneg %p448
        %p620 = pneg %p479
        %p621 = pneg %p476
        %s622 = sand.u32 %s466, 1
        %s623 = scalar_lea.sflag [#allocation3], %s622
        %s624 = sand.u32 %s466, 1
        %s625 = smul.addr %s624, 8
        %s626 = scalar_lea.vmem [#allocation2], %s625
        %p627 = scmp.lt.s32.totalorder %s37, 1
        %s628 = scalar_select %p627, %s37, 1
        %p629 = scmp.lt.s32.totalorder %s38, 0
        %s630 = scalar_select %p629, %s38, 0
        %s631 = sadd.s32 %s630, %s628
        %s632 = smul.addr %s631, 8
        %s633 = scalar_lea.vmem %s0, %s632
        %p634 = scmp.lt.s32.totalorder %s37, 1
        %s635 = scalar_select %p634, %s37, 1
        %s636 = scalar_lea.vmem %s1, %s635
        %v637 = vld [vmem:[%s633] sm:$0xff]
        %v638 = vld [vmem:[%s636] sm:$0x1]
        %vm639 = vcmask 261120
        %v640 = vsel %vm639, %v637, 0.0
        %641 = vadd.xlane.f32.xlu0 %v640
        %v642 = vpop.xlane.xlu0 %641
        %v643 = vrcp.pop 32.0
        %v644 = vmul.f32 %v642, %v643
        %v645 = vsub.f32 %v637, %v644
        %v646 = vmul.f32 %v645, %v645
        %v647 = vsel %vm639, %v646, 0.0
        %648 = vadd.xlane.f32.xlu0 %v647
        %v649 = vpop.xlane.xlu0 %648
        %v650 = vmul.f32 %v649, %v643
        %v651 = vadd.f32 %v650, 1e-05
        %v652 = vrsqrt.pop %v651
        %v653 = vmul.f32 %v645, %v652
        %v654 = vld [vmem:[%s2] sm:$0x1]
        %v656 = vlaneseq
        %v657 = vshrl.u32 %v656, 7
        %v658 = vsub.s32 0, %v657
        %v659 = vrot.slane %v654, %v658
        %v661 = vmul.f32 %v653, %v659
        %v662 = vld [vmem:[%s3] sm:$0x1]
        %v664 = vlaneseq
        %v665 = vshrl.u32 %v664, 7
        %v666 = vsub.s32 0, %v665
        %v667 = vrot.slane %v662, %v666
        %v669 = vadd.f32 %v661, %v667
        %v670 = vld [vmem:[%s8] sm:$0xff]
        %v671 = vld [vmem:[%s8 + $0x8] sm:$0xff]
        %v672 = vld [vmem:[%s8 + $0x10] sm:$0xff]
        %v673 = vld [vmem:[%s8 + $0x18] sm:$0xff]
        %v674 = vld [vmem:[%s9] sm:$0x1]
        %v676 = vlaneseq
        %v677 = vshrl.u32 %v676, 7
        %v678 = vsub.s32 0, %v677
        %v679 = vrot.slane %v674, %v678
        %v682 = vsel %vm639, %v669, 0
        %684 = vmatprep.subr.mxu0 0.0
        %685 = vmatpush1.msra.mxu0 0.0
        %686 = vmatprep.subr.mxu0 0.0
        %687 = vmatpush1.msra.mxu0 0.0
        %688 = vmatprep.subr.mxu0 0.0
        %689 = vmatpush1.msra.mxu0 0.0
        %690 = vmatprep.subr.mxu0 0.0
        %691 = vmatpush1.msra.mxu0 0.0
        %692 = vmatprep.subr.mxu0 0.0
        %693 = vmatpush1.msra.mxu0 0.0
        %694 = vmatprep.subr.mxu0 0.0
        %695 = vmatpush1.msra.mxu0 0.0
        %696 = vmatprep.subr.mxu0 0.0
        %697 = vmatpush1.msra.mxu0 0.0
        %698 = vmatprep.subr.mxu0 0.0
        %699 = vmatpush1.msra.mxu0 0.0
        %700 = vmatprep.subr.mxu0 0.0
        %701 = vmatpush1.msra.mxu0 0.0
        %702 = vmatprep.subr.mxu0 0.0
        %703 = vmatpush1.msra.mxu0 0.0
        %704 = vmatprep.subr.mxu0 0.0
        %705 = vmatpush1.msra.mxu0 0.0
        %706 = vmatprep.subr.mxu0 0.0
        %707 = vmatpush1.msra.mxu0 0.0
        %708 = vmatprep.subr.mxu0 0.0
        %709 = vmatpush1.msra.mxu0 %v673
        %710 = vmatprep.subr.mxu0 0.0
        %711 = vmatpush1.msra.mxu0 %v672
        %712 = vmatprep.subr.mxu0 0.0
        %713 = vmatpush1.msra.mxu0 %v671
        %714 = vmatprep.subr.mxu0 0.0
        %715 = vmatpush1.msra.mxu0 %v670
        %716 = vmatprep.subr.mxu0 0.0
        %717 = vmatpush2.msra.mxu0 0.0
        %718 = vmatprep.subr.mxu0 0.0
        %719 = vmatpush2.msra.mxu0 0.0
        %720 = vmatprep.subr.mxu0 0.0
        %721 = vmatpush2.msra.mxu0 0.0
        %722 = vmatprep.subr.mxu0 0.0
        %723 = vmatpush2.msra.mxu0 0.0
        %724 = vmatprep.subr.mxu0 0.0
        %725 = vmatpush2.msra.mxu0 0.0
        %726 = vmatprep.subr.mxu0 0.0
        %727 = vmatpush2.msra.mxu0 0.0
        %728 = vmatprep.subr.mxu0 0.0
        %729 = vmatpush2.msra.mxu0 0.0
        %730 = vmatprep.subr.mxu0 0.0
        %731 = vmatpush2.msra.mxu0 0.0
        %732 = vmatprep.subr.mxu0 0.0
        %733 = vmatpush2.msra.mxu0 0.0
        %734 = vmatprep.subr.mxu0 0.0
        %735 = vmatpush2.msra.mxu0 0.0
        %736 = vmatprep.subr.mxu0 0.0
        %737 = vmatpush2.msra.mxu0 0.0
        %738 = vmatprep.subr.mxu0 0.0
        %739 = vmatpush2.msra.mxu0 0.0
        %740 = vmatprep.subr.mxu0 0.0
        %741 = vmatpush2.msra.mxu0 0.0
        %742 = vmatprep.subr.mxu0 0.0
        %743 = vmatpush2.msra.mxu0 0.0
        %744 = vmatprep.subr.mxu0 0.0
        %745 = vmatpush2.msra.mxu0 0.0
        %746 = vmatprep.subr.mxu0 0.0
        %747 = vmatpush2.msra.mxu0 0.0
        %748 = vmatprep.mubr.f32.mxu0 0.0
        %749 = vmatmul.mubr.f32.gmra.mxu0 %v682
        %v750 = vpop.f32.mrf.mxu0
        %v751 = vadd.f32 %v679, %v750
        %v752 = vpop.f32.mrf.mxu0
        %753 = vdwg.mxu0
        %vm754 = vcmask 253952
        %v755 = vsel %vm754, %v638, 0.0
        %756 = vadd.xlane.f32.xlu0 %v755
        %v757 = vpop.xlane.xlu0 %756
        %v758 = vmul.f32 %v757, %v643
        %v759 = vsub.f32 %v638, %v758
        %v760 = vmul.f32 %v759, %v759
        %v761 = vsel %vm754, %v760, 0.0
        %762 = vadd.xlane.f32.xlu0 %v761
        %v763 = vpop.xlane.xlu0 %762
        %v764 = vmul.f32 %v763, %v643
        %v765 = vadd.f32 %v764, 1e-05
        %v766 = vrsqrt.pop %v765
        %v767 = vmul.f32 %v759, %v766
        %v768 = vld [vmem:[%s4] sm:$0x1]
        %v769 = vmul.f32 %v767, %v768
        %v770 = vld [vmem:[%s5] sm:$0x1]
        %v771 = vadd.f32 %v769, %v770
        %v772 = vld [vmem:[%s6] sm:$0x1]
        %v773 = vmul.f32 %v767, %v772
        %v774 = vld [vmem:[%s7] sm:$0x1]
        %v775 = vadd.f32 %v773, %v774
        %v776 = vld [vmem:[%s10] sm:$0xff]
        %v777 = vld [vmem:[%s10 + $0x8] sm:$0xff]
        %v778 = vld [vmem:[%s10 + $0x10] sm:$0xff]
        %v779 = vld [vmem:[%s10 + $0x18] sm:$0xff]
        %v780 = vld [vmem:[%s11] sm:$0x1]
        %v782 = vsel %vm639, %v771, 0
        %784 = vmatprep.subr.mxu0 0.0
        %785 = vmatpush1.msra.mxu0 0.0
        %786 = vmatprep.subr.mxu0 0.0
        %787 = vmatpush1.msra.mxu0 0.0
        %788 = vmatprep.subr.mxu0 0.0
        %789 = vmatpush1.msra.mxu0 0.0
        %790 = vmatprep.subr.mxu0 0.0
        %791 = vmatpush1.msra.mxu0 0.0
        %792 = vmatprep.subr.mxu0 0.0
        %793 = vmatpush1.msra.mxu0 0.0
        %794 = vmatprep.subr.mxu0 0.0
        %795 = vmatpush1.msra.mxu0 0.0
        %796 = vmatprep.subr.mxu0 0.0
        %797 = vmatpush1.msra.mxu0 0.0
        %798 = vmatprep.subr.mxu0 0.0
        %799 = vmatpush1.msra.mxu0 0.0
        %800 = vmatprep.subr.mxu0 0.0
        %801 = vmatpush1.msra.mxu0 0.0
        %802 = vmatprep.subr.mxu0 0.0
        %803 = vmatpush1.msra.mxu0 0.0
        %804 = vmatprep.subr.mxu0 0.0
        %805 = vmatpush1.msra.mxu0 0.0
        %806 = vmatprep.subr.mxu0 0.0
        %807 = vmatpush1.msra.mxu0 0.0
        %808 = vmatprep.subr.mxu0 0.0
        %809 = vmatpush1.msra.mxu0 %v779
        %810 = vmatprep.subr.mxu0 0.0
        %811 = vmatpush1.msra.mxu0 %v778
        %812 = vmatprep.subr.mxu0 0.0
        %813 = vmatpush1.msra.mxu0 %v777
        %814 = vmatprep.subr.mxu0 0.0
        %815 = vmatpush1.msra.mxu0 %v776
        %816 = vmatprep.subr.mxu0 0.0
        %817 = vmatpush2.msra.mxu0 0.0
        %818 = vmatprep.subr.mxu0 0.0
        %819 = vmatpush2.msra.mxu0 0.0
        %820 = vmatprep.subr.mxu0 0.0
        %821 = vmatpush2.msra.mxu0 0.0
        %822 = vmatprep.subr.mxu0 0.0
        %823 = vmatpush2.msra.mxu0 0.0
        %824 = vmatprep.subr.mxu0 0.0
        %825 = vmatpush2.msra.mxu0 0.0
        %826 = vmatprep.subr.mxu0 0.0
        %827 = vmatpush2.msra.mxu0 0.0
        %828 = vmatprep.subr.mxu0 0.0
        %829 = vmatpush2.msra.mxu0 0.0
        %830 = vmatprep.subr.mxu0 0.0
        %831 = vmatpush2.msra.mxu0 0.0
        %832 = vmatprep.subr.mxu0 0.0
        %833 = vmatpush2.msra.mxu0 0.0
        %834 = vmatprep.subr.mxu0 0.0
        %835 = vmatpush2.msra.mxu0 0.0
        %836 = vmatprep.subr.mxu0 0.0
        %837 = vmatpush2.msra.mxu0 0.0
        %838 = vmatprep.subr.mxu0 0.0
        %839 = vmatpush2.msra.mxu0 0.0
        %840 = vmatprep.subr.mxu0 0.0
        %841 = vmatpush2.msra.mxu0 0.0
        %842 = vmatprep.subr.mxu0 0.0
        %843 = vmatpush2.msra.mxu0 0.0
        %844 = vmatprep.subr.mxu0 0.0
        %845 = vmatpush2.msra.mxu0 0.0
        %846 = vmatprep.subr.mxu0 0.0
        %847 = vmatpush2.msra.mxu0 0.0
        %848 = vmatprep.mubr.f32.mxu0 0.0
        %849 = vmatmul.mubr.f32.gmra.mxu0 %v782
        %v850 = vpop.f32.mrf.mxu0
        %v851 = vadd.f32 %v780, %v850
        %v852 = vpop.f32.mrf.mxu0
        %853 = vdwg.mxu0
        %v854 = vld [vmem:[%s12] sm:$0xff]
        %v855 = vld [vmem:[%s12 + $0x8] sm:$0xff]
        %v856 = vld [vmem:[%s12 + $0x10] sm:$0xff]
        %v857 = vld [vmem:[%s12 + $0x18] sm:$0xff]
        %v858 = vld [vmem:[%s13] sm:$0x1]
        %v860 = vsel %vm639, %v775, 0
        %862 = vmatprep.subr.mxu0 0.0
        %863 = vmatpush1.msra.mxu0 0.0
        %864 = vmatprep.subr.mxu0 0.0
        %865 = vmatpush1.msra.mxu0 0.0
        %866 = vmatprep.subr.mxu0 0.0
        %867 = vmatpush1.msra.mxu0 0.0
        %868 = vmatprep.subr.mxu0 0.0
        %869 = vmatpush1.msra.mxu0 0.0
        %870 = vmatprep.subr.mxu0 0.0
        %871 = vmatpush1.msra.mxu0 0.0
        %872 = vmatprep.subr.mxu0 0.0
        %873 = vmatpush1.msra.mxu0 0.0
        %874 = vmatprep.subr.mxu0 0.0
        %875 = vmatpush1.msra.mxu0 0.0
        %876 = vmatprep.subr.mxu0 0.0
        %877 = vmatpush1.msra.mxu0 0.0
        %878 = vmatprep.subr.mxu0 0.0
        %879 = vmatpush1.msra.mxu0 0.0
        %880 = vmatprep.subr.mxu0 0.0
        %881 = vmatpush1.msra.mxu0 0.0
        %882 = vmatprep.subr.mxu0 0.0
        %883 = vmatpush1.msra.mxu0 0.0
        %884 = vmatprep.subr.mxu0 0.0
        %885 = vmatpush1.msra.mxu0 0.0
        %886 = vmatprep.subr.mxu0 0.0
        %887 = vmatpush1.msra.mxu0 %v857
        %888 = vmatprep.subr.mxu0 0.0
        %889 = vmatpush1.msra.mxu0 %v856
        %890 = vmatprep.subr.mxu0 0.0
        %891 = vmatpush1.msra.mxu0 %v855
        %892 = vmatprep.subr.mxu0 0.0
        %893 = vmatpush1.msra.mxu0 %v854
        %894 = vmatprep.subr.mxu0 0.0
        %895 = vmatpush2.msra.mxu0 0.0
        %896 = vmatprep.subr.mxu0 0.0
        %897 = vmatpush2.msra.mxu0 0.0
        %898 = vmatprep.subr.mxu0 0.0
        %899 = vmatpush2.msra.mxu0 0.0
        %900 = vmatprep.subr.mxu0 0.0
        %901 = vmatpush2.msra.mxu0 0.0
        %902 = vmatprep.subr.mxu0 0.0
        %903 = vmatpush2.msra.mxu0 0.0
        %904 = vmatprep.subr.mxu0 0.0
        %905 = vmatpush2.msra.mxu0 0.0
        %906 = vmatprep.subr.mxu0 0.0
        %907 = vmatpush2.msra.mxu0 0.0
        %908 = vmatprep.subr.mxu0 0.0
        %909 = vmatpush2.msra.mxu0 0.0
        %910 = vmatprep.subr.mxu0 0.0
        %911 = vmatpush2.msra.mxu0 0.0
        %912 = vmatprep.subr.mxu0 0.0
        %913 = vmatpush2.msra.mxu0 0.0
        %914 = vmatprep.subr.mxu0 0.0
        %915 = vmatpush2.msra.mxu0 0.0
        %916 = vmatprep.subr.mxu0 0.0
        %917 = vmatpush2.msra.mxu0 0.0
        %918 = vmatprep.subr.mxu0 0.0
        %919 = vmatpush2.msra.mxu0 0.0
        %920 = vmatprep.subr.mxu0 0.0
        %921 = vmatpush2.msra.mxu0 0.0
        %922 = vmatprep.subr.mxu0 0.0
        %923 = vmatpush2.msra.mxu0 0.0
        %924 = vmatprep.subr.mxu0 0.0
        %925 = vmatpush2.msra.mxu0 0.0
        %926 = vmatprep.mubr.f32.mxu0 0.0
        %927 = vmatmul.mubr.f32.gmra.mxu0 %v860
        %v928 = vpop.f32.mrf.mxu0
        %v929 = vadd.f32 %v858, %v928
        %v930 = vpop.f32.mrf.mxu0
        %931 = vdwg.mxu0
        %v932 = vld [vmem:[%s16] sm:$0xff]
        %v933 = vld [vmem:[%s16 + $0x8] sm:$0xff]
        %v934 = vld [vmem:[%s16 + $0x10] sm:$0xff]
        %v935 = vld [vmem:[%s16 + $0x18] sm:$0xff]
        %v936 = vld [vmem:[%s16 + $0x20] sm:$0xff]
        %v937 = vld [vmem:[%s16 + $0x28] sm:$0xff]
        %v938 = vld [vmem:[%s16 + $0x30] sm:$0xff]
        %v939 = vld [vmem:[%s16 + $0x38] sm:$0xff]
        %v940 = vld [vmem:[%s16 + $0x40] sm:$0xff]
        %v941 = vld [vmem:[%s16 + $0x48] sm:$0xff]
        %v942 = vld [vmem:[%s16 + $0x50] sm:$0xff]
        %v943 = vld [vmem:[%s16 + $0x58] sm:$0xff]
        %v944 = vld [vmem:[%s16 + $0x60] sm:$0xff]
        %v945 = vld [vmem:[%s16 + $0x68] sm:$0xff]
        %v946 = vld [vmem:[%s16 + $0x70] sm:$0xff]
        %v947 = vld [vmem:[%s16 + $0x78] sm:$0xff]
        %v948 = vld [vmem:[%s16 + $0x80] sm:$0xff]
        %v949 = vld [vmem:[%s16 + $0x88] sm:$0xff]
        %v950 = vld [vmem:[%s16 + $0x90] sm:$0xff]
        %v951 = vld [vmem:[%s16 + $0x98] sm:$0xff]
        %v952 = vld [vmem:[%s16 + $0xa0] sm:$0xff]
        %v953 = vld [vmem:[%s16 + $0xa8] sm:$0xff]
        %v954 = vld [vmem:[%s16 + $0xb0] sm:$0xff]
        %v955 = vld [vmem:[%s16 + $0xb8] sm:$0xff]
        %v956 = vld [vmem:[%s16 + $0xc0] sm:$0xff]
        %v957 = vld [vmem:[%s16 + $0xc8] sm:$0xff]
        %v958 = vld [vmem:[%s16 + $0xd0] sm:$0xff]
        %v959 = vld [vmem:[%s16 + $0xd8] sm:$0xff]
        %v960 = vld [vmem:[%s16 + $0xe0] sm:$0xff]
        %v961 = vld [vmem:[%s16 + $0xe8] sm:$0xff]
        %v962 = vld [vmem:[%s16 + $0xf0] sm:$0xff]
        %v963 = vld [vmem:[%s16 + $0xf8] sm:$0xff]
        %v965 = vsel %vm639, %v751, 0
        %967 = vmatprep.subr.mxu0 0.0
        %968 = vmatpush1.msra.mxu0 0.0
        %969 = vmatprep.subr.mxu0 0.0
        %970 = vmatpush1.msra.mxu0 0.0
        %971 = vmatprep.subr.mxu0 0.0
        %972 = vmatpush1.msra.mxu0 0.0
        %973 = vmatprep.subr.mxu0 0.0
        %974 = vmatpush1.msra.mxu0 0.0
        %975 = vmatprep.subr.mxu0 0.0
        %976 = vmatpush1.msra.mxu0 0.0
        %977 = vmatprep.subr.mxu0 0.0
        %978 = vmatpush1.msra.mxu0 0.0
        %979 = vmatprep.subr.mxu0 0.0
        %980 = vmatpush1.msra.mxu0 0.0
        %981 = vmatprep.subr.mxu0 0.0
        %982 = vmatpush1.msra.mxu0 0.0
        %983 = vmatprep.subr.mxu0 0.0
        %984 = vmatpush1.msra.mxu0 0.0
        %985 = vmatprep.subr.mxu0 0.0
        %986 = vmatpush1.msra.mxu0 0.0
        %987 = vmatprep.subr.mxu0 0.0
        %988 = vmatpush1.msra.mxu0 0.0
        %989 = vmatprep.subr.mxu0 0.0
        %990 = vmatpush1.msra.mxu0 0.0
        %991 = vmatprep.subr.mxu0 %v957
        %992 = vmatpush1.msra.mxu0 %v956
        %993 = vmatprep.subr.mxu0 %v949
        %994 = vmatpush1.msra.mxu0 %v948
        %995 = vmatprep.subr.mxu0 %v941
        %996 = vmatpush1.msra.mxu0 %v940
        %997 = vmatprep.subr.mxu0 %v933
        %998 = vmatpush1.msra.mxu0 %v932
        %999 = vmatprep.subr.mxu0 0.0
        %1000 = vmatpush2.msra.mxu0 0.0
        %1001 = vmatprep.subr.mxu0 0.0
        %1002 = vmatpush2.msra.mxu0 0.0
        %1003 = vmatprep.subr.mxu0 0.0
        %1004 = vmatpush2.msra.mxu0 0.0
        %1005 = vmatprep.subr.mxu0 0.0
        %1006 = vmatpush2.msra.mxu0 0.0
        %1007 = vmatprep.subr.mxu0 0.0
        %1008 = vmatpush2.msra.mxu0 0.0
        %1009 = vmatprep.subr.mxu0 0.0
        %1010 = vmatpush2.msra.mxu0 0.0
        %1011 = vmatprep.subr.mxu0 0.0
        %1012 = vmatpush2.msra.mxu0 0.0
        %1013 = vmatprep.subr.mxu0 0.0
        %1014 = vmatpush2.msra.mxu0 0.0
        %1015 = vmatprep.subr.mxu0 0.0
        %1016 = vmatpush2.msra.mxu0 0.0
        %1017 = vmatprep.subr.mxu0 0.0
        %1018 = vmatpush2.msra.mxu0 0.0
        %1019 = vmatprep.subr.mxu0 0.0
        %1020 = vmatpush2.msra.mxu0 0.0
        %1021 = vmatprep.subr.mxu0 0.0
        %1022 = vmatpush2.msra.mxu0 0.0
        %1023 = vmatprep.subr.mxu0 0.0
        %1024 = vmatpush2.msra.mxu0 0.0
        %1025 = vmatprep.subr.mxu0 0.0
        %1026 = vmatpush2.msra.mxu0 0.0
        %1027 = vmatprep.subr.mxu0 0.0
        %1028 = vmatpush2.msra.mxu0 0.0
        %1029 = vmatprep.subr.mxu0 0.0
        %1030 = vmatpush2.msra.mxu0 0.0
        %1031 = vmatprep.mubr.f32.mxu0 0.0
        %1032 = vmatmul.mubr.f32.gmra.mxu0 %v965
        %v1033 = vpop.f32.mrf.mxu0
        %v1034 = vadd.f32 0.0, %v1033
        %v1035 = vpop.f32.mrf.mxu0
        %v1036 = vadd.f32 0.0, %v1035
        %1037 = vdwg.mxu0
        %1038 = vmatprep.subr.mxu0 0.0
        %1039 = vmatpush1.msra.mxu0 0.0
        %1040 = vmatprep.subr.mxu0 0.0
        %1041 = vmatpush1.msra.mxu0 0.0
        %1042 = vmatprep.subr.mxu0 0.0
        %1043 = vmatpush1.msra.mxu0 0.0
        %1044 = vmatprep.subr.mxu0 0.0
        %1045 = vmatpush1.msra.mxu0 0.0
        %1046 = vmatprep.subr.mxu0 0.0
        %1047 = vmatpush1.msra.mxu0 0.0
        %1048 = vmatprep.subr.mxu0 0.0
        %1049 = vmatpush1.msra.mxu0 0.0
        %1050 = vmatprep.subr.mxu0 0.0
        %1051 = vmatpush1.msra.mxu0 0.0
        %1052 = vmatprep.subr.mxu0 0.0
        %1053 = vmatpush1.msra.mxu0 0.0
        %1054 = vmatprep.subr.mxu0 0.0
        %1055 = vmatpush1.msra.mxu0 0.0
        %1056 = vmatprep.subr.mxu0 0.0
        %1057 = vmatpush1.msra.mxu0 0.0
        %1058 = vmatprep.subr.mxu0 0.0
        %1059 = vmatpush1.msra.mxu0 0.0
        %1060 = vmatprep.subr.mxu0 0.0
        %1061 = vmatpush1.msra.mxu0 0.0
        %1062 = vmatprep.subr.mxu0 %v959
        %1063 = vmatpush1.msra.mxu0 %v958
        %1064 = vmatprep.subr.mxu0 %v951
        %1065 = vmatpush1.msra.mxu0 %v950
        %1066 = vmatprep.subr.mxu0 %v943
        %1067 = vmatpush1.msra.mxu0 %v942
        %1068 = vmatprep.subr.mxu0 %v935
        %1069 = vmatpush1.msra.mxu0 %v934
        %1070 = vmatprep.subr.mxu0 0.0
        %1071 = vmatpush2.msra.mxu0 0.0
        %1072 = vmatprep.subr.mxu0 0.0
        %1073 = vmatpush2.msra.mxu0 0.0
        %1074 = vmatprep.subr.mxu0 0.0
        %1075 = vmatpush2.msra.mxu0 0.0
        %1076 = vmatprep.subr.mxu0 0.0
        %1077 = vmatpush2.msra.mxu0 0.0
        %1078 = vmatprep.subr.mxu0 0.0
        %1079 = vmatpush2.msra.mxu0 0.0
        %1080 = vmatprep.subr.mxu0 0.0
        %1081 = vmatpush2.msra.mxu0 0.0
        %1082 = vmatprep.subr.mxu0 0.0
        %1083 = vmatpush2.msra.mxu0 0.0
        %1084 = vmatprep.subr.mxu0 0.0
        %1085 = vmatpush2.msra.mxu0 0.0
        %1086 = vmatprep.subr.mxu0 0.0
        %1087 = vmatpush2.msra.mxu0 0.0
        %1088 = vmatprep.subr.mxu0 0.0
        %1089 = vmatpush2.msra.mxu0 0.0
        %1090 = vmatprep.subr.mxu0 0.0
        %1091 = vmatpush2.msra.mxu0 0.0
        %1092 = vmatprep.subr.mxu0 0.0
        %1093 = vmatpush2.msra.mxu0 0.0
        %1094 = vmatprep.subr.mxu0 0.0
        %1095 = vmatpush2.msra.mxu0 0.0
        %1096 = vmatprep.subr.mxu0 0.0
        %1097 = vmatpush2.msra.mxu0 0.0
        %1098 = vmatprep.subr.mxu0 0.0
        %1099 = vmatpush2.msra.mxu0 0.0
        %1100 = vmatprep.subr.mxu0 0.0
        %1101 = vmatpush2.msra.mxu0 0.0
        %1102 = vmatprep.mubr.f32.mxu0 0.0
        %1103 = vmatmul.mubr.f32.gmra.mxu0 %v965
        %v1104 = vpop.f32.mrf.mxu0
        %v1105 = vadd.f32 0.0, %v1104
        %v1106 = vpop.f32.mrf.mxu0
        %v1107 = vadd.f32 0.0, %v1106
        %1108 = vdwg.mxu0
        %1109 = vmatprep.subr.mxu0 0.0
        %1110 = vmatpush1.msra.mxu0 0.0
        %1111 = vmatprep.subr.mxu0 0.0
        %1112 = vmatpush1.msra.mxu0 0.0
        %1113 = vmatprep.subr.mxu0 0.0
        %1114 = vmatpush1.msra.mxu0 0.0
        %1115 = vmatprep.subr.mxu0 0.0
        %1116 = vmatpush1.msra.mxu0 0.0
        %1117 = vmatprep.subr.mxu0 0.0
        %1118 = vmatpush1.msra.mxu0 0.0
        %1119 = vmatprep.subr.mxu0 0.0
        %1120 = vmatpush1.msra.mxu0 0.0
        %1121 = vmatprep.subr.mxu0 0.0
        %1122 = vmatpush1.msra.mxu0 0.0
        %1123 = vmatprep.subr.mxu0 0.0
        %1124 = vmatpush1.msra.mxu0 0.0
        %1125 = vmatprep.subr.mxu0 0.0
        %1126 = vmatpush1.msra.mxu0 0.0
        %1127 = vmatprep.subr.mxu0 0.0
        %1128 = vmatpush1.msra.mxu0 0.0
        %1129 = vmatprep.subr.mxu0 0.0
        %1130 = vmatpush1.msra.mxu0 0.0
        %1131 = vmatprep.subr.mxu0 0.0
        %1132 = vmatpush1.msra.mxu0 0.0
        %1133 = vmatprep.subr.mxu0 %v961
        %1134 = vmatpush1.msra.mxu0 %v960
        %1135 = vmatprep.subr.mxu0 %v953
        %1136 = vmatpush1.msra.mxu0 %v952
        %1137 = vmatprep.subr.mxu0 %v945
        %1138 = vmatpush1.msra.mxu0 %v944
        %1139 = vmatprep.subr.mxu0 %v937
        %1140 = vmatpush1.msra.mxu0 %v936
        %1141 = vmatprep.subr.mxu0 0.0
        %1142 = vmatpush2.msra.mxu0 0.0
        %1143 = vmatprep.subr.mxu0 0.0
        %1144 = vmatpush2.msra.mxu0 0.0
        %1145 = vmatprep.subr.mxu0 0.0
        %1146 = vmatpush2.msra.mxu0 0.0
        %1147 = vmatprep.subr.mxu0 0.0
        %1148 = vmatpush2.msra.mxu0 0.0
        %1149 = vmatprep.subr.mxu0 0.0
        %1150 = vmatpush2.msra.mxu0 0.0
        %1151 = vmatprep.subr.mxu0 0.0
        %1152 = vmatpush2.msra.mxu0 0.0
        %1153 = vmatprep.subr.mxu0 0.0
        %1154 = vmatpush2.msra.mxu0 0.0
        %1155 = vmatprep.subr.mxu0 0.0
        %1156 = vmatpush2.msra.mxu0 0.0
        %1157 = vmatprep.subr.mxu0 0.0
        %1158 = vmatpush2.msra.mxu0 0.0
        %1159 = vmatprep.subr.mxu0 0.0
        %1160 = vmatpush2.msra.mxu0 0.0
        %1161 = vmatprep.subr.mxu0 0.0
        %1162 = vmatpush2.msra.mxu0 0.0
        %1163 = vmatprep.subr.mxu0 0.0
        %1164 = vmatpush2.msra.mxu0 0.0
        %1165 = vmatprep.subr.mxu0 0.0
        %1166 = vmatpush2.msra.mxu0 0.0
        %1167 = vmatprep.subr.mxu0 0.0
        %1168 = vmatpush2.msra.mxu0 0.0
        %1169 = vmatprep.subr.mxu0 0.0
        %1170 = vmatpush2.msra.mxu0 0.0
        %1171 = vmatprep.subr.mxu0 0.0
        %1172 = vmatpush2.msra.mxu0 0.0
        %1173 = vmatprep.mubr.f32.mxu0 0.0
        %1174 = vmatmul.mubr.f32.gmra.mxu0 %v965
        %v1175 = vpop.f32.mrf.mxu0
        %v1176 = vadd.f32 0.0, %v1175
        %v1177 = vpop.f32.mrf.mxu0
        %v1178 = vadd.f32 0.0, %v1177
        %1179 = vdwg.mxu0
        %1180 = vmatprep.subr.mxu0 0.0
        %1181 = vmatpush1.msra.mxu0 0.0
        %1182 = vmatprep.subr.mxu0 0.0
        %1183 = vmatpush1.msra.mxu0 0.0
        %1184 = vmatprep.subr.mxu0 0.0
        %1185 = vmatpush1.msra.mxu0 0.0
        %1186 = vmatprep.subr.mxu0 0.0
        %1187 = vmatpush1.msra.mxu0 0.0
        %1188 = vmatprep.subr.mxu0 0.0
        %1189 = vmatpush1.msra.mxu0 0.0
        %1190 = vmatprep.subr.mxu0 0.0
        %1191 = vmatpush1.msra.mxu0 0.0
        %1192 = vmatprep.subr.mxu0 0.0
        %1193 = vmatpush1.msra.mxu0 0.0
        %1194 = vmatprep.subr.mxu0 0.0
        %1195 = vmatpush1.msra.mxu0 0.0
        %1196 = vmatprep.subr.mxu0 0.0
        %1197 = vmatpush1.msra.mxu0 0.0
        %1198 = vmatprep.subr.mxu0 0.0
        %1199 = vmatpush1.msra.mxu0 0.0
        %1200 = vmatprep.subr.mxu0 0.0
        %1201 = vmatpush1.msra.mxu0 0.0
        %1202 = vmatprep.subr.mxu0 0.0
        %1203 = vmatpush1.msra.mxu0 0.0
        %1204 = vmatprep.subr.mxu0 %v963
        %1205 = vmatpush1.msra.mxu0 %v962
        %1206 = vmatprep.subr.mxu0 %v955
        %1207 = vmatpush1.msra.mxu0 %v954
        %1208 = vmatprep.subr.mxu0 %v947
        %1209 = vmatpush1.msra.mxu0 %v946
        %1210 = vmatprep.subr.mxu0 %v939
        %1211 = vmatpush1.msra.mxu0 %v938
        %1212 = vmatprep.subr.mxu0 0.0
        %1213 = vmatpush2.msra.mxu0 0.0
        %1214 = vmatprep.subr.mxu0 0.0
        %1215 = vmatpush2.msra.mxu0 0.0
        %1216 = vmatprep.subr.mxu0 0.0
        %1217 = vmatpush2.msra.mxu0 0.0
        %1218 = vmatprep.subr.mxu0 0.0
        %1219 = vmatpush2.msra.mxu0 0.0
        %1220 = vmatprep.subr.mxu0 0.0
        %1221 = vmatpush2.msra.mxu0 0.0
        %1222 = vmatprep.subr.mxu0 0.0
        %1223 = vmatpush2.msra.mxu0 0.0
        %1224 = vmatprep.subr.mxu0 0.0
        %1225 = vmatpush2.msra.mxu0 0.0
        %1226 = vmatprep.subr.mxu0 0.0
        %1227 = vmatpush2.msra.mxu0 0.0
        %1228 = vmatprep.subr.mxu0 0.0
        %1229 = vmatpush2.msra.mxu0 0.0
        %1230 = vmatprep.subr.mxu0 0.0
        %1231 = vmatpush2.msra.mxu0 0.0
        %1232 = vmatprep.subr.mxu0 0.0
        %1233 = vmatpush2.msra.mxu0 0.0
        %1234 = vmatprep.subr.mxu0 0.0
        %1235 = vmatpush2.msra.mxu0 0.0
        %1236 = vmatprep.subr.mxu0 0.0
        %1237 = vmatpush2.msra.mxu0 0.0
        %1238 = vmatprep.subr.mxu0 0.0
        %1239 = vmatpush2.msra.mxu0 0.0
        %1240 = vmatprep.subr.mxu0 0.0
        %1241 = vmatpush2.msra.mxu0 0.0
        %1242 = vmatprep.subr.mxu0 0.0
        %1243 = vmatpush2.msra.mxu0 0.0
        %1244 = vmatprep.mubr.f32.mxu0 0.0
        %1245 = vmatmul.mubr.f32.gmra.mxu0 %v965
        %v1246 = vpop.f32.mrf.mxu0
        %v1247 = vadd.f32 0.0, %v1246
        %v1248 = vpop.f32.mrf.mxu0
        %v1249 = vadd.f32 0.0, %v1248
        %1250 = vdwg.mxu0
        %v1251 = vld [vmem:[%s18] sm:$0xff]
        %v1252 = vld [vmem:[%s18 + $0x8] sm:$0xff]
        %v1253 = vld [vmem:[%s18 + $0x10] sm:$0xff]
        %v1254 = vld [vmem:[%s18 + $0x18] sm:$0xff]
        %v1255 = vld [vmem:[%s18 + $0x20] sm:$0xff]
        %v1256 = vld [vmem:[%s18 + $0x28] sm:$0xff]
        %v1257 = vld [vmem:[%s18 + $0x30] sm:$0xff]
        %v1258 = vld [vmem:[%s18 + $0x38] sm:$0xff]
        %v1259 = vld [vmem:[%s18 + $0x40] sm:$0xff]
        %v1260 = vld [vmem:[%s18 + $0x48] sm:$0xff]
        %v1261 = vld [vmem:[%s18 + $0x50] sm:$0xff]
        %v1262 = vld [vmem:[%s18 + $0x58] sm:$0xff]
        %v1263 = vld [vmem:[%s18 + $0x60] sm:$0xff]
        %v1264 = vld [vmem:[%s18 + $0x68] sm:$0xff]
        %v1265 = vld [vmem:[%s18 + $0x70] sm:$0xff]
        %v1266 = vld [vmem:[%s18 + $0x78] sm:$0xff]
        %v1267 = vld [vmem:[%s18 + $0x80] sm:$0xff]
        %v1268 = vld [vmem:[%s18 + $0x88] sm:$0xff]
        %v1269 = vld [vmem:[%s18 + $0x90] sm:$0xff]
        %v1270 = vld [vmem:[%s18 + $0x98] sm:$0xff]
        %v1271 = vld [vmem:[%s18 + $0xa0] sm:$0xff]
        %v1272 = vld [vmem:[%s18 + $0xa8] sm:$0xff]
        %v1273 = vld [vmem:[%s18 + $0xb0] sm:$0xff]
        %v1274 = vld [vmem:[%s18 + $0xb8] sm:$0xff]
        %v1275 = vld [vmem:[%s18 + $0xc0] sm:$0xff]
        %v1276 = vld [vmem:[%s18 + $0xc8] sm:$0xff]
        %v1277 = vld [vmem:[%s18 + $0xd0] sm:$0xff]
        %v1278 = vld [vmem:[%s18 + $0xd8] sm:$0xff]
        %v1279 = vld [vmem:[%s18 + $0xe0] sm:$0xff]
        %v1280 = vld [vmem:[%s18 + $0xe8] sm:$0xff]
        %v1281 = vld [vmem:[%s18 + $0xf0] sm:$0xff]
        %v1282 = vld [vmem:[%s18 + $0xf8] sm:$0xff]
        %v1284 = vsel %vm639, %v851, 0
        %1286 = vmatprep.subr.mxu0 0.0
        %1287 = vmatpush1.msra.mxu0 0.0
        %1288 = vmatprep.subr.mxu0 0.0
        %1289 = vmatpush1.msra.mxu0 0.0
        %1290 = vmatprep.subr.mxu0 0.0
        %1291 = vmatpush1.msra.mxu0 0.0
        %1292 = vmatprep.subr.mxu0 0.0
        %1293 = vmatpush1.msra.mxu0 0.0
        %1294 = vmatprep.subr.mxu0 0.0
        %1295 = vmatpush1.msra.mxu0 0.0
        %1296 = vmatprep.subr.mxu0 0.0
        %1297 = vmatpush1.msra.mxu0 0.0
        %1298 = vmatprep.subr.mxu0 0.0
        %1299 = vmatpush1.msra.mxu0 0.0
        %1300 = vmatprep.subr.mxu0 0.0
        %1301 = vmatpush1.msra.mxu0 0.0
        %1302 = vmatprep.subr.mxu0 0.0
        %1303 = vmatpush1.msra.mxu0 0.0
        %1304 = vmatprep.subr.mxu0 0.0
        %1305 = vmatpush1.msra.mxu0 0.0
        %1306 = vmatprep.subr.mxu0 0.0
        %1307 = vmatpush1.msra.mxu0 0.0
        %1308 = vmatprep.subr.mxu0 0.0
        %1309 = vmatpush1.msra.mxu0 0.0
        %1310 = vmatprep.subr.mxu0 %v1276
        %1311 = vmatpush1.msra.mxu0 %v1275
        %1312 = vmatprep.subr.mxu0 %v1268
        %1313 = vmatpush1.msra.mxu0 %v1267
        %1314 = vmatprep.subr.mxu0 %v1260
        %1315 = vmatpush1.msra.mxu0 %v1259
        %1316 = vmatprep.subr.mxu0 %v1252
        %1317 = vmatpush1.msra.mxu0 %v1251
        %1318 = vmatprep.subr.mxu0 0.0
        %1319 = vmatpush2.msra.mxu0 0.0
        %1320 = vmatprep.subr.mxu0 0.0
        %1321 = vmatpush2.msra.mxu0 0.0
        %1322 = vmatprep.subr.mxu0 0.0
        %1323 = vmatpush2.msra.mxu0 0.0
        %1324 = vmatprep.subr.mxu0 0.0
        %1325 = vmatpush2.msra.mxu0 0.0
        %1326 = vmatprep.subr.mxu0 0.0
        %1327 = vmatpush2.msra.mxu0 0.0
        %1328 = vmatprep.subr.mxu0 0.0
        %1329 = vmatpush2.msra.mxu0 0.0
        %1330 = vmatprep.subr.mxu0 0.0
        %1331 = vmatpush2.msra.mxu0 0.0
        %1332 = vmatprep.subr.mxu0 0.0
        %1333 = vmatpush2.msra.mxu0 0.0
        %1334 = vmatprep.subr.mxu0 0.0
        %1335 = vmatpush2.msra.mxu0 0.0
        %1336 = vmatprep.subr.mxu0 0.0
        %1337 = vmatpush2.msra.mxu0 0.0
        %1338 = vmatprep.subr.mxu0 0.0
        %1339 = vmatpush2.msra.mxu0 0.0
        %1340 = vmatprep.subr.mxu0 0.0
        %1341 = vmatpush2.msra.mxu0 0.0
        %1342 = vmatprep.subr.mxu0 0.0
        %1343 = vmatpush2.msra.mxu0 0.0
        %1344 = vmatprep.subr.mxu0 0.0
        %1345 = vmatpush2.msra.mxu0 0.0
        %1346 = vmatprep.subr.mxu0 0.0
        %1347 = vmatpush2.msra.mxu0 0.0
        %1348 = vmatprep.subr.mxu0 0.0
        %1349 = vmatpush2.msra.mxu0 0.0
        %1350 = vmatprep.mubr.f32.mxu0 0.0
        %1351 = vmatmul.mubr.f32.gmra.mxu0 %v1284
        %v1352 = vpop.f32.mrf.mxu0
        %v1353 = vadd.f32 0.0, %v1352
        %v1354 = vpop.f32.mrf.mxu0
        %v1355 = vadd.f32 0.0, %v1354
        %1356 = vdwg.mxu0
        %1357 = vmatprep.subr.mxu0 0.0
        %1358 = vmatpush1.msra.mxu0 0.0
        %1359 = vmatprep.subr.mxu0 0.0
        %1360 = vmatpush1.msra.mxu0 0.0
        %1361 = vmatprep.subr.mxu0 0.0
        %1362 = vmatpush1.msra.mxu0 0.0
        %1363 = vmatprep.subr.mxu0 0.0
        %1364 = vmatpush1.msra.mxu0 0.0
        %1365 = vmatprep.subr.mxu0 0.0
        %1366 = vmatpush1.msra.mxu0 0.0
        %1367 = vmatprep.subr.mxu0 0.0
        %1368 = vmatpush1.msra.mxu0 0.0
        %1369 = vmatprep.subr.mxu0 0.0
        %1370 = vmatpush1.msra.mxu0 0.0
        %1371 = vmatprep.subr.mxu0 0.0
        %1372 = vmatpush1.msra.mxu0 0.0
        %1373 = vmatprep.subr.mxu0 0.0
        %1374 = vmatpush1.msra.mxu0 0.0
        %1375 = vmatprep.subr.mxu0 0.0
        %1376 = vmatpush1.msra.mxu0 0.0
        %1377 = vmatprep.subr.mxu0 0.0
        %1378 = vmatpush1.msra.mxu0 0.0
        %1379 = vmatprep.subr.mxu0 0.0
        %1380 = vmatpush1.msra.mxu0 0.0
        %1381 = vmatprep.subr.mxu0 %v1278
        %1382 = vmatpush1.msra.mxu0 %v1277
        %1383 = vmatprep.subr.mxu0 %v1270
        %1384 = vmatpush1.msra.mxu0 %v1269
        %1385 = vmatprep.subr.mxu0 %v1262
        %1386 = vmatpush1.msra.mxu0 %v1261
        %1387 = vmatprep.subr.mxu0 %v1254
        %1388 = vmatpush1.msra.mxu0 %v1253
        %1389 = vmatprep.subr.mxu0 0.0
        %1390 = vmatpush2.msra.mxu0 0.0
        %1391 = vmatprep.subr.mxu0 0.0
        %1392 = vmatpush2.msra.mxu0 0.0
        %1393 = vmatprep.subr.mxu0 0.0
        %1394 = vmatpush2.msra.mxu0 0.0
        %1395 = vmatprep.subr.mxu0 0.0
        %1396 = vmatpush2.msra.mxu0 0.0
        %1397 = vmatprep.subr.mxu0 0.0
        %1398 = vmatpush2.msra.mxu0 0.0
        %1399 = vmatprep.subr.mxu0 0.0
        %1400 = vmatpush2.msra.mxu0 0.0
        %1401 = vmatprep.subr.mxu0 0.0
        %1402 = vmatpush2.msra.mxu0 0.0
        %1403 = vmatprep.subr.mxu0 0.0
        %1404 = vmatpush2.msra.mxu0 0.0
        %1405 = vmatprep.subr.mxu0 0.0
        %1406 = vmatpush2.msra.mxu0 0.0
        %1407 = vmatprep.subr.mxu0 0.0
        %1408 = vmatpush2.msra.mxu0 0.0
        %1409 = vmatprep.subr.mxu0 0.0
        %1410 = vmatpush2.msra.mxu0 0.0
        %1411 = vmatprep.subr.mxu0 0.0
        %1412 = vmatpush2.msra.mxu0 0.0
        %1413 = vmatprep.subr.mxu0 0.0
        %1414 = vmatpush2.msra.mxu0 0.0
        %1415 = vmatprep.subr.mxu0 0.0
        %1416 = vmatpush2.msra.mxu0 0.0
        %1417 = vmatprep.subr.mxu0 0.0
        %1418 = vmatpush2.msra.mxu0 0.0
        %1419 = vmatprep.subr.mxu0 0.0
        %1420 = vmatpush2.msra.mxu0 0.0
        %1421 = vmatprep.mubr.f32.mxu0 0.0
        %1422 = vmatmul.mubr.f32.gmra.mxu0 %v1284
        %v1423 = vpop.f32.mrf.mxu0
        %v1424 = vadd.f32 0.0, %v1423
        %v1425 = vpop.f32.mrf.mxu0
        %v1426 = vadd.f32 0.0, %v1425
        %1427 = vdwg.mxu0
        %1428 = vmatprep.subr.mxu0 0.0
        %1429 = vmatpush1.msra.mxu0 0.0
        %1430 = vmatprep.subr.mxu0 0.0
        %1431 = vmatpush1.msra.mxu0 0.0
        %1432 = vmatprep.subr.mxu0 0.0
        %1433 = vmatpush1.msra.mxu0 0.0
        %1434 = vmatprep.subr.mxu0 0.0
        %1435 = vmatpush1.msra.mxu0 0.0
        %1436 = vmatprep.subr.mxu0 0.0
        %1437 = vmatpush1.msra.mxu0 0.0
        %1438 = vmatprep.subr.mxu0 0.0
        %1439 = vmatpush1.msra.mxu0 0.0
        %1440 = vmatprep.subr.mxu0 0.0
        %1441 = vmatpush1.msra.mxu0 0.0
        %1442 = vmatprep.subr.mxu0 0.0
        %1443 = vmatpush1.msra.mxu0 0.0
        %1444 = vmatprep.subr.mxu0 0.0
        %1445 = vmatpush1.msra.mxu0 0.0
        %1446 = vmatprep.subr.mxu0 0.0
        %1447 = vmatpush1.msra.mxu0 0.0
        %1448 = vmatprep.subr.mxu0 0.0
        %1449 = vmatpush1.msra.mxu0 0.0
        %1450 = vmatprep.subr.mxu0 0.0
        %1451 = vmatpush1.msra.mxu0 0.0
        %1452 = vmatprep.subr.mxu0 %v1280
        %1453 = vmatpush1.msra.mxu0 %v1279
        %1454 = vmatprep.subr.mxu0 %v1272
        %1455 = vmatpush1.msra.mxu0 %v1271
        %1456 = vmatprep.subr.mxu0 %v1264
        %1457 = vmatpush1.msra.mxu0 %v1263
        %1458 = vmatprep.subr.mxu0 %v1256
        %1459 = vmatpush1.msra.mxu0 %v1255
        %1460 = vmatprep.subr.mxu0 0.0
        %1461 = vmatpush2.msra.mxu0 0.0
        %1462 = vmatprep.subr.mxu0 0.0
        %1463 = vmatpush2.msra.mxu0 0.0
        %1464 = vmatprep.subr.mxu0 0.0
        %1465 = vmatpush2.msra.mxu0 0.0
        %1466 = vmatprep.subr.mxu0 0.0
        %1467 = vmatpush2.msra.mxu0 0.0
        %1468 = vmatprep.subr.mxu0 0.0
        %1469 = vmatpush2.msra.mxu0 0.0
        %1470 = vmatprep.subr.mxu0 0.0
        %1471 = vmatpush2.msra.mxu0 0.0
        %1472 = vmatprep.subr.mxu0 0.0
        %1473 = vmatpush2.msra.mxu0 0.0
        %1474 = vmatprep.subr.mxu0 0.0
        %1475 = vmatpush2.msra.mxu0 0.0
        %1476 = vmatprep.subr.mxu0 0.0
        %1477 = vmatpush2.msra.mxu0 0.0
        %1478 = vmatprep.subr.mxu0 0.0
        %1479 = vmatpush2.msra.mxu0 0.0
        %1480 = vmatprep.subr.mxu0 0.0
        %1481 = vmatpush2.msra.mxu0 0.0
        %1482 = vmatprep.subr.mxu0 0.0
        %1483 = vmatpush2.msra.mxu0 0.0
        %1484 = vmatprep.subr.mxu0 0.0
        %1485 = vmatpush2.msra.mxu0 0.0
        %1486 = vmatprep.subr.mxu0 0.0
        %1487 = vmatpush2.msra.mxu0 0.0
        %1488 = vmatprep.subr.mxu0 0.0
        %1489 = vmatpush2.msra.mxu0 0.0
        %1490 = vmatprep.subr.mxu0 0.0
        %1491 = vmatpush2.msra.mxu0 0.0
        %1492 = vmatprep.mubr.f32.mxu0 0.0
        %1493 = vmatmul.mubr.f32.gmra.mxu0 %v1284
        %v1494 = vpop.f32.mrf.mxu0
        %v1495 = vadd.f32 0.0, %v1494
        %v1496 = vpop.f32.mrf.mxu0
        %v1497 = vadd.f32 0.0, %v1496
        %1498 = vdwg.mxu0
        %1499 = vmatprep.subr.mxu0 0.0
        %1500 = vmatpush1.msra.mxu0 0.0
        %1501 = vmatprep.subr.mxu0 0.0
        %1502 = vmatpush1.msra.mxu0 0.0
        %1503 = vmatprep.subr.mxu0 0.0
        %1504 = vmatpush1.msra.mxu0 0.0
        %1505 = vmatprep.subr.mxu0 0.0
        %1506 = vmatpush1.msra.mxu0 0.0
        %1507 = vmatprep.subr.mxu0 0.0
        %1508 = vmatpush1.msra.mxu0 0.0
        %1509 = vmatprep.subr.mxu0 0.0
        %1510 = vmatpush1.msra.mxu0 0.0
        %1511 = vmatprep.subr.mxu0 0.0
        %1512 = vmatpush1.msra.mxu0 0.0
        %1513 = vmatprep.subr.mxu0 0.0
        %1514 = vmatpush1.msra.mxu0 0.0
        %1515 = vmatprep.subr.mxu0 0.0
        %1516 = vmatpush1.msra.mxu0 0.0
        %1517 = vmatprep.subr.mxu0 0.0
        %1518 = vmatpush1.msra.mxu0 0.0
        %1519 = vmatprep.subr.mxu0 0.0
        %1520 = vmatpush1.msra.mxu0 0.0
        %1521 = vmatprep.subr.mxu0 0.0
        %1522 = vmatpush1.msra.mxu0 0.0
        %1523 = vmatprep.subr.mxu0 %v1282
        %1524 = vmatpush1.msra.mxu0 %v1281
        %1525 = vmatprep.subr.mxu0 %v1274
        %1526 = vmatpush1.msra.mxu0 %v1273
        %1527 = vmatprep.subr.mxu0 %v1266
        %1528 = vmatpush1.msra.mxu0 %v1265
        %1529 = vmatprep.subr.mxu0 %v1258
        %1530 = vmatpush1.msra.mxu0 %v1257
        %1531 = vmatprep.subr.mxu0 0.0
        %1532 = vmatpush2.msra.mxu0 0.0
        %1533 = vmatprep.subr.mxu0 0.0
        %1534 = vmatpush2.msra.mxu0 0.0
        %1535 = vmatprep.subr.mxu0 0.0
        %1536 = vmatpush2.msra.mxu0 0.0
        %1537 = vmatprep.subr.mxu0 0.0
        %1538 = vmatpush2.msra.mxu0 0.0
        %1539 = vmatprep.subr.mxu0 0.0
        %1540 = vmatpush2.msra.mxu0 0.0
        %1541 = vmatprep.subr.mxu0 0.0
        %1542 = vmatpush2.msra.mxu0 0.0
        %1543 = vmatprep.subr.mxu0 0.0
        %1544 = vmatpush2.msra.mxu0 0.0
        %1545 = vmatprep.subr.mxu0 0.0
        %1546 = vmatpush2.msra.mxu0 0.0
        %1547 = vmatprep.subr.mxu0 0.0
        %1548 = vmatpush2.msra.mxu0 0.0
        %1549 = vmatprep.subr.mxu0 0.0
        %1550 = vmatpush2.msra.mxu0 0.0
        %1551 = vmatprep.subr.mxu0 0.0
        %1552 = vmatpush2.msra.mxu0 0.0
        %1553 = vmatprep.subr.mxu0 0.0
        %1554 = vmatpush2.msra.mxu0 0.0
        %1555 = vmatprep.subr.mxu0 0.0
        %1556 = vmatpush2.msra.mxu0 0.0
        %1557 = vmatprep.subr.mxu0 0.0
        %1558 = vmatpush2.msra.mxu0 0.0
        %1559 = vmatprep.subr.mxu0 0.0
        %1560 = vmatpush2.msra.mxu0 0.0
        %1561 = vmatprep.subr.mxu0 0.0
        %1562 = vmatpush2.msra.mxu0 0.0
        %1563 = vmatprep.mubr.f32.mxu0 0.0
        %1564 = vmatmul.mubr.f32.gmra.mxu0 %v1284
        %v1565 = vpop.f32.mrf.mxu0
        %v1566 = vadd.f32 0.0, %v1565
        %v1567 = vpop.f32.mrf.mxu0
        %v1568 = vadd.f32 0.0, %v1567
        %1569 = vdwg.mxu0
        %v1571 = vsel %vm639, %v929, 0
        %1573 = vmatprep.subr.mxu0 0.0
        %1574 = vmatpush1.msra.mxu0 0.0
        %1575 = vmatprep.subr.mxu0 0.0
        %1576 = vmatpush1.msra.mxu0 0.0
        %1577 = vmatprep.subr.mxu0 0.0
        %1578 = vmatpush1.msra.mxu0 0.0
        %1579 = vmatprep.subr.mxu0 0.0
        %1580 = vmatpush1.msra.mxu0 0.0
        %1581 = vmatprep.subr.mxu0 0.0
        %1582 = vmatpush1.msra.mxu0 0.0
        %1583 = vmatprep.subr.mxu0 0.0
        %1584 = vmatpush1.msra.mxu0 0.0
        %1585 = vmatprep.subr.mxu0 0.0
        %1586 = vmatpush1.msra.mxu0 0.0
        %1587 = vmatprep.subr.mxu0 0.0
        %1588 = vmatpush1.msra.mxu0 0.0
        %1589 = vmatprep.subr.mxu0 0.0
        %1590 = vmatpush1.msra.mxu0 0.0
        %1591 = vmatprep.subr.mxu0 0.0
        %1592 = vmatpush1.msra.mxu0 0.0
        %1593 = vmatprep.subr.mxu0 0.0
        %1594 = vmatpush1.msra.mxu0 0.0
        %1595 = vmatprep.subr.mxu0 0.0
        %1596 = vmatpush1.msra.mxu0 0.0
        %1597 = vmatprep.subr.mxu0 %v1276
        %1598 = vmatpush1.msra.mxu0 %v1275
        %1599 = vmatprep.subr.mxu0 %v1268
        %1600 = vmatpush1.msra.mxu0 %v1267
        %1601 = vmatprep.subr.mxu0 %v1260
        %1602 = vmatpush1.msra.mxu0 %v1259
        %1603 = vmatprep.subr.mxu0 %v1252
        %1604 = vmatpush1.msra.mxu0 %v1251
        %1605 = vmatprep.subr.mxu0 0.0
        %1606 = vmatpush2.msra.mxu0 0.0
        %1607 = vmatprep.subr.mxu0 0.0
        %1608 = vmatpush2.msra.mxu0 0.0
        %1609 = vmatprep.subr.mxu0 0.0
        %1610 = vmatpush2.msra.mxu0 0.0
        %1611 = vmatprep.subr.mxu0 0.0
        %1612 = vmatpush2.msra.mxu0 0.0
        %1613 = vmatprep.subr.mxu0 0.0
        %1614 = vmatpush2.msra.mxu0 0.0
        %1615 = vmatprep.subr.mxu0 0.0
        %1616 = vmatpush2.msra.mxu0 0.0
        %1617 = vmatprep.subr.mxu0 0.0
        %1618 = vmatpush2.msra.mxu0 0.0
        %1619 = vmatprep.subr.mxu0 0.0
        %1620 = vmatpush2.msra.mxu0 0.0
        %1621 = vmatprep.subr.mxu0 0.0
        %1622 = vmatpush2.msra.mxu0 0.0
        %1623 = vmatprep.subr.mxu0 0.0
        %1624 = vmatpush2.msra.mxu0 0.0
        %1625 = vmatprep.subr.mxu0 0.0
        %1626 = vmatpush2.msra.mxu0 0.0
        %1627 = vmatprep.subr.mxu0 0.0
        %1628 = vmatpush2.msra.mxu0 0.0
        %1629 = vmatprep.subr.mxu0 0.0
        %1630 = vmatpush2.msra.mxu0 0.0
        %1631 = vmatprep.subr.mxu0 0.0
        %1632 = vmatpush2.msra.mxu0 0.0
        %1633 = vmatprep.subr.mxu0 0.0
        %1634 = vmatpush2.msra.mxu0 0.0
        %1635 = vmatprep.subr.mxu0 0.0
        %1636 = vmatpush2.msra.mxu0 0.0
        %1637 = vmatprep.mubr.f32.mxu0 0.0
        %1638 = vmatmul.mubr.f32.gmra.mxu0 %v1571
        %v1639 = vpop.f32.mrf.mxu0
        %v1640 = vadd.f32 0.0, %v1639
        %v1641 = vpop.f32.mrf.mxu0
        %v1642 = vadd.f32 0.0, %v1641
        %1643 = vdwg.mxu0
        %1644 = vmatprep.subr.mxu0 0.0
        %1645 = vmatpush1.msra.mxu0 0.0
        %1646 = vmatprep.subr.mxu0 0.0
        %1647 = vmatpush1.msra.mxu0 0.0
        %1648 = vmatprep.subr.mxu0 0.0
        %1649 = vmatpush1.msra.mxu0 0.0
        %1650 = vmatprep.subr.mxu0 0.0
        %1651 = vmatpush1.msra.mxu0 0.0
        %1652 = vmatprep.subr.mxu0 0.0
        %1653 = vmatpush1.msra.mxu0 0.0
        %1654 = vmatprep.subr.mxu0 0.0
        %1655 = vmatpush1.msra.mxu0 0.0
        %1656 = vmatprep.subr.mxu0 0.0
        %1657 = vmatpush1.msra.mxu0 0.0
        %1658 = vmatprep.subr.mxu0 0.0
        %1659 = vmatpush1.msra.mxu0 0.0
        %1660 = vmatprep.subr.mxu0 0.0
        %1661 = vmatpush1.msra.mxu0 0.0
        %1662 = vmatprep.subr.mxu0 0.0
        %1663 = vmatpush1.msra.mxu0 0.0
        %1664 = vmatprep.subr.mxu0 0.0
        %1665 = vmatpush1.msra.mxu0 0.0
        %1666 = vmatprep.subr.mxu0 0.0
        %1667 = vmatpush1.msra.mxu0 0.0
        %1668 = vmatprep.subr.mxu0 %v1278
        %1669 = vmatpush1.msra.mxu0 %v1277
        %1670 = vmatprep.subr.mxu0 %v1270
        %1671 = vmatpush1.msra.mxu0 %v1269
        %1672 = vmatprep.subr.mxu0 %v1262
        %1673 = vmatpush1.msra.mxu0 %v1261
        %1674 = vmatprep.subr.mxu0 %v1254
        %1675 = vmatpush1.msra.mxu0 %v1253
        %1676 = vmatprep.subr.mxu0 0.0
        %1677 = vmatpush2.msra.mxu0 0.0
        %1678 = vmatprep.subr.mxu0 0.0
        %1679 = vmatpush2.msra.mxu0 0.0
        %1680 = vmatprep.subr.mxu0 0.0
        %1681 = vmatpush2.msra.mxu0 0.0
        %1682 = vmatprep.subr.mxu0 0.0
        %1683 = vmatpush2.msra.mxu0 0.0
        %1684 = vmatprep.subr.mxu0 0.0
        %1685 = vmatpush2.msra.mxu0 0.0
        %1686 = vmatprep.subr.mxu0 0.0
        %1687 = vmatpush2.msra.mxu0 0.0
        %1688 = vmatprep.subr.mxu0 0.0
        %1689 = vmatpush2.msra.mxu0 0.0
        %1690 = vmatprep.subr.mxu0 0.0
        %1691 = vmatpush2.msra.mxu0 0.0
        %1692 = vmatprep.subr.mxu0 0.0
        %1693 = vmatpush2.msra.mxu0 0.0
        %1694 = vmatprep.subr.mxu0 0.0
        %1695 = vmatpush2.msra.mxu0 0.0
        %1696 = vmatprep.subr.mxu0 0.0
        %1697 = vmatpush2.msra.mxu0 0.0
        %1698 = vmatprep.subr.mxu0 0.0
        %1699 = vmatpush2.msra.mxu0 0.0
        %1700 = vmatprep.subr.mxu0 0.0
        %1701 = vmatpush2.msra.mxu0 0.0
        %1702 = vmatprep.subr.mxu0 0.0
        %1703 = vmatpush2.msra.mxu0 0.0
        %1704 = vmatprep.subr.mxu0 0.0
        %1705 = vmatpush2.msra.mxu0 0.0
        %1706 = vmatprep.subr.mxu0 0.0
        %1707 = vmatpush2.msra.mxu0 0.0
        %1708 = vmatprep.mubr.f32.mxu0 0.0
        %1709 = vmatmul.mubr.f32.gmra.mxu0 %v1571
        %v1710 = vpop.f32.mrf.mxu0
        %v1711 = vadd.f32 0.0, %v1710
        %v1712 = vpop.f32.mrf.mxu0
        %v1713 = vadd.f32 0.0, %v1712
        %1714 = vdwg.mxu0
        %1715 = vmatprep.subr.mxu0 0.0
        %1716 = vmatpush1.msra.mxu0 0.0
        %1717 = vmatprep.subr.mxu0 0.0
        %1718 = vmatpush1.msra.mxu0 0.0
        %1719 = vmatprep.subr.mxu0 0.0
        %1720 = vmatpush1.msra.mxu0 0.0
        %1721 = vmatprep.subr.mxu0 0.0
        %1722 = vmatpush1.msra.mxu0 0.0
        %1723 = vmatprep.subr.mxu0 0.0
        %1724 = vmatpush1.msra.mxu0 0.0
        %1725 = vmatprep.subr.mxu0 0.0
        %1726 = vmatpush1.msra.mxu0 0.0
        %1727 = vmatprep.subr.mxu0 0.0
        %1728 = vmatpush1.msra.mxu0 0.0
        %1729 = vmatprep.subr.mxu0 0.0
        %1730 = vmatpush1.msra.mxu0 0.0
        %1731 = vmatprep.subr.mxu0 0.0
        %1732 = vmatpush1.msra.mxu0 0.0
        %1733 = vmatprep.subr.mxu0 0.0
        %1734 = vmatpush1.msra.mxu0 0.0
        %1735 = vmatprep.subr.mxu0 0.0
        %1736 = vmatpush1.msra.mxu0 0.0
        %1737 = vmatprep.subr.mxu0 0.0
        %1738 = vmatpush1.msra.mxu0 0.0
        %1739 = vmatprep.subr.mxu0 %v1280
        %1740 = vmatpush1.msra.mxu0 %v1279
        %1741 = vmatprep.subr.mxu0 %v1272
        %1742 = vmatpush1.msra.mxu0 %v1271
        %1743 = vmatprep.subr.mxu0 %v1264
        %1744 = vmatpush1.msra.mxu0 %v1263
        %1745 = vmatprep.subr.mxu0 %v1256
        %1746 = vmatpush1.msra.mxu0 %v1255
        %1747 = vmatprep.subr.mxu0 0.0
        %1748 = vmatpush2.msra.mxu0 0.0
        %1749 = vmatprep.subr.mxu0 0.0
        %1750 = vmatpush2.msra.mxu0 0.0
        %1751 = vmatprep.subr.mxu0 0.0
        %1752 = vmatpush2.msra.mxu0 0.0
        %1753 = vmatprep.subr.mxu0 0.0
        %1754 = vmatpush2.msra.mxu0 0.0
        %1755 = vmatprep.subr.mxu0 0.0
        %1756 = vmatpush2.msra.mxu0 0.0
        %1757 = vmatprep.subr.mxu0 0.0
        %1758 = vmatpush2.msra.mxu0 0.0
        %1759 = vmatprep.subr.mxu0 0.0
        %1760 = vmatpush2.msra.mxu0 0.0
        %1761 = vmatprep.subr.mxu0 0.0
        %1762 = vmatpush2.msra.mxu0 0.0
        %1763 = vmatprep.subr.mxu0 0.0
        %1764 = vmatpush2.msra.mxu0 0.0
        %1765 = vmatprep.subr.mxu0 0.0
        %1766 = vmatpush2.msra.mxu0 0.0
        %1767 = vmatprep.subr.mxu0 0.0
        %1768 = vmatpush2.msra.mxu0 0.0
        %1769 = vmatprep.subr.mxu0 0.0
        %1770 = vmatpush2.msra.mxu0 0.0
        %1771 = vmatprep.subr.mxu0 0.0
        %1772 = vmatpush2.msra.mxu0 0.0
        %1773 = vmatprep.subr.mxu0 0.0
        %1774 = vmatpush2.msra.mxu0 0.0
        %1775 = vmatprep.subr.mxu0 0.0
        %1776 = vmatpush2.msra.mxu0 0.0
        %1777 = vmatprep.subr.mxu0 0.0
        %1778 = vmatpush2.msra.mxu0 0.0
        %1779 = vmatprep.mubr.f32.mxu0 0.0
        %1780 = vmatmul.mubr.f32.gmra.mxu0 %v1571
        %v1781 = vpop.f32.mrf.mxu0
        %v1782 = vadd.f32 0.0, %v1781
        %v1783 = vpop.f32.mrf.mxu0
        %v1784 = vadd.f32 0.0, %v1783
        %1785 = vdwg.mxu0
        %1786 = vmatprep.subr.mxu0 0.0
        %1787 = vmatpush1.msra.mxu0 0.0
        %1788 = vmatprep.subr.mxu0 0.0
        %1789 = vmatpush1.msra.mxu0 0.0
        %1790 = vmatprep.subr.mxu0 0.0
        %1791 = vmatpush1.msra.mxu0 0.0
        %1792 = vmatprep.subr.mxu0 0.0
        %1793 = vmatpush1.msra.mxu0 0.0
        %1794 = vmatprep.subr.mxu0 0.0
        %1795 = vmatpush1.msra.mxu0 0.0
        %1796 = vmatprep.subr.mxu0 0.0
        %1797 = vmatpush1.msra.mxu0 0.0
        %1798 = vmatprep.subr.mxu0 0.0
        %1799 = vmatpush1.msra.mxu0 0.0
        %1800 = vmatprep.subr.mxu0 0.0
        %1801 = vmatpush1.msra.mxu0 0.0
        %1802 = vmatprep.subr.mxu0 0.0
        %1803 = vmatpush1.msra.mxu0 0.0
        %1804 = vmatprep.subr.mxu0 0.0
        %1805 = vmatpush1.msra.mxu0 0.0
        %1806 = vmatprep.subr.mxu0 0.0
        %1807 = vmatpush1.msra.mxu0 0.0
        %1808 = vmatprep.subr.mxu0 0.0
        %1809 = vmatpush1.msra.mxu0 0.0
        %1810 = vmatprep.subr.mxu0 %v1282
        %1811 = vmatpush1.msra.mxu0 %v1281
        %1812 = vmatprep.subr.mxu0 %v1274
        %1813 = vmatpush1.msra.mxu0 %v1273
        %1814 = vmatprep.subr.mxu0 %v1266
        %1815 = vmatpush1.msra.mxu0 %v1265
        %1816 = vmatprep.subr.mxu0 %v1258
        %1817 = vmatpush1.msra.mxu0 %v1257
        %1818 = vmatprep.subr.mxu0 0.0
        %1819 = vmatpush2.msra.mxu0 0.0
        %1820 = vmatprep.subr.mxu0 0.0
        %1821 = vmatpush2.msra.mxu0 0.0
        %1822 = vmatprep.subr.mxu0 0.0
        %1823 = vmatpush2.msra.mxu0 0.0
        %1824 = vmatprep.subr.mxu0 0.0
        %1825 = vmatpush2.msra.mxu0 0.0
        %1826 = vmatprep.subr.mxu0 0.0
        %1827 = vmatpush2.msra.mxu0 0.0
        %1828 = vmatprep.subr.mxu0 0.0
        %1829 = vmatpush2.msra.mxu0 0.0
        %1830 = vmatprep.subr.mxu0 0.0
        %1831 = vmatpush2.msra.mxu0 0.0
        %1832 = vmatprep.subr.mxu0 0.0
        %1833 = vmatpush2.msra.mxu0 0.0
        %1834 = vmatprep.subr.mxu0 0.0
        %1835 = vmatpush2.msra.mxu0 0.0
        %1836 = vmatprep.subr.mxu0 0.0
        %1837 = vmatpush2.msra.mxu0 0.0
        %1838 = vmatprep.subr.mxu0 0.0
        %1839 = vmatpush2.msra.mxu0 0.0
        %1840 = vmatprep.subr.mxu0 0.0
        %1841 = vmatpush2.msra.mxu0 0.0
        %1842 = vmatprep.subr.mxu0 0.0
        %1843 = vmatpush2.msra.mxu0 0.0
        %1844 = vmatprep.subr.mxu0 0.0
        %1845 = vmatpush2.msra.mxu0 0.0
        %1846 = vmatprep.subr.mxu0 0.0
        %1847 = vmatpush2.msra.mxu0 0.0
        %1848 = vmatprep.subr.mxu0 0.0
        %1849 = vmatpush2.msra.mxu0 0.0
        %1850 = vmatprep.mubr.f32.mxu0 0.0
        %1851 = vmatmul.mubr.f32.gmra.mxu0 %v1571
        %v1852 = vpop.f32.mrf.mxu0
        %v1853 = vadd.f32 0.0, %v1852
        %v1854 = vpop.f32.mrf.mxu0
        %v1855 = vadd.f32 0.0, %v1854
        %1856 = vdwg.mxu0
        %v1857 = vsel %vm754, %v851, -inf
        %1858 = vmax.xlane.f32.xlu0 %v1857
        %v1859 = vpop.xlane.xlu0 %1858
        %v1860 = vsel %vm754, %v851, inf
        %1861 = vmin.xlane.f32.xlu0 %v1860
        %v1862 = vpop.xlane.xlu0 %1861
        %vm1863 = vcmp.ge.f32.partialorder %v1034, 0.0
        %vm1864 = vcmp.ge.f32.partialorder %v1036, 0.0
        %vm1865 = vcmp.ge.f32.partialorder %v1105, 0.0
        %vm1866 = vcmp.ge.f32.partialorder %v1107, 0.0
        %vm1867 = vcmp.ge.f32.partialorder %v1176, 0.0
        %vm1868 = vcmp.ge.f32.partialorder %v1178, 0.0
        %vm1869 = vcmp.ge.f32.partialorder %v1247, 0.0
        %vm1870 = vcmp.ge.f32.partialorder %v1249, 0.0
        %v1871 = vlaneseq
        %v1872 = vshrl.u32 %v1871, 7
        %v1873 = vsub.s32 0, %v1872
        %v1874 = vrot.slane %v1859, %v1873
        %v1875 = vlaneseq
        %v1876 = vshrl.u32 %v1875, 7
        %v1877 = vsub.s32 0, %v1876
        %v1878 = vrot.slane %v1862, %v1877
        %v1879 = vsel %vm1863, %v1874, %v1878
        %v1880 = vsel %vm1864, %v1874, %v1878
        %v1881 = vsel %vm1865, %v1874, %v1878
        %v1882 = vsel %vm1866, %v1874, %v1878
        %v1883 = vsel %vm1867, %v1874, %v1878
        %v1884 = vsel %vm1868, %v1874, %v1878
        %v1885 = vsel %vm1869, %v1874, %v1878
        %v1886 = vsel %vm1870, %v1874, %v1878
        %v1887 = vlaneseq
        %v1888 = vshrl.u32 %v1887, 7
        %v1889 = vsub.s32 0, %v1888
        %v1890 = vrot.slane %v1353, %v1889
        %v1891 = vlaneseq
        %v1892 = vshrl.u32 %v1891, 7
        %v1893 = vsub.s32 0, %v1892
        %v1894 = vrot.slane %v1355, %v1893
        %v1895 = vlaneseq
        %v1896 = vshrl.u32 %v1895, 7
        %v1897 = vsub.s32 0, %v1896
        %v1898 = vrot.slane %v1424, %v1897
        %v1899 = vlaneseq
        %v1900 = vshrl.u32 %v1899, 7
        %v1901 = vsub.s32 0, %v1900
        %v1902 = vrot.slane %v1426, %v1901
        %v1903 = vlaneseq
        %v1904 = vshrl.u32 %v1903, 7
        %v1905 = vsub.s32 0, %v1904
        %v1906 = vrot.slane %v1495, %v1905
        %v1907 = vlaneseq
        %v1908 = vshrl.u32 %v1907, 7
        %v1909 = vsub.s32 0, %v1908
        %v1910 = vrot.slane %v1497, %v1909
        %v1911 = vlaneseq
        %v1912 = vshrl.u32 %v1911, 7
        %v1913 = vsub.s32 0, %v1912
        %v1914 = vrot.slane %v1566, %v1913
        %v1915 = vlaneseq
        %v1916 = vshrl.u32 %v1915, 7
        %v1917 = vsub.s32 0, %v1916
        %v1918 = vrot.slane %v1568, %v1917
        %v1919 = vsub.f32 %v1890, %v1879
        %v1920 = vsub.f32 %v1894, %v1880
        %v1921 = vsub.f32 %v1898, %v1881
        %v1922 = vsub.f32 %v1902, %v1882
        %v1923 = vsub.f32 %v1906, %v1883
        %v1924 = vsub.f32 %v1910, %v1884
        %v1925 = vsub.f32 %v1914, %v1885
        %v1926 = vsub.f32 %v1918, %v1886
        %v1927 = vmul.f32 %v1034, %v1919
        %v1928 = vmul.f32 %v1036, %v1920
        %v1929 = vmul.f32 %v1105, %v1921
        %v1930 = vmul.f32 %v1107, %v1922
        %v1931 = vmul.f32 %v1176, %v1923
        %v1932 = vmul.f32 %v1178, %v1924
        %v1933 = vmul.f32 %v1247, %v1925
        %v1934 = vmul.f32 %v1249, %v1926
        %v1935 = vmul.f32 %v1927, 1.442695
        %v1936 = vpow.pop %v1935
        %v1937 = vmul.f32 %v1928, 1.442695
        %v1938 = vpow.pop %v1937
        %v1939 = vmul.f32 %v1929, 1.442695
        %v1940 = vpow.pop %v1939
        %v1941 = vmul.f32 %v1930, 1.442695
        %v1942 = vpow.pop %v1941
        %v1943 = vmul.f32 %v1931, 1.442695
        %v1944 = vpow.pop %v1943
        %v1945 = vmul.f32 %v1932, 1.442695
        %v1946 = vpow.pop %v1945
        %v1947 = vmul.f32 %v1933, 1.442695
        %v1948 = vpow.pop %v1947
        %v1949 = vmul.f32 %v1934, 1.442695
        %v1950 = vpow.pop %v1949
        %v1951 = vld [vmem:[%s17] sm:$0xff]
        %v1952 = vld [vmem:[%s17 + $0x8] sm:$0xff]
        %v1953 = vld [vmem:[%s17 + $0x10] sm:$0xff]
        %v1954 = vld [vmem:[%s17 + $0x18] sm:$0xff]
        %v1955 = vld [vmem:[%s17 + $0x20] sm:$0xff]
        %v1956 = vld [vmem:[%s17 + $0x28] sm:$0xff]
        %v1957 = vld [vmem:[%s17 + $0x30] sm:$0xff]
        %v1958 = vld [vmem:[%s17 + $0x38] sm:$0xff]
        %v1959 = vld [vmem:[%s17 + $0x40] sm:$0xff]
        %v1960 = vld [vmem:[%s17 + $0x48] sm:$0xff]
        %v1961 = vld [vmem:[%s17 + $0x50] sm:$0xff]
        %v1962 = vld [vmem:[%s17 + $0x58] sm:$0xff]
        %v1963 = vld [vmem:[%s17 + $0x60] sm:$0xff]
        %v1964 = vld [vmem:[%s17 + $0x68] sm:$0xff]
        %v1965 = vld [vmem:[%s17 + $0x70] sm:$0xff]
        %v1966 = vld [vmem:[%s17 + $0x78] sm:$0xff]
        %v1967 = vld [vmem:[%s17 + $0x80] sm:$0xff]
        %v1968 = vld [vmem:[%s17 + $0x88] sm:$0xff]
        %v1969 = vld [vmem:[%s17 + $0x90] sm:$0xff]
        %v1970 = vld [vmem:[%s17 + $0x98] sm:$0xff]
        %v1971 = vld [vmem:[%s17 + $0xa0] sm:$0xff]
        %v1972 = vld [vmem:[%s17 + $0xa8] sm:$0xff]
        %v1973 = vld [vmem:[%s17 + $0xb0] sm:$0xff]
        %v1974 = vld [vmem:[%s17 + $0xb8] sm:$0xff]
        %v1975 = vld [vmem:[%s17 + $0xc0] sm:$0xff]
        %v1976 = vld [vmem:[%s17 + $0xc8] sm:$0xff]
        %v1977 = vld [vmem:[%s17 + $0xd0] sm:$0xff]
        %v1978 = vld [vmem:[%s17 + $0xd8] sm:$0xff]
        %v1979 = vld [vmem:[%s17 + $0xe0] sm:$0xff]
        %v1980 = vld [vmem:[%s17 + $0xe8] sm:$0xff]
        %v1981 = vld [vmem:[%s17 + $0xf0] sm:$0xff]
        %v1982 = vld [vmem:[%s17 + $0xf8] sm:$0xff]
        %v1983 = vld [vmem:[%s17 + $0x100] sm:$0xff]
        %v1984 = vld [vmem:[%s17 + $0x108] sm:$0xff]
        %v1985 = vld [vmem:[%s17 + $0x110] sm:$0xff]
        %v1986 = vld [vmem:[%s17 + $0x118] sm:$0xff]
        %v1987 = vld [vmem:[%s17 + $0x120] sm:$0xff]
        %v1988 = vld [vmem:[%s17 + $0x128] sm:$0xff]
        %v1989 = vld [vmem:[%s17 + $0x130] sm:$0xff]
        %v1990 = vld [vmem:[%s17 + $0x138] sm:$0xff]
        %v1991 = vld [vmem:[%s17 + $0x140] sm:$0xff]
        %v1992 = vld [vmem:[%s17 + $0x148] sm:$0xff]
        %v1993 = vld [vmem:[%s17 + $0x150] sm:$0xff]
        %v1994 = vld [vmem:[%s17 + $0x158] sm:$0xff]
        %v1995 = vld [vmem:[%s17 + $0x160] sm:$0xff]
        %v1996 = vld [vmem:[%s17 + $0x168] sm:$0xff]
        %v1997 = vld [vmem:[%s17 + $0x170] sm:$0xff]
        %v1998 = vld [vmem:[%s17 + $0x178] sm:$0xff]
        %v1999 = vld [vmem:[%s17 + $0x180] sm:$0xff]
        %v2000 = vld [vmem:[%s17 + $0x188] sm:$0xff]
        %v2001 = vld [vmem:[%s17 + $0x190] sm:$0xff]
        %v2002 = vld [vmem:[%s17 + $0x198] sm:$0xff]
        %v2003 = vld [vmem:[%s17 + $0x1a0] sm:$0xff]
        %v2004 = vld [vmem:[%s17 + $0x1a8] sm:$0xff]
        %v2005 = vld [vmem:[%s17 + $0x1b0] sm:$0xff]
        %v2006 = vld [vmem:[%s17 + $0x1b8] sm:$0xff]
        %v2007 = vld [vmem:[%s17 + $0x1c0] sm:$0xff]
        %v2008 = vld [vmem:[%s17 + $0x1c8] sm:$0xff]
        %v2009 = vld [vmem:[%s17 + $0x1d0] sm:$0xff]
        %v2010 = vld [vmem:[%s17 + $0x1d8] sm:$0xff]
        %v2011 = vld [vmem:[%s17 + $0x1e0] sm:$0xff]
        %v2012 = vld [vmem:[%s17 + $0x1e8] sm:$0xff]
        %v2013 = vld [vmem:[%s17 + $0x1f0] sm:$0xff]
        %v2014 = vld [vmem:[%s17 + $0x1f8] sm:$0xff]
        %v2015 = vld [vmem:[%s17 + $0x200] sm:$0xff]
        %v2016 = vld [vmem:[%s17 + $0x208] sm:$0xff]
        %v2017 = vld [vmem:[%s17 + $0x210] sm:$0xff]
        %v2018 = vld [vmem:[%s17 + $0x218] sm:$0xff]
        %v2019 = vld [vmem:[%s17 + $0x220] sm:$0xff]
        %v2020 = vld [vmem:[%s17 + $0x228] sm:$0xff]
        %v2021 = vld [vmem:[%s17 + $0x230] sm:$0xff]
        %v2022 = vld [vmem:[%s17 + $0x238] sm:$0xff]
        %v2023 = vld [vmem:[%s17 + $0x240] sm:$0xff]
        %v2024 = vld [vmem:[%s17 + $0x248] sm:$0xff]
        %v2025 = vld [vmem:[%s17 + $0x250] sm:$0xff]
        %v2026 = vld [vmem:[%s17 + $0x258] sm:$0xff]
        %v2027 = vld [vmem:[%s17 + $0x260] sm:$0xff]
        %v2028 = vld [vmem:[%s17 + $0x268] sm:$0xff]
        %v2029 = vld [vmem:[%s17 + $0x270] sm:$0xff]
        %v2030 = vld [vmem:[%s17 + $0x278] sm:$0xff]
        %v2031 = vld [vmem:[%s17 + $0x280] sm:$0xff]
        %v2032 = vld [vmem:[%s17 + $0x288] sm:$0xff]
        %v2033 = vld [vmem:[%s17 + $0x290] sm:$0xff]
        %v2034 = vld [vmem:[%s17 + $0x298] sm:$0xff]
        %v2035 = vld [vmem:[%s17 + $0x2a0] sm:$0xff]
        %v2036 = vld [vmem:[%s17 + $0x2a8] sm:$0xff]
        %v2037 = vld [vmem:[%s17 + $0x2b0] sm:$0xff]
        %v2038 = vld [vmem:[%s17 + $0x2b8] sm:$0xff]
        %v2039 = vld [vmem:[%s17 + $0x2c0] sm:$0xff]
        %v2040 = vld [vmem:[%s17 + $0x2c8] sm:$0xff]
        %v2041 = vld [vmem:[%s17 + $0x2d0] sm:$0xff]
        %v2042 = vld [vmem:[%s17 + $0x2d8] sm:$0xff]
        %v2043 = vld [vmem:[%s17 + $0x2e0] sm:$0xff]
        %v2044 = vld [vmem:[%s17 + $0x2e8] sm:$0xff]
        %v2045 = vld [vmem:[%s17 + $0x2f0] sm:$0xff]
        %v2046 = vld [vmem:[%s17 + $0x2f8] sm:$0xff]
        %v2047 = vld [vmem:[%s17 + $0x300] sm:$0xff]
        %v2048 = vld [vmem:[%s17 + $0x308] sm:$0xff]
        %v2049 = vld [vmem:[%s17 + $0x310] sm:$0xff]
        %v2050 = vld [vmem:[%s17 + $0x318] sm:$0xff]
        %v2051 = vld [vmem:[%s17 + $0x320] sm:$0xff]
        %v2052 = vld [vmem:[%s17 + $0x328] sm:$0xff]
        %v2053 = vld [vmem:[%s17 + $0x330] sm:$0xff]
        %v2054 = vld [vmem:[%s17 + $0x338] sm:$0xff]
        %v2055 = vld [vmem:[%s17 + $0x340] sm:$0xff]
        %v2056 = vld [vmem:[%s17 + $0x348] sm:$0xff]
        %v2057 = vld [vmem:[%s17 + $0x350] sm:$0xff]
        %v2058 = vld [vmem:[%s17 + $0x358] sm:$0xff]
        %v2059 = vld [vmem:[%s17 + $0x360] sm:$0xff]
        %v2060 = vld [vmem:[%s17 + $0x368] sm:$0xff]
        %v2061 = vld [vmem:[%s17 + $0x370] sm:$0xff]
        %v2062 = vld [vmem:[%s17 + $0x378] sm:$0xff]
        %v2063 = vld [vmem:[%s17 + $0x380] sm:$0xff]
        %v2064 = vld [vmem:[%s17 + $0x388] sm:$0xff]
        %v2065 = vld [vmem:[%s17 + $0x390] sm:$0xff]
        %v2066 = vld [vmem:[%s17 + $0x398] sm:$0xff]
        %v2067 = vld [vmem:[%s17 + $0x3a0] sm:$0xff]
        %v2068 = vld [vmem:[%s17 + $0x3a8] sm:$0xff]
        %v2069 = vld [vmem:[%s17 + $0x3b0] sm:$0xff]
        %v2070 = vld [vmem:[%s17 + $0x3b8] sm:$0xff]
        %v2071 = vld [vmem:[%s17 + $0x3c0] sm:$0xff]
        %v2072 = vld [vmem:[%s17 + $0x3c8] sm:$0xff]
        %v2073 = vld [vmem:[%s17 + $0x3d0] sm:$0xff]
        %v2074 = vld [vmem:[%s17 + $0x3d8] sm:$0xff]
        %v2075 = vld [vmem:[%s17 + $0x3e0] sm:$0xff]
        %v2076 = vld [vmem:[%s17 + $0x3e8] sm:$0xff]
        %v2077 = vld [vmem:[%s17 + $0x3f0] sm:$0xff]
        %v2078 = vld [vmem:[%s17 + $0x3f8] sm:$0xff]
        %2079 = vmatprep.subr.mxu0 0.0
        %2080 = vmatpush1.msra.mxu0 %v1966
        %2081 = vmatprep.subr.mxu0 0.0
        %2082 = vmatpush1.msra.mxu0 %v1965
        %2083 = vmatprep.subr.mxu0 0.0
        %2084 = vmatpush1.msra.mxu0 %v1964
        %2085 = vmatprep.subr.mxu0 0.0
        %2086 = vmatpush1.msra.mxu0 %v1963
        %2087 = vmatprep.subr.mxu0 0.0
        %2088 = vmatpush1.msra.mxu0 %v1962
        %2089 = vmatprep.subr.mxu0 0.0
        %2090 = vmatpush1.msra.mxu0 %v1961
        %2091 = vmatprep.subr.mxu0 0.0
        %2092 = vmatpush1.msra.mxu0 %v1960
        %2093 = vmatprep.subr.mxu0 0.0
        %2094 = vmatpush1.msra.mxu0 %v1959
        %2095 = vmatprep.subr.mxu0 0.0
        %2096 = vmatpush1.msra.mxu0 %v1958
        %2097 = vmatprep.subr.mxu0 0.0
        %2098 = vmatpush1.msra.mxu0 %v1957
        %2099 = vmatprep.subr.mxu0 0.0
        %2100 = vmatpush1.msra.mxu0 %v1956
        %2101 = vmatprep.subr.mxu0 0.0
        %2102 = vmatpush1.msra.mxu0 %v1955
        %2103 = vmatprep.subr.mxu0 0.0
        %2104 = vmatpush1.msra.mxu0 %v1954
        %2105 = vmatprep.subr.mxu0 0.0
        %2106 = vmatpush1.msra.mxu0 %v1953
        %2107 = vmatprep.subr.mxu0 0.0
        %2108 = vmatpush1.msra.mxu0 %v1952
        %2109 = vmatprep.subr.mxu0 0.0
        %2110 = vmatpush1.msra.mxu0 %v1951
        %2111 = vmatprep.subr.mxu0 0.0
        %2112 = vmatpush2.msra.mxu0 %v1982
        %2113 = vmatprep.subr.mxu0 0.0
        %2114 = vmatpush2.msra.mxu0 %v1981
        %2115 = vmatprep.subr.mxu0 0.0
        %2116 = vmatpush2.msra.mxu0 %v1980
        %2117 = vmatprep.subr.mxu0 0.0
        %2118 = vmatpush2.msra.mxu0 %v1979
        %2119 = vmatprep.subr.mxu0 0.0
        %2120 = vmatpush2.msra.mxu0 %v1978
        %2121 = vmatprep.subr.mxu0 0.0
        %2122 = vmatpush2.msra.mxu0 %v1977
        %2123 = vmatprep.subr.mxu0 0.0
        %2124 = vmatpush2.msra.mxu0 %v1976
        %2125 = vmatprep.subr.mxu0 0.0
        %2126 = vmatpush2.msra.mxu0 %v1975
        %2127 = vmatprep.subr.mxu0 0.0
        %2128 = vmatpush2.msra.mxu0 %v1974
        %2129 = vmatprep.subr.mxu0 0.0
        %2130 = vmatpush2.msra.mxu0 %v1973
        %2131 = vmatprep.subr.mxu0 0.0
        %2132 = vmatpush2.msra.mxu0 %v1972
        %2133 = vmatprep.subr.mxu0 0.0
        %2134 = vmatpush2.msra.mxu0 %v1971
        %2135 = vmatprep.subr.mxu0 0.0
        %2136 = vmatpush2.msra.mxu0 %v1970
        %2137 = vmatprep.subr.mxu0 0.0
        %2138 = vmatpush2.msra.mxu0 %v1969
        %2139 = vmatprep.subr.mxu0 0.0
        %2140 = vmatpush2.msra.mxu0 %v1968
        %2141 = vmatprep.subr.mxu0 0.0
        %2142 = vmatpush2.msra.mxu0 %v1967
        %2143 = vmatprep.mubr.f32.mxu0 %v1938
        %2144 = vmatmul.mubr.f32.gmra.mxu0 %v1936
        %v2145 = vpop.f32.mrf.mxu0
        %v2146 = vadd.f32 0.0, %v2145
        %v2147 = vpop.f32.mrf.mxu0
        %2148 = vdwg.mxu0
        %2149 = vmatprep.subr.mxu0 0.0
        %2150 = vmatpush1.msra.mxu0 %v1998
        %2151 = vmatprep.subr.mxu0 0.0
        %2152 = vmatpush1.msra.mxu0 %v1997
        %2153 = vmatprep.subr.mxu0 0.0
        %2154 = vmatpush1.msra.mxu0 %v1996
        %2155 = vmatprep.subr.mxu0 0.0
        %2156 = vmatpush1.msra.mxu0 %v1995
        %2157 = vmatprep.subr.mxu0 0.0
        %2158 = vmatpush1.msra.mxu0 %v1994
        %2159 = vmatprep.subr.mxu0 0.0
        %2160 = vmatpush1.msra.mxu0 %v1993
        %2161 = vmatprep.subr.mxu0 0.0
        %2162 = vmatpush1.msra.mxu0 %v1992
        %2163 = vmatprep.subr.mxu0 0.0
        %2164 = vmatpush1.msra.mxu0 %v1991
        %2165 = vmatprep.subr.mxu0 0.0
        %2166 = vmatpush1.msra.mxu0 %v1990
        %2167 = vmatprep.subr.mxu0 0.0
        %2168 = vmatpush1.msra.mxu0 %v1989
        %2169 = vmatprep.subr.mxu0 0.0
        %2170 = vmatpush1.msra.mxu0 %v1988
        %2171 = vmatprep.subr.mxu0 0.0
        %2172 = vmatpush1.msra.mxu0 %v1987
        %2173 = vmatprep.subr.mxu0 0.0
        %2174 = vmatpush1.msra.mxu0 %v1986
        %2175 = vmatprep.subr.mxu0 0.0
        %2176 = vmatpush1.msra.mxu0 %v1985
        %2177 = vmatprep.subr.mxu0 0.0
        %2178 = vmatpush1.msra.mxu0 %v1984
        %2179 = vmatprep.subr.mxu0 0.0
        %2180 = vmatpush1.msra.mxu0 %v1983
        %2181 = vmatprep.subr.mxu0 0.0
        %2182 = vmatpush2.msra.mxu0 %v2014
        %2183 = vmatprep.subr.mxu0 0.0
        %2184 = vmatpush2.msra.mxu0 %v2013
        %2185 = vmatprep.subr.mxu0 0.0
        %2186 = vmatpush2.msra.mxu0 %v2012
        %2187 = vmatprep.subr.mxu0 0.0
        %2188 = vmatpush2.msra.mxu0 %v2011
        %2189 = vmatprep.subr.mxu0 0.0
        %2190 = vmatpush2.msra.mxu0 %v2010
        %2191 = vmatprep.subr.mxu0 0.0
        %2192 = vmatpush2.msra.mxu0 %v2009
        %2193 = vmatprep.subr.mxu0 0.0
        %2194 = vmatpush2.msra.mxu0 %v2008
        %2195 = vmatprep.subr.mxu0 0.0
        %2196 = vmatpush2.msra.mxu0 %v2007
        %2197 = vmatprep.subr.mxu0 0.0
        %2198 = vmatpush2.msra.mxu0 %v2006
        %2199 = vmatprep.subr.mxu0 0.0
        %2200 = vmatpush2.msra.mxu0 %v2005
        %2201 = vmatprep.subr.mxu0 0.0
        %2202 = vmatpush2.msra.mxu0 %v2004
        %2203 = vmatprep.subr.mxu0 0.0
        %2204 = vmatpush2.msra.mxu0 %v2003
        %2205 = vmatprep.subr.mxu0 0.0
        %2206 = vmatpush2.msra.mxu0 %v2002
        %2207 = vmatprep.subr.mxu0 0.0
        %2208 = vmatpush2.msra.mxu0 %v2001
        %2209 = vmatprep.subr.mxu0 0.0
        %2210 = vmatpush2.msra.mxu0 %v2000
        %2211 = vmatprep.subr.mxu0 0.0
        %2212 = vmatpush2.msra.mxu0 %v1999
        %2213 = vmatprep.mubr.f32.mxu0 %v1942
        %2214 = vmatmul.mubr.f32.gmra.mxu0 %v1940
        %v2215 = vpop.f32.mrf.mxu0
        %v2216 = vadd.f32 %v2146, %v2215
        %v2217 = vpop.f32.mrf.mxu0
        %2218 = vdwg.mxu0
        %2219 = vmatprep.subr.mxu0 0.0
        %2220 = vmatpush1.msra.mxu0 %v2030
        %2221 = vmatprep.subr.mxu0 0.0
        %2222 = vmatpush1.msra.mxu0 %v2029
        %2223 = vmatprep.subr.mxu0 0.0
        %2224 = vmatpush1.msra.mxu0 %v2028
        %2225 = vmatprep.subr.mxu0 0.0
        %2226 = vmatpush1.msra.mxu0 %v2027
        %2227 = vmatprep.subr.mxu0 0.0
        %2228 = vmatpush1.msra.mxu0 %v2026
        %2229 = vmatprep.subr.mxu0 0.0
        %2230 = vmatpush1.msra.mxu0 %v2025
        %2231 = vmatprep.subr.mxu0 0.0
        %2232 = vmatpush1.msra.mxu0 %v2024
        %2233 = vmatprep.subr.mxu0 0.0
        %2234 = vmatpush1.msra.mxu0 %v2023
        %2235 = vmatprep.subr.mxu0 0.0
        %2236 = vmatpush1.msra.mxu0 %v2022
        %2237 = vmatprep.subr.mxu0 0.0
        %2238 = vmatpush1.msra.mxu0 %v2021
        %2239 = vmatprep.subr.mxu0 0.0
        %2240 = vmatpush1.msra.mxu0 %v2020
        %2241 = vmatprep.subr.mxu0 0.0
        %2242 = vmatpush1.msra.mxu0 %v2019
        %2243 = vmatprep.subr.mxu0 0.0
        %2244 = vmatpush1.msra.mxu0 %v2018
        %2245 = vmatprep.subr.mxu0 0.0
        %2246 = vmatpush1.msra.mxu0 %v2017
        %2247 = vmatprep.subr.mxu0 0.0
        %2248 = vmatpush1.msra.mxu0 %v2016
        %2249 = vmatprep.subr.mxu0 0.0
        %2250 = vmatpush1.msra.mxu0 %v2015
        %2251 = vmatprep.subr.mxu0 0.0
        %2252 = vmatpush2.msra.mxu0 %v2046
        %2253 = vmatprep.subr.mxu0 0.0
        %2254 = vmatpush2.msra.mxu0 %v2045
        %2255 = vmatprep.subr.mxu0 0.0
        %2256 = vmatpush2.msra.mxu0 %v2044
        %2257 = vmatprep.subr.mxu0 0.0
        %2258 = vmatpush2.msra.mxu0 %v2043
        %2259 = vmatprep.subr.mxu0 0.0
        %2260 = vmatpush2.msra.mxu0 %v2042
        %2261 = vmatprep.subr.mxu0 0.0
        %2262 = vmatpush2.msra.mxu0 %v2041
        %2263 = vmatprep.subr.mxu0 0.0
        %2264 = vmatpush2.msra.mxu0 %v2040
        %2265 = vmatprep.subr.mxu0 0.0
        %2266 = vmatpush2.msra.mxu0 %v2039
        %2267 = vmatprep.subr.mxu0 0.0
        %2268 = vmatpush2.msra.mxu0 %v2038
        %2269 = vmatprep.subr.mxu0 0.0
        %2270 = vmatpush2.msra.mxu0 %v2037
        %2271 = vmatprep.subr.mxu0 0.0
        %2272 = vmatpush2.msra.mxu0 %v2036
        %2273 = vmatprep.subr.mxu0 0.0
        %2274 = vmatpush2.msra.mxu0 %v2035
        %2275 = vmatprep.subr.mxu0 0.0
        %2276 = vmatpush2.msra.mxu0 %v2034
        %2277 = vmatprep.subr.mxu0 0.0
        %2278 = vmatpush2.msra.mxu0 %v2033
        %2279 = vmatprep.subr.mxu0 0.0
        %2280 = vmatpush2.msra.mxu0 %v2032
        %2281 = vmatprep.subr.mxu0 0.0
        %2282 = vmatpush2.msra.mxu0 %v2031
        %2283 = vmatprep.mubr.f32.mxu0 %v1946
        %2284 = vmatmul.mubr.f32.gmra.mxu0 %v1944
        %v2285 = vpop.f32.mrf.mxu0
        %v2286 = vadd.f32 %v2216, %v2285
        %v2287 = vpop.f32.mrf.mxu0
        %2288 = vdwg.mxu0
        %2289 = vmatprep.subr.mxu0 0.0
        %2290 = vmatpush1.msra.mxu0 %v2062
        %2291 = vmatprep.subr.mxu0 0.0
        %2292 = vmatpush1.msra.mxu0 %v2061
        %2293 = vmatprep.subr.mxu0 0.0
        %2294 = vmatpush1.msra.mxu0 %v2060
        %2295 = vmatprep.subr.mxu0 0.0
        %2296 = vmatpush1.msra.mxu0 %v2059
        %2297 = vmatprep.subr.mxu0 0.0
        %2298 = vmatpush1.msra.mxu0 %v2058
        %2299 = vmatprep.subr.mxu0 0.0
        %2300 = vmatpush1.msra.mxu0 %v2057
        %2301 = vmatprep.subr.mxu0 0.0
        %2302 = vmatpush1.msra.mxu0 %v2056
        %2303 = vmatprep.subr.mxu0 0.0
        %2304 = vmatpush1.msra.mxu0 %v2055
        %2305 = vmatprep.subr.mxu0 0.0
        %2306 = vmatpush1.msra.mxu0 %v2054
        %2307 = vmatprep.subr.mxu0 0.0
        %2308 = vmatpush1.msra.mxu0 %v2053
        %2309 = vmatprep.subr.mxu0 0.0
        %2310 = vmatpush1.msra.mxu0 %v2052
        %2311 = vmatprep.subr.mxu0 0.0
        %2312 = vmatpush1.msra.mxu0 %v2051
        %2313 = vmatprep.subr.mxu0 0.0
        %2314 = vmatpush1.msra.mxu0 %v2050
        %2315 = vmatprep.subr.mxu0 0.0
        %2316 = vmatpush1.msra.mxu0 %v2049
        %2317 = vmatprep.subr.mxu0 0.0
        %2318 = vmatpush1.msra.mxu0 %v2048
        %2319 = vmatprep.subr.mxu0 0.0
        %2320 = vmatpush1.msra.mxu0 %v2047
        %2321 = vmatprep.subr.mxu0 0.0
        %2322 = vmatpush2.msra.mxu0 %v2078
        %2323 = vmatprep.subr.mxu0 0.0
        %2324 = vmatpush2.msra.mxu0 %v2077
        %2325 = vmatprep.subr.mxu0 0.0
        %2326 = vmatpush2.msra.mxu0 %v2076
        %2327 = vmatprep.subr.mxu0 0.0
        %2328 = vmatpush2.msra.mxu0 %v2075
        %2329 = vmatprep.subr.mxu0 0.0
        %2330 = vmatpush2.msra.mxu0 %v2074
        %2331 = vmatprep.subr.mxu0 0.0
        %2332 = vmatpush2.msra.mxu0 %v2073
        %2333 = vmatprep.subr.mxu0 0.0
        %2334 = vmatpush2.msra.mxu0 %v2072
        %2335 = vmatprep.subr.mxu0 0.0
        %2336 = vmatpush2.msra.mxu0 %v2071
        %2337 = vmatprep.subr.mxu0 0.0
        %2338 = vmatpush2.msra.mxu0 %v2070
        %2339 = vmatprep.subr.mxu0 0.0
        %2340 = vmatpush2.msra.mxu0 %v2069
        %2341 = vmatprep.subr.mxu0 0.0
        %2342 = vmatpush2.msra.mxu0 %v2068
        %2343 = vmatprep.subr.mxu0 0.0
        %2344 = vmatpush2.msra.mxu0 %v2067
        %2345 = vmatprep.subr.mxu0 0.0
        %2346 = vmatpush2.msra.mxu0 %v2066
        %2347 = vmatprep.subr.mxu0 0.0
        %2348 = vmatpush2.msra.mxu0 %v2065
        %2349 = vmatprep.subr.mxu0 0.0
        %2350 = vmatpush2.msra.mxu0 %v2064
        %2351 = vmatprep.subr.mxu0 0.0
        %2352 = vmatpush2.msra.mxu0 %v2063
        %2353 = vmatprep.mubr.f32.mxu0 %v1950
        %2354 = vmatmul.mubr.f32.gmra.mxu0 %v1948
        %v2355 = vpop.f32.mrf.mxu0
        %v2356 = vadd.f32 %v2286, %v2355
        %v2357 = vpop.f32.mrf.mxu0
        %2358 = vdwg.mxu0
        %v2359 = vlaneseq
        %v2360 = vshrl.u32 %v2359, 7
        %v2361 = vsub.s32 0, %v2360
        %v2362 = vrot.slane %v1640, %v2361
        %v2363 = vlaneseq
        %v2364 = vshrl.u32 %v2363, 7
        %v2365 = vsub.s32 0, %v2364
        %v2366 = vrot.slane %v1642, %v2365
        %v2367 = vlaneseq
        %v2368 = vshrl.u32 %v2367, 7
        %v2369 = vsub.s32 0, %v2368
        %v2370 = vrot.slane %v1711, %v2369
        %v2371 = vlaneseq
        %v2372 = vshrl.u32 %v2371, 7
        %v2373 = vsub.s32 0, %v2372
        %v2374 = vrot.slane %v1713, %v2373
        %v2375 = vlaneseq
        %v2376 = vshrl.u32 %v2375, 7
        %v2377 = vsub.s32 0, %v2376
        %v2378 = vrot.slane %v1782, %v2377
        %v2379 = vlaneseq
        %v2380 = vshrl.u32 %v2379, 7
        %v2381 = vsub.s32 0, %v2380
        %v2382 = vrot.slane %v1784, %v2381
        %v2383 = vlaneseq
        %v2384 = vshrl.u32 %v2383, 7
        %v2385 = vsub.s32 0, %v2384
        %v2386 = vrot.slane %v1853, %v2385
        %v2387 = vlaneseq
        %v2388 = vshrl.u32 %v2387, 7
        %v2389 = vsub.s32 0, %v2388
        %v2390 = vrot.slane %v1855, %v2389
        %v2391 = vmul.f32 %v1936, %v2362
        %v2392 = vmul.f32 %v1938, %v2366
        %v2393 = vmul.f32 %v1940, %v2370
        %v2394 = vmul.f32 %v1942, %v2374
        %v2395 = vmul.f32 %v1944, %v2378
        %v2396 = vmul.f32 %v1946, %v2382
        %v2397 = vmul.f32 %v1948, %v2386
        %v2398 = vmul.f32 %v1950, %v2390
        %2399 = vmatprep.subr.mxu0 0.0
        %2400 = vmatpush1.msra.mxu0 %v1966
        %2401 = vmatprep.subr.mxu0 0.0
        %2402 = vmatpush1.msra.mxu0 %v1965
        %2403 = vmatprep.subr.mxu0 0.0
        %2404 = vmatpush1.msra.mxu0 %v1964
        %2405 = vmatprep.subr.mxu0 0.0
        %2406 = vmatpush1.msra.mxu0 %v1963
        %2407 = vmatprep.subr.mxu0 0.0
        %2408 = vmatpush1.msra.mxu0 %v1962
        %2409 = vmatprep.subr.mxu0 0.0
        %2410 = vmatpush1.msra.mxu0 %v1961
        %2411 = vmatprep.subr.mxu0 0.0
        %2412 = vmatpush1.msra.mxu0 %v1960
        %2413 = vmatprep.subr.mxu0 0.0
        %2414 = vmatpush1.msra.mxu0 %v1959
        %2415 = vmatprep.subr.mxu0 0.0
        %2416 = vmatpush1.msra.mxu0 %v1958
        %2417 = vmatprep.subr.mxu0 0.0
        %2418 = vmatpush1.msra.mxu0 %v1957
        %2419 = vmatprep.subr.mxu0 0.0
        %2420 = vmatpush1.msra.mxu0 %v1956
        %2421 = vmatprep.subr.mxu0 0.0
        %2422 = vmatpush1.msra.mxu0 %v1955
        %2423 = vmatprep.subr.mxu0 0.0
        %2424 = vmatpush1.msra.mxu0 %v1954
        %2425 = vmatprep.subr.mxu0 0.0
        %2426 = vmatpush1.msra.mxu0 %v1953
        %2427 = vmatprep.subr.mxu0 0.0
        %2428 = vmatpush1.msra.mxu0 %v1952
        %2429 = vmatprep.subr.mxu0 0.0
        %2430 = vmatpush1.msra.mxu0 %v1951
        %2431 = vmatprep.subr.mxu0 0.0
        %2432 = vmatpush2.msra.mxu0 %v1982
        %2433 = vmatprep.subr.mxu0 0.0
        %2434 = vmatpush2.msra.mxu0 %v1981
        %2435 = vmatprep.subr.mxu0 0.0
        %2436 = vmatpush2.msra.mxu0 %v1980
        %2437 = vmatprep.subr.mxu0 0.0
        %2438 = vmatpush2.msra.mxu0 %v1979
        %2439 = vmatprep.subr.mxu0 0.0
        %2440 = vmatpush2.msra.mxu0 %v1978
        %2441 = vmatprep.subr.mxu0 0.0
        %2442 = vmatpush2.msra.mxu0 %v1977
        %2443 = vmatprep.subr.mxu0 0.0
        %2444 = vmatpush2.msra.mxu0 %v1976
        %2445 = vmatprep.subr.mxu0 0.0
        %2446 = vmatpush2.msra.mxu0 %v1975
        %2447 = vmatprep.subr.mxu0 0.0
        %2448 = vmatpush2.msra.mxu0 %v1974
        %2449 = vmatprep.subr.mxu0 0.0
        %2450 = vmatpush2.msra.mxu0 %v1973
        %2451 = vmatprep.subr.mxu0 0.0
        %2452 = vmatpush2.msra.mxu0 %v1972
        %2453 = vmatprep.subr.mxu0 0.0
        %2454 = vmatpush2.msra.mxu0 %v1971
        %2455 = vmatprep.subr.mxu0 0.0
        %2456 = vmatpush2.msra.mxu0 %v1970
        %2457 = vmatprep.subr.mxu0 0.0
        %2458 = vmatpush2.msra.mxu0 %v1969
        %2459 = vmatprep.subr.mxu0 0.0
        %2460 = vmatpush2.msra.mxu0 %v1968
        %2461 = vmatprep.subr.mxu0 0.0
        %2462 = vmatpush2.msra.mxu0 %v1967
        %2463 = vmatprep.mubr.f32.mxu0 %v2392
        %2464 = vmatmul.mubr.f32.gmra.mxu0 %v2391
        %v2465 = vpop.f32.mrf.mxu0
        %v2466 = vadd.f32 0.0, %v2465
        %v2467 = vpop.f32.mrf.mxu0
        %2468 = vdwg.mxu0
        %2469 = vmatprep.subr.mxu0 0.0
        %2470 = vmatpush1.msra.mxu0 %v1998
        %2471 = vmatprep.subr.mxu0 0.0
        %2472 = vmatpush1.msra.mxu0 %v1997
        %2473 = vmatprep.subr.mxu0 0.0
        %2474 = vmatpush1.msra.mxu0 %v1996
        %2475 = vmatprep.subr.mxu0 0.0
        %2476 = vmatpush1.msra.mxu0 %v1995
        %2477 = vmatprep.subr.mxu0 0.0
        %2478 = vmatpush1.msra.mxu0 %v1994
        %2479 = vmatprep.subr.mxu0 0.0
        %2480 = vmatpush1.msra.mxu0 %v1993
        %2481 = vmatprep.subr.mxu0 0.0
        %2482 = vmatpush1.msra.mxu0 %v1992
        %2483 = vmatprep.subr.mxu0 0.0
        %2484 = vmatpush1.msra.mxu0 %v1991
        %2485 = vmatprep.subr.mxu0 0.0
        %2486 = vmatpush1.msra.mxu0 %v1990
        %2487 = vmatprep.subr.mxu0 0.0
        %2488 = vmatpush1.msra.mxu0 %v1989
        %2489 = vmatprep.subr.mxu0 0.0
        %2490 = vmatpush1.msra.mxu0 %v1988
        %2491 = vmatprep.subr.mxu0 0.0
        %2492 = vmatpush1.msra.mxu0 %v1987
        %2493 = vmatprep.subr.mxu0 0.0
        %2494 = vmatpush1.msra.mxu0 %v1986
        %2495 = vmatprep.subr.mxu0 0.0
        %2496 = vmatpush1.msra.mxu0 %v1985
        %2497 = vmatprep.subr.mxu0 0.0
        %2498 = vmatpush1.msra.mxu0 %v1984
        %2499 = vmatprep.subr.mxu0 0.0
        %2500 = vmatpush1.msra.mxu0 %v1983
        %2501 = vmatprep.subr.mxu0 0.0
        %2502 = vmatpush2.msra.mxu0 %v2014
        %2503 = vmatprep.subr.mxu0 0.0
        %2504 = vmatpush2.msra.mxu0 %v2013
        %2505 = vmatprep.subr.mxu0 0.0
        %2506 = vmatpush2.msra.mxu0 %v2012
        %2507 = vmatprep.subr.mxu0 0.0
        %2508 = vmatpush2.msra.mxu0 %v2011
        %2509 = vmatprep.subr.mxu0 0.0
        %2510 = vmatpush2.msra.mxu0 %v2010
        %2511 = vmatprep.subr.mxu0 0.0
        %2512 = vmatpush2.msra.mxu0 %v2009
        %2513 = vmatprep.subr.mxu0 0.0
        %2514 = vmatpush2.msra.mxu0 %v2008
        %2515 = vmatprep.subr.mxu0 0.0
        %2516 = vmatpush2.msra.mxu0 %v2007
        %2517 = vmatprep.subr.mxu0 0.0
        %2518 = vmatpush2.msra.mxu0 %v2006
        %2519 = vmatprep.subr.mxu0 0.0
        %2520 = vmatpush2.msra.mxu0 %v2005
        %2521 = vmatprep.subr.mxu0 0.0
        %2522 = vmatpush2.msra.mxu0 %v2004
        %2523 = vmatprep.subr.mxu0 0.0
        %2524 = vmatpush2.msra.mxu0 %v2003
        %2525 = vmatprep.subr.mxu0 0.0
        %2526 = vmatpush2.msra.mxu0 %v2002
        %2527 = vmatprep.subr.mxu0 0.0
        %2528 = vmatpush2.msra.mxu0 %v2001
        %2529 = vmatprep.subr.mxu0 0.0
        %2530 = vmatpush2.msra.mxu0 %v2000
        %2531 = vmatprep.subr.mxu0 0.0
        %2532 = vmatpush2.msra.mxu0 %v1999
        %2533 = vmatprep.mubr.f32.mxu0 %v2394
        %2534 = vmatmul.mubr.f32.gmra.mxu0 %v2393
        %v2535 = vpop.f32.mrf.mxu0
        %v2536 = vadd.f32 %v2466, %v2535
        %v2537 = vpop.f32.mrf.mxu0
        %2538 = vdwg.mxu0
        %2539 = vmatprep.subr.mxu0 0.0
        %2540 = vmatpush1.msra.mxu0 %v2030
        %2541 = vmatprep.subr.mxu0 0.0
        %2542 = vmatpush1.msra.mxu0 %v2029
        %2543 = vmatprep.subr.mxu0 0.0
        %2544 = vmatpush1.msra.mxu0 %v2028
        %2545 = vmatprep.subr.mxu0 0.0
        %2546 = vmatpush1.msra.mxu0 %v2027
        %2547 = vmatprep.subr.mxu0 0.0
        %2548 = vmatpush1.msra.mxu0 %v2026
        %2549 = vmatprep.subr.mxu0 0.0
        %2550 = vmatpush1.msra.mxu0 %v2025
        %2551 = vmatprep.subr.mxu0 0.0
        %2552 = vmatpush1.msra.mxu0 %v2024
        %2553 = vmatprep.subr.mxu0 0.0
        %2554 = vmatpush1.msra.mxu0 %v2023
        %2555 = vmatprep.subr.mxu0 0.0
        %2556 = vmatpush1.msra.mxu0 %v2022
        %2557 = vmatprep.subr.mxu0 0.0
        %2558 = vmatpush1.msra.mxu0 %v2021
        %2559 = vmatprep.subr.mxu0 0.0
        %2560 = vmatpush1.msra.mxu0 %v2020
        %2561 = vmatprep.subr.mxu0 0.0
        %2562 = vmatpush1.msra.mxu0 %v2019
        %2563 = vmatprep.subr.mxu0 0.0
        %2564 = vmatpush1.msra.mxu0 %v2018
        %2565 = vmatprep.subr.mxu0 0.0
        %2566 = vmatpush1.msra.mxu0 %v2017
        %2567 = vmatprep.subr.mxu0 0.0
        %2568 = vmatpush1.msra.mxu0 %v2016
        %2569 = vmatprep.subr.mxu0 0.0
        %2570 = vmatpush1.msra.mxu0 %v2015
        %2571 = vmatprep.subr.mxu0 0.0
        %2572 = vmatpush2.msra.mxu0 %v2046
        %2573 = vmatprep.subr.mxu0 0.0
        %2574 = vmatpush2.msra.mxu0 %v2045
        %2575 = vmatprep.subr.mxu0 0.0
        %2576 = vmatpush2.msra.mxu0 %v2044
        %2577 = vmatprep.subr.mxu0 0.0
        %2578 = vmatpush2.msra.mxu0 %v2043
        %2579 = vmatprep.subr.mxu0 0.0
        %2580 = vmatpush2.msra.mxu0 %v2042
        %2581 = vmatprep.subr.mxu0 0.0
        %2582 = vmatpush2.msra.mxu0 %v2041
        %2583 = vmatprep.subr.mxu0 0.0
        %2584 = vmatpush2.msra.mxu0 %v2040
        %2585 = vmatprep.subr.mxu0 0.0
        %2586 = vmatpush2.msra.mxu0 %v2039
        %2587 = vmatprep.subr.mxu0 0.0
        %2588 = vmatpush2.msra.mxu0 %v2038
        %2589 = vmatprep.subr.mxu0 0.0
        %2590 = vmatpush2.msra.mxu0 %v2037
        %2591 = vmatprep.subr.mxu0 0.0
        %2592 = vmatpush2.msra.mxu0 %v2036
        %2593 = vmatprep.subr.mxu0 0.0
        %2594 = vmatpush2.msra.mxu0 %v2035
        %2595 = vmatprep.subr.mxu0 0.0
        %2596 = vmatpush2.msra.mxu0 %v2034
        %2597 = vmatprep.subr.mxu0 0.0
        %2598 = vmatpush2.msra.mxu0 %v2033
        %2599 = vmatprep.subr.mxu0 0.0
        %2600 = vmatpush2.msra.mxu0 %v2032
        %2601 = vmatprep.subr.mxu0 0.0
        %2602 = vmatpush2.msra.mxu0 %v2031
        %2603 = vmatprep.mubr.f32.mxu0 %v2396
        %2604 = vmatmul.mubr.f32.gmra.mxu0 %v2395
        %v2605 = vpop.f32.mrf.mxu0
        %v2606 = vadd.f32 %v2536, %v2605
        %v2607 = vpop.f32.mrf.mxu0
        %2608 = vdwg.mxu0
        %2609 = vmatprep.subr.mxu0 0.0
        %2610 = vmatpush1.msra.mxu0 %v2062
        %2611 = vmatprep.subr.mxu0 0.0
        %2612 = vmatpush1.msra.mxu0 %v2061
        %2613 = vmatprep.subr.mxu0 0.0
        %2614 = vmatpush1.msra.mxu0 %v2060
        %2615 = vmatprep.subr.mxu0 0.0
        %2616 = vmatpush1.msra.mxu0 %v2059
        %2617 = vmatprep.subr.mxu0 0.0
        %2618 = vmatpush1.msra.mxu0 %v2058
        %2619 = vmatprep.subr.mxu0 0.0
        %2620 = vmatpush1.msra.mxu0 %v2057
        %2621 = vmatprep.subr.mxu0 0.0
        %2622 = vmatpush1.msra.mxu0 %v2056
        %2623 = vmatprep.subr.mxu0 0.0
        %2624 = vmatpush1.msra.mxu0 %v2055
        %2625 = vmatprep.subr.mxu0 0.0
        %2626 = vmatpush1.msra.mxu0 %v2054
        %2627 = vmatprep.subr.mxu0 0.0
        %2628 = vmatpush1.msra.mxu0 %v2053
        %2629 = vmatprep.subr.mxu0 0.0
        %2630 = vmatpush1.msra.mxu0 %v2052
        %2631 = vmatprep.subr.mxu0 0.0
        %2632 = vmatpush1.msra.mxu0 %v2051
        %2633 = vmatprep.subr.mxu0 0.0
        %2634 = vmatpush1.msra.mxu0 %v2050
        %2635 = vmatprep.subr.mxu0 0.0
        %2636 = vmatpush1.msra.mxu0 %v2049
        %2637 = vmatprep.subr.mxu0 0.0
        %2638 = vmatpush1.msra.mxu0 %v2048
        %2639 = vmatprep.subr.mxu0 0.0
        %2640 = vmatpush1.msra.mxu0 %v2047
        %2641 = vmatprep.subr.mxu0 0.0
        %2642 = vmatpush2.msra.mxu0 %v2078
        %2643 = vmatprep.subr.mxu0 0.0
        %2644 = vmatpush2.msra.mxu0 %v2077
        %2645 = vmatprep.subr.mxu0 0.0
        %2646 = vmatpush2.msra.mxu0 %v2076
        %2647 = vmatprep.subr.mxu0 0.0
        %2648 = vmatpush2.msra.mxu0 %v2075
        %2649 = vmatprep.subr.mxu0 0.0
        %2650 = vmatpush2.msra.mxu0 %v2074
        %2651 = vmatprep.subr.mxu0 0.0
        %2652 = vmatpush2.msra.mxu0 %v2073
        %2653 = vmatprep.subr.mxu0 0.0
        %2654 = vmatpush2.msra.mxu0 %v2072
        %2655 = vmatprep.subr.mxu0 0.0
        %2656 = vmatpush2.msra.mxu0 %v2071
        %2657 = vmatprep.subr.mxu0 0.0
        %2658 = vmatpush2.msra.mxu0 %v2070
        %2659 = vmatprep.subr.mxu0 0.0
        %2660 = vmatpush2.msra.mxu0 %v2069
        %2661 = vmatprep.subr.mxu0 0.0
        %2662 = vmatpush2.msra.mxu0 %v2068
        %2663 = vmatprep.subr.mxu0 0.0
        %2664 = vmatpush2.msra.mxu0 %v2067
        %2665 = vmatprep.subr.mxu0 0.0
        %2666 = vmatpush2.msra.mxu0 %v2066
        %2667 = vmatprep.subr.mxu0 0.0
        %2668 = vmatpush2.msra.mxu0 %v2065
        %2669 = vmatprep.subr.mxu0 0.0
        %2670 = vmatpush2.msra.mxu0 %v2064
        %2671 = vmatprep.subr.mxu0 0.0
        %2672 = vmatpush2.msra.mxu0 %v2063
        %2673 = vmatprep.mubr.f32.mxu0 %v2398
        %2674 = vmatmul.mubr.f32.gmra.mxu0 %v2397
        %v2675 = vpop.f32.mrf.mxu0
        %v2676 = vadd.f32 %v2606, %v2675
        %v2677 = vpop.f32.mrf.mxu0
        %2678 = vdwg.mxu0
        %v2679 = vrcp.pop %v2356
        %v2680 = vmul.f32 %v2356, %v2679
        %v2681 = vsub.f32 2.0, %v2680
        %v2682 = vmul.f32 %v2679, %v2681
        %v2683 = vmul.f32 %v2676, %v2682
        %v2684 = vld [vmem:[%s14] sm:$0xff]
        %v2685 = vld [vmem:[%s14 + $0x8] sm:$0xff]
        %v2686 = vld [vmem:[%s14 + $0x10] sm:$0xff]
        %v2687 = vld [vmem:[%s14 + $0x18] sm:$0xff]
        %v2688 = vld [vmem:[%s15] sm:$0x1]
        %v2690 = vlaneseq
        %v2691 = vshrl.u32 %v2690, 7
        %v2692 = vsub.s32 0, %v2691
        %v2693 = vrot.slane %v2688, %v2692
        %v2696 = vsel %vm639, %v2683, 0
        %2698 = vmatprep.subr.mxu0 0.0
        %2699 = vmatpush1.msra.mxu0 0.0
        %2700 = vmatprep.subr.mxu0 0.0
        %2701 = vmatpush1.msra.mxu0 0.0
        %2702 = vmatprep.subr.mxu0 0.0
        %2703 = vmatpush1.msra.mxu0 0.0
        %2704 = vmatprep.subr.mxu0 0.0
        %2705 = vmatpush1.msra.mxu0 0.0
        %2706 = vmatprep.subr.mxu0 0.0
        %2707 = vmatpush1.msra.mxu0 0.0
        %2708 = vmatprep.subr.mxu0 0.0
        %2709 = vmatpush1.msra.mxu0 0.0
        %2710 = vmatprep.subr.mxu0 0.0
        %2711 = vmatpush1.msra.mxu0 0.0
        %2712 = vmatprep.subr.mxu0 0.0
        %2713 = vmatpush1.msra.mxu0 0.0
        %2714 = vmatprep.subr.mxu0 0.0
        %2715 = vmatpush1.msra.mxu0 0.0
        %2716 = vmatprep.subr.mxu0 0.0
        %2717 = vmatpush1.msra.mxu0 0.0
        %2718 = vmatprep.subr.mxu0 0.0
        %2719 = vmatpush1.msra.mxu0 0.0
        %2720 = vmatprep.subr.mxu0 0.0
        %2721 = vmatpush1.msra.mxu0 0.0
        %2722 = vmatprep.subr.mxu0 0.0
        %2723 = vmatpush1.msra.mxu0 %v2687
        %2724 = vmatprep.subr.mxu0 0.0
        %2725 = vmatpush1.msra.mxu0 %v2686
        %2726 = vmatprep.subr.mxu0 0.0
        %2727 = vmatpush1.msra.mxu0 %v2685
        %2728 = vmatprep.subr.mxu0 0.0
        %2729 = vmatpush1.msra.mxu0 %v2684
        %2730 = vmatprep.subr.mxu0 0.0
        %2731 = vmatpush2.msra.mxu0 0.0
        %2732 = vmatprep.subr.mxu0 0.0
        %2733 = vmatpush2.msra.mxu0 0.0
        %2734 = vmatprep.subr.mxu0 0.0
        %2735 = vmatpush2.msra.mxu0 0.0
        %2736 = vmatprep.subr.mxu0 0.0
        %2737 = vmatpush2.msra.mxu0 0.0
        %2738 = vmatprep.subr.mxu0 0.0
        %2739 = vmatpush2.msra.mxu0 0.0
        %2740 = vmatprep.subr.mxu0 0.0
        %2741 = vmatpush2.msra.mxu0 0.0
        %2742 = vmatprep.subr.mxu0 0.0
        %2743 = vmatpush2.msra.mxu0 0.0
        %2744 = vmatprep.subr.mxu0 0.0
        %2745 = vmatpush2.msra.mxu0 0.0
        %2746 = vmatprep.subr.mxu0 0.0
        %2747 = vmatpush2.msra.mxu0 0.0
        %2748 = vmatprep.subr.mxu0 0.0
        %2749 = vmatpush2.msra.mxu0 0.0
        %2750 = vmatprep.subr.mxu0 0.0
        %2751 = vmatpush2.msra.mxu0 0.0
        %2752 = vmatprep.subr.mxu0 0.0
        %2753 = vmatpush2.msra.mxu0 0.0
        %2754 = vmatprep.subr.mxu0 0.0
        %2755 = vmatpush2.msra.mxu0 0.0
        %2756 = vmatprep.subr.mxu0 0.0
        %2757 = vmatpush2.msra.mxu0 0.0
        %2758 = vmatprep.subr.mxu0 0.0
        %2759 = vmatpush2.msra.mxu0 0.0
        %2760 = vmatprep.subr.mxu0 0.0
        %2761 = vmatpush2.msra.mxu0 0.0
        %2762 = vmatprep.mubr.f32.mxu0 0.0
        %2763 = vmatmul.mubr.f32.gmra.mxu0 %v2696
        %v2764 = vpop.f32.mrf.mxu0
        %v2765 = vadd.f32 %v2693, %v2764
        %v2766 = vpop.f32.mrf.mxu0
        %2767 = vdwg.mxu0
        %2768 = vst.msk [vmem:[%s626] sm:$0xff] %vm639, %v2765
        %s2769 = sand.u32 %s466, 1
        %s2770 = scalar_lea.sflag [#allocation3], %s2769
        %s2771 = sand.u32 %s466, 1
        %s2772 = smul.addr %s2771, 8
        %s2773 = scalar_lea.vmem [#allocation2], %s2772
        // Predicated region
        $region97: #{tpu_custom_call.1} parent=95 // pred_check
          %p2774 = pneg %p476
        $region98: #{tpu_custom_call.1} parent=95 // pred_check_branch
          %2776 = sbr.rel (%p2774) target = $region100
        $region99: #{tpu_custom_call.1} parent=95 // pred_region
          %s2778 = ssub.s32 128, 128
          %2779 = vsyncadd %s2770, %s2778
          %s2780 = sadd.s32 %s38, %s37
          %s2781 = smul.addr %s2780, 128
          %s2782 = scalar_lea.hbm %s19, %s2781
          %s2784 = sshll.u32 %s2773, 4
          %s2785 = int_to_ptr.vmem [resolvable:$true] %s2784
          %2787 = dma.vmem_to_hbm [thread:$0]  %s2785, 128, %s2782, %s2770
        $region100: #{tpu_custom_call.1} parent=95 // pred_fallthru
          _
      $region96: #{tpu_custom_call.1} parent=5 // pred_fallthru
        _
      %p2788 = scmp.le.s32.totalorder 2, %s28
      // Predicated region
      $region101: #{tpu_custom_call.1} parent=5 // pred_check
        %p2789 = pneg %p2788
      $region102: #{tpu_custom_call.1} parent=5 // pred_check_branch
        %2791 = sbr.rel (%p2789) target = $region104
      $region103: #{tpu_custom_call.1} parent=5 // pred_region
        %s2792 = ssub.s32 %s28, 2
        // Predicated region
        $region105: #{tpu_custom_call.1} parent=103 // pred_check
          %p2793 = pneg %p482
        $region106: #{tpu_custom_call.1} parent=103 // pred_check_branch
          %2795 = sbr.rel (%p2793) target = $region108
        $region107: #{tpu_custom_call.1} parent=103 // pred_region
          %s2796 = sand.u32 %s467, 1
          %s2797 = scalar_lea.sflag [#allocation3], %s2796
          %s2798 = sand.u32 %s467, 1
          %s2799 = smul.addr %s2798, 8
          %s2800 = scalar_lea.vmem [#allocation2], %s2799
          %2801 = dma.done %s2797, 128
        $region108: #{tpu_custom_call.1} parent=103 // pred_fallthru
          _
      $region104: #{tpu_custom_call.1} parent=5 // pred_fallthru
        _
    $region6: #{tpu_custom_call.1} parent=1 // loop_footer
      %s32 = sadd.s32 1, %s28
    $region7: #{tpu_custom_call.1} parent=1 // loop_footer_branch
      %27 = sbr.rel target = $region3
    $region8: #{tpu_custom_call.1} parent=1 // loop_exit
      _
    %2802 = vsyncpa [#allocation3], 1
    %s2803 = scalar_lea.sflag [#allocation3], 1
    %2804 = vsyncpa %s2803, 1

</llo_original>
